<compile_context>
chip_gen: v5e
topology: v5e:2x2
jax: 0.10.0
libtpu: 0.0.40
codegen_flags: <defaults>
</compile_context>

<pallas_src>
import numpy as np
import jax
import jax.numpy as jnp
from jax.experimental import pallas as pl
from jax.experimental.pallas import tpu as pltpu

# ---- HiLo configuration (mirrors the PyTorch module __init__) --------------
DIM       = 64                       # embedding dim C
NUM_HEADS = 8
ALPHA     = 0.5
WS        = 2                        # window_size
HD        = DIM // NUM_HEADS         # head_dim = 8
L_HEADS   = int(NUM_HEADS * ALPHA)   # 4  (low-frequency heads)
L_DIM     = L_HEADS * HD             # 32
H_HEADS   = NUM_HEADS - L_HEADS      # 4  (high-frequency heads)
H_DIM     = H_HEADS * HD             # 32
SCALE     = HD ** (-0.5)

B, H, W = 2, 8, 8
N       = H * W                      # 64 tokens per image
HG, WG  = H // WS, W // WS
G       = HG * WG                    # windows per image = 16
WLEN    = WS * WS                    # tokens per window  = 4

BN = B * N                           # 128 tokens, batch folded
BG = B * G                           # 32 pooled tokens, batch folded
NEG = -1e30                          # additive mask value

assert L_HEADS == H_HEADS and L_DIM == H_DIM  # alpha = 0.5 -> shared head mask


def _build_constants():
    """Host-side constants (depend only on static B, H, W, ws)."""
    tok = np.arange(BN)
    b   = tok // N
    row = (tok % N) // W
    col = (tok % N) % W
    win = b * G + (row // WS) * WG + (col // WS)            # global window id

    # HiFi: token i attends token j iff same batch AND same ws x ws window.
    win_bias = np.where(win[:, None] == win[None, :], 0.0, NEG).astype(np.float32)
    win_bias_stack = np.tile(win_bias, (H_HEADS, 1))        # (H*BN, BN) = (512, 128)

    # LoFi: token i attends pooled window j iff same batch.
    key_b   = np.arange(BG) // G
    lo_bias = np.where(b[:, None] == key_b[None, :], 0.0, NEG).astype(np.float32)
    lo_bias_stack = np.tile(lo_bias, (L_HEADS, 1))          # (L*BN, BG) = (512, 32)

    # AvgPool2d(ws, ws): pooled token j = mean of its WLEN member tokens.
    pool = (np.arange(BG)[:, None] == win[None, :]).astype(np.float32) / WLEN  # (BG, BN)

    # Per-head channel mask, stacked along rows: row block h keeps head-h cols.
    hm = (np.arange(H_DIM)[None, :] // HD ==
          np.arange(H_HEADS)[:, None]).astype(np.float32)   # (H_HEADS, H_DIM)
    hm_stack = np.repeat(hm, BN, axis=0)                    # (H*BN, H_DIM) = (512, 32)
    return win_bias_stack, lo_bias_stack, pool, hm_stack


WIN_BIAS_STACK, LO_BIAS_STACK, POOL, HEAD_MASK_STACK = _build_constants()


def hilo_kernel(x_ref,
                win_bias_ref, lo_bias_ref, hmask_ref, pool_ref,
                whq_ref, whk_ref, whv_ref, whp_ref, bhp_ref,
                wlq_ref, wlk_ref, wlv_ref, wlp_ref, blp_ref,
                out_ref):
    """Single invocation over the whole (batch-folded) problem.

    x_ref:   (BN, C) tokens in original (H, W) row-major order, batch folded.
    out_ref: (BN, C) fused output: cols [0:H_DIM] = HiFi, [H_DIM:C] = LoFi.
    """
    f32 = jnp.float32
    x = x_ref[...]                  # (BN, DIM)
    hmask = hmask_ref[...]          # (HEADS*BN, 32)

    def heads_stack(q):             # (BN, 32) -> (HEADS*BN, 32), head-masked rows
        return jnp.concatenate([q] * H_HEADS, axis=0) * hmask

    def heads_merge(o):             # (HEADS*BN, 32) -> (BN, 32), keep own head cols
        om = o * hmask
        acc = om[0:BN]
        for h in range(1, H_HEADS):
            acc = acc + om[h * BN:(h + 1) * BN]
        return acc

    def attend(q, k, v, bias):
        # One score matmul / softmax / PV matmul for ALL heads (stacked on rows).
        s = jnp.dot(heads_stack(q), k.T, preferred_element_type=f32) * SCALE + bias
        s = s - jnp.max(s, axis=-1, keepdims=True)
        p = jnp.exp(s)              # masked entries underflow to exactly 0
        p = p / jnp.sum(p, axis=-1, keepdims=True)
        return heads_merge(jnp.dot(p, v, preferred_element_type=f32))

    # ---------------- HiFi: windowed attention (additive block-diag bias) ----
    qh = jnp.dot(x, whq_ref[...], preferred_element_type=f32)       # (BN, 32)
    kh = jnp.dot(x, whk_ref[...], preferred_element_type=f32)       # (BN, 32)
    vh = jnp.dot(x, whv_ref[...], preferred_element_type=f32)       # (BN, 32)
    oh = attend(qh, kh, vh, win_bias_ref[...])                      # (BN, 32)
    hifi = jnp.dot(oh, whp_ref[...], preferred_element_type=f32) + bhp_ref[...]

    # ---------------- LoFi: global attention on avg-pooled keys/values ------
    ql = jnp.dot(x, wlq_ref[...], preferred_element_type=f32)       # (BN, 32)
    xp = jnp.dot(pool_ref[...], x, preferred_element_type=f32)      # (BG, DIM)
    kl = jnp.dot(xp, wlk_ref[...], preferred_element_type=f32)      # (BG, 32)
    vl = jnp.dot(xp, wlv_ref[...], preferred_element_type=f32)      # (BG, 32)
    ol = attend(ql, kl, vl, lo_bias_ref[...])                       # (BN, 32)
    lofi = jnp.dot(ol, wlp_ref[...], preferred_element_type=f32) + blp_ref[...]

    # Fused, lane-dense output: one (BN, 64) store.
    out_ref[...] = jnp.concatenate([hifi, lofi], axis=-1)


def hilo_forward(x, params):
    """x: (B, N, C) float32 -> (B, N, C) float32 (HiLo forward)."""
    Bx, Nx, Cx = x.shape
    x2 = x.reshape(BN, DIM)

    # Split the fused projection weights on the host (done once / at load time).
    whqkv = params['whqkv']
    whq, whk, whv = (whqkv[:, :H_DIM], whqkv[:, H_DIM:2 * H_DIM],
                     whqkv[:, 2 * H_DIM:])
    wlkv = params['wlkv']
    wlk, wlv = wlkv[:, :L_DIM], wlkv[:, L_DIM:]

    vmem = pl.BlockSpec(memory_space=pltpu.MemorySpace.VMEM)
    out2 = pl.pallas_call(
        hilo_kernel,
        out_shape=jax.ShapeDtypeStruct((BN, DIM), jnp.float32),
        in_specs=[vmem] * 15,
        out_specs=vmem,
    )(x2,
      WIN_BIAS_STACK, LO_BIAS_STACK, HEAD_MASK_STACK, POOL,
      whq, whk, whv, params['whproj'], params['bhproj'],
      params['wlq'], wlk, wlv, params['wlproj'], params['blproj'])

    return out2.reshape(Bx, Nx, Cx)   # row-major: free reshape, no shuffles


# ---------------- pure-JAX reference (mirrors the PyTorch code) -------------
def hilo_reference(x, params):
    Bx, Nx, Cx = x.shape
    xh = x.reshape(Bx, H, W, Cx)

    # hifi
    xwin = xh.reshape(Bx, HG, WS, WG, WS, Cx).transpose(0, 1, 3, 2, 4, 5)
    qkv = xwin @ params['whqkv']
    qkv = qkv.reshape(Bx, G, WLEN, 3, H_HEADS, HD).transpose(3, 0, 1, 4, 2, 5)
    q, k, v = qkv[0], qkv[1], qkv[2]
    attn = (q @ jnp.swapaxes(k, -2, -1)) * SCALE
    attn = jax.nn.softmax(attn, axis=-1)
    out = attn @ v
    out = jnp.swapaxes(out, 2, 3).reshape(Bx, HG, WG, WS, WS, H_DIM)
    out = jnp.swapaxes(out, 2, 3).reshape(Bx, H, W, H_DIM)
    hifi = out @ params['whproj'] + params['bhproj']

    # lofi
    q = (xh @ params['wlq']).reshape(Bx, Nx, L_HEADS, HD).transpose(0, 2, 1, 3)
    xp = xh.reshape(Bx, HG, WS, WG, WS, Cx).mean(axis=(2, 4)).reshape(Bx, G, Cx)
    kv = (xp @ params['wlkv']).reshape(Bx, G, 2, L_HEADS, HD).transpose(2, 0, 3, 1, 4)
    k, v = kv[0], kv[1]
    attn = (q @ jnp.swapaxes(k, -2, -1)) * SCALE
    attn = jax.nn.softmax(attn, axis=-1)
    lofi = (attn @ v).transpose(0, 2, 1, 3).reshape(Bx, H, W, L_DIM)
    lofi = lofi @ params['wlproj'] + params['blproj']

    return jnp.concatenate([hifi, lofi], axis=-1).reshape(Bx, Nx, Cx)


def init_params(key):
    ks = jax.random.split(key, 7)
    s = 0.02
    return dict(
        wlq=s * jax.random.normal(ks[0], (DIM, L_DIM), jnp.float32),
        wlkv=s * jax.random.normal(ks[1], (DIM, 2 * L_DIM), jnp.float32),
        wlproj=s * jax.random.normal(ks[2], (L_DIM, L_DIM), jnp.float32),
        blproj=s * jax.random.normal(ks[3], (1, L_DIM), jnp.float32),
        whqkv=s * jax.random.normal(ks[4], (DIM, 3 * H_DIM), jnp.float32),
        whproj=s * jax.random.normal(ks[5], (H_DIM, H_DIM), jnp.float32),
        bhproj=s * jax.random.normal(ks[6], (1, H_DIM), jnp.float32),
    )


if __name__ == "__main__":
    key = jax.random.PRNGKey(0)
    kx, kp = jax.random.split(key)
    x = jax.random.normal(kx, (B, N, DIM), jnp.float32)
    params = init_params(kp)

    out = jax.block_until_ready(jax.jit(hilo_forward)(x, params))
    assert out.shape == (B, N, DIM)

    ref = hilo_reference(x, params)
    max_err = float(jnp.max(jnp.abs(out - ref)))
    if not bool(jnp.allclose(out, ref, atol=2e-4, rtol=2e-4)):
        raise SystemExit(f"HiLo Pallas kernel mismatch, max abs err = {max_err}")

    print("KERNEL_OK")
</pallas_src>

<mosaic_0001>
module attributes {stable_mosaic.version = 11 : i64} {
  func.func @hilo_kernel(%arg0: memref<128x64xf32, #tpu.memory_space<vmem>>, %arg1: memref<512x128xf32, #tpu.memory_space<vmem>>, %arg2: memref<512x32xf32, #tpu.memory_space<vmem>>, %arg3: memref<512x32xf32, #tpu.memory_space<vmem>>, %arg4: memref<32x128xf32, #tpu.memory_space<vmem>>, %arg5: memref<64x32xf32, #tpu.memory_space<vmem>>, %arg6: memref<64x32xf32, #tpu.memory_space<vmem>>, %arg7: memref<64x32xf32, #tpu.memory_space<vmem>>, %arg8: memref<32x32xf32, #tpu.memory_space<vmem>>, %arg9: memref<1x32xf32, #tpu.memory_space<vmem>>, %arg10: memref<64x32xf32, #tpu.memory_space<vmem>>, %arg11: memref<64x32xf32, #tpu.memory_space<vmem>>, %arg12: memref<64x32xf32, #tpu.memory_space<vmem>>, %arg13: memref<32x32xf32, #tpu.memory_space<vmem>>, %arg14: memref<1x32xf32, #tpu.memory_space<vmem>>, %arg15: memref<128x64xf32, #tpu.memory_space<vmem>>) attributes {dimension_semantics = [], scalar_prefetch = 0 : i64, scratch_operands = 0 : i64, tpu.core_type = #tpu.core_type<tc>} {
    %c0 = arith.constant 0 : index
    %c0_0 = arith.constant 0 : index
    %0 = vector.load %arg0[%c0, %c0_0] : memref<128x64xf32, #tpu.memory_space<vmem>>, vector<128x64xf32>
    %c0_1 = arith.constant 0 : index
    %c0_2 = arith.constant 0 : index
    %1 = vector.load %arg3[%c0_1, %c0_2] : memref<512x32xf32, #tpu.memory_space<vmem>>, vector<512x32xf32>
    %c0_3 = arith.constant 0 : index
    %c0_4 = arith.constant 0 : index
    %2 = vector.load %arg5[%c0_3, %c0_4] : memref<64x32xf32, #tpu.memory_space<vmem>>, vector<64x32xf32>
    %cst = arith.constant dense<0.000000e+00> : vector<128x32xf32>
    %3 = tpu.matmul %0, %2, %cst {dimension_numbers = #tpu.dot_dimension_numbers<[1], [0], [0], [1], [0, 0, 1, 1], [], []>} : vector<128x64xf32>, vector<64x32xf32>, vector<128x32xf32> -> vector<128x32xf32>
    %c0_5 = arith.constant 0 : index
    %c0_6 = arith.constant 0 : index
    %4 = vector.load %arg6[%c0_5, %c0_6] : memref<64x32xf32, #tpu.memory_space<vmem>>, vector<64x32xf32>
    %cst_7 = arith.constant dense<0.000000e+00> : vector<128x32xf32>
    %5 = tpu.matmul %0, %4, %cst_7 {dimension_numbers = #tpu.dot_dimension_numbers<[1], [0], [0], [1], [0, 0, 1, 1], [], []>} : vector<128x64xf32>, vector<64x32xf32>, vector<128x32xf32> -> vector<128x32xf32>
    %c0_8 = arith.constant 0 : index
    %c0_9 = arith.constant 0 : index
    %6 = vector.load %arg7[%c0_8, %c0_9] : memref<64x32xf32, #tpu.memory_space<vmem>>, vector<64x32xf32>
    %cst_10 = arith.constant dense<0.000000e+00> : vector<128x32xf32>
    %7 = tpu.matmul %0, %6, %cst_10 {dimension_numbers = #tpu.dot_dimension_numbers<[1], [0], [0], [1], [0, 0, 1, 1], [], []>} : vector<128x64xf32>, vector<64x32xf32>, vector<128x32xf32> -> vector<128x32xf32>
    %c0_11 = arith.constant 0 : index
    %c0_12 = arith.constant 0 : index
    %8 = vector.load %arg1[%c0_11, %c0_12] : memref<512x128xf32, #tpu.memory_space<vmem>>, vector<512x128xf32>
    %9 = tpu.concatenate %3, %3, %3, %3 in 0 : vector<128x32xf32>, vector<128x32xf32>, vector<128x32xf32>, vector<128x32xf32> -> vector<512x32xf32>
    %10 = arith.mulf %9, %1 : vector<512x32xf32>
    %11 = tpu.transpose %5, [1, 0] : vector<128x32xf32> -> vector<32x128xf32>
    %cst_13 = arith.constant dense<0.000000e+00> : vector<512x128xf32>
    %12 = tpu.matmul %10, %11, %cst_13 {dimension_numbers = #tpu.dot_dimension_numbers<[1], [0], [0], [1], [0, 0, 1, 1], [], []>} : vector<512x32xf32>, vector<32x128xf32>, vector<512x128xf32> -> vector<512x128xf32>
    %cst_14 = arith.constant 0.353553385 : f32
    %13 = vector.broadcast %cst_14 : f32 to vector<512x128xf32>
    %14 = arith.mulf %12, %13 : vector<512x128xf32>
    %15 = arith.addf %14, %8 : vector<512x128xf32>
    %cst_15 = arith.constant dense<0xFF800000> : vector<512xf32>
    %16 = vector.multi_reduction <maximumf>, %15, %cst_15 [1] : vector<512x128xf32> to vector<512xf32>
    %17 = vector.shape_cast %16 : vector<512xf32> to vector<512x1xf32>
    %18 = vector.broadcast %17 : vector<512x1xf32> to vector<512x128xf32>
    %19 = arith.subf %15, %18 : vector<512x128xf32>
    %20 = math.exp %19 : vector<512x128xf32>
    %cst_16 = arith.constant dense<0.000000e+00> : vector<512xf32>
    %21 = vector.multi_reduction <add>, %20, %cst_16 [1] : vector<512x128xf32> to vector<512xf32>
    %22 = vector.shape_cast %21 : vector<512xf32> to vector<512x1xf32>
    %23 = vector.broadcast %22 : vector<512x1xf32> to vector<512x128xf32>
    %24 = arith.divf %20, %23 : vector<512x128xf32>
    %cst_17 = arith.constant dense<0.000000e+00> : vector<512x32xf32>
    %25 = tpu.matmul %24, %7, %cst_17 {dimension_numbers = #tpu.dot_dimension_numbers<[1], [0], [0], [1], [0, 0, 1, 1], [], []>} : vector<512x128xf32>, vector<128x32xf32>, vector<512x32xf32> -> vector<512x32xf32>
    %26 = arith.mulf %25, %1 : vector<512x32xf32>
    %27 = vector.extract_strided_slice %26 {offsets = [0, 0], sizes = [128, 32], strides = [1, 1]} : vector<512x32xf32> to vector<128x32xf32>
    %28 = vector.extract_strided_slice %26 {offsets = [128, 0], sizes = [128, 32], strides = [1, 1]} : vector<512x32xf32> to vector<128x32xf32>
    %29 = arith.addf %27, %28 : vector<128x32xf32>
    %30 = vector.extract_strided_slice %26 {offsets = [256, 0], sizes = [128, 32], strides = [1, 1]} : vector<512x32xf32> to vector<128x32xf32>
    %31 = arith.addf %29, %30 : vector<128x32xf32>
    %32 = vector.extract_strided_slice %26 {offsets = [384, 0], sizes = [128, 32], strides = [1, 1]} : vector<512x32xf32> to vector<128x32xf32>
    %33 = arith.addf %31, %32 : vector<128x32xf32>
    %c0_18 = arith.constant 0 : index
    %c0_19 = arith.constant 0 : index
    %34 = vector.load %arg8[%c0_18, %c0_19] : memref<32x32xf32, #tpu.memory_space<vmem>>, vector<32x32xf32>
    %cst_20 = arith.constant dense<0.000000e+00> : vector<128x32xf32>
    %35 = tpu.matmul %33, %34, %cst_20 {dimension_numbers = #tpu.dot_dimension_numbers<[1], [0], [0], [1], [0, 0, 1, 1], [], []>} : vector<128x32xf32>, vector<32x32xf32>, vector<128x32xf32> -> vector<128x32xf32>
    %c0_21 = arith.constant 0 : index
    %c0_22 = arith.constant 0 : index
    %36 = vector.load %arg9[%c0_21, %c0_22] : memref<1x32xf32, #tpu.memory_space<vmem>>, vector<1x32xf32>
    %37 = vector.broadcast %36 : vector<1x32xf32> to vector<128x32xf32>
    %38 = arith.addf %35, %37 : vector<128x32xf32>
    %c0_23 = arith.constant 0 : index
    %c0_24 = arith.constant 0 : index
    %39 = vector.load %arg10[%c0_23, %c0_24] : memref<64x32xf32, #tpu.memory_space<vmem>>, vector<64x32xf32>
    %cst_25 = arith.constant dense<0.000000e+00> : vector<128x32xf32>
    %40 = tpu.matmul %0, %39, %cst_25 {dimension_numbers = #tpu.dot_dimension_numbers<[1], [0], [0], [1], [0, 0, 1, 1], [], []>} : vector<128x64xf32>, vector<64x32xf32>, vector<128x32xf32> -> vector<128x32xf32>
    %c0_26 = arith.constant 0 : index
    %c0_27 = arith.constant 0 : index
    %41 = vector.load %arg4[%c0_26, %c0_27] : memref<32x128xf32, #tpu.memory_space<vmem>>, vector<32x128xf32>
    %cst_28 = arith.constant dense<0.000000e+00> : vector<32x64xf32>
    %42 = tpu.matmul %41, %0, %cst_28 {dimension_numbers = #tpu.dot_dimension_numbers<[1], [0], [0], [1], [0, 0, 1, 1], [], []>} : vector<32x128xf32>, vector<128x64xf32>, vector<32x64xf32> -> vector<32x64xf32>
    %c0_29 = arith.constant 0 : index
    %c0_30 = arith.constant 0 : index
    %43 = vector.load %arg11[%c0_29, %c0_30] : memref<64x32xf32, #tpu.memory_space<vmem>>, vector<64x32xf32>
    %cst_31 = arith.constant dense<0.000000e+00> : vector<32x32xf32>
    %44 = tpu.matmul %42, %43, %cst_31 {dimension_numbers = #tpu.dot_dimension_numbers<[1], [0], [0], [1], [0, 0, 1, 1], [], []>} : vector<32x64xf32>, vector<64x32xf32>, vector<32x32xf32> -> vector<32x32xf32>
    %c0_32 = arith.constant 0 : index
    %c0_33 = arith.constant 0 : index
    %45 = vector.load %arg12[%c0_32, %c0_33] : memref<64x32xf32, #tpu.memory_space<vmem>>, vector<64x32xf32>
    %cst_34 = arith.constant dense<0.000000e+00> : vector<32x32xf32>
    %46 = tpu.matmul %42, %45, %cst_34 {dimension_numbers = #tpu.dot_dimension_numbers<[1], [0], [0], [1], [0, 0, 1, 1], [], []>} : vector<32x64xf32>, vector<64x32xf32>, vector<32x32xf32> -> vector<32x32xf32>
    %c0_35 = arith.constant 0 : index
    %c0_36 = arith.constant 0 : index
    %47 = vector.load %arg2[%c0_35, %c0_36] : memref<512x32xf32, #tpu.memory_space<vmem>>, vector<512x32xf32>
    %48 = tpu.concatenate %40, %40, %40, %40 in 0 : vector<128x32xf32>, vector<128x32xf32>, vector<128x32xf32>, vector<128x32xf32> -> vector<512x32xf32>
    %49 = arith.mulf %48, %1 : vector<512x32xf32>
    %50 = tpu.transpose %44, [1, 0] : vector<32x32xf32> -> vector<32x32xf32>
    %cst_37 = arith.constant dense<0.000000e+00> : vector<512x32xf32>
    %51 = tpu.matmul %49, %50, %cst_37 {dimension_numbers = #tpu.dot_dimension_numbers<[1], [0], [0], [1], [0, 0, 1, 1], [], []>} : vector<512x32xf32>, vector<32x32xf32>, vector<512x32xf32> -> vector<512x32xf32>
    %cst_38 = arith.constant 0.353553385 : f32
    %52 = vector.broadcast %cst_38 : f32 to vector<512x32xf32>
    %53 = arith.mulf %51, %52 : vector<512x32xf32>
    %54 = arith.addf %53, %47 : vector<512x32xf32>
    %cst_39 = arith.constant dense<0xFF800000> : vector<512xf32>
    %55 = vector.multi_reduction <maximumf>, %54, %cst_39 [1] : vector<512x32xf32> to vector<512xf32>
    %56 = vector.shape_cast %55 : vector<512xf32> to vector<512x1xf32>
    %57 = vector.broadcast %56 : vector<512x1xf32> to vector<512x32xf32>
    %58 = arith.subf %54, %57 : vector<512x32xf32>
    %59 = math.exp %58 : vector<512x32xf32>
    %cst_40 = arith.constant dense<0.000000e+00> : vector<512xf32>
    %60 = vector.multi_reduction <add>, %59, %cst_40 [1] : vector<512x32xf32> to vector<512xf32>
    %61 = vector.shape_cast %60 : vector<512xf32> to vector<512x1xf32>
    %62 = vector.broadcast %61 : vector<512x1xf32> to vector<512x32xf32>
    %63 = arith.divf %59, %62 : vector<512x32xf32>
    %cst_41 = arith.constant dense<0.000000e+00> : vector<512x32xf32>
    %64 = tpu.matmul %63, %46, %cst_41 {dimension_numbers = #tpu.dot_dimension_numbers<[1], [0], [0], [1], [0, 0, 1, 1], [], []>} : vector<512x32xf32>, vector<32x32xf32>, vector<512x32xf32> -> vector<512x32xf32>
    %65 = arith.mulf %64, %1 : vector<512x32xf32>
    %66 = vector.extract_strided_slice %65 {offsets = [0, 0], sizes = [128, 32], strides = [1, 1]} : vector<512x32xf32> to vector<128x32xf32>
    %67 = vector.extract_strided_slice %65 {offsets = [128, 0], sizes = [128, 32], strides = [1, 1]} : vector<512x32xf32> to vector<128x32xf32>
    %68 = arith.addf %66, %67 : vector<128x32xf32>
    %69 = vector.extract_strided_slice %65 {offsets = [256, 0], sizes = [128, 32], strides = [1, 1]} : vector<512x32xf32> to vector<128x32xf32>
    %70 = arith.addf %68, %69 : vector<128x32xf32>
    %71 = vector.extract_strided_slice %65 {offsets = [384, 0], sizes = [128, 32], strides = [1, 1]} : vector<512x32xf32> to vector<128x32xf32>
    %72 = arith.addf %70, %71 : vector<128x32xf32>
    %c0_42 = arith.constant 0 : index
    %c0_43 = arith.constant 0 : index
    %73 = vector.load %arg13[%c0_42, %c0_43] : memref<32x32xf32, #tpu.memory_space<vmem>>, vector<32x32xf32>
    %cst_44 = arith.constant dense<0.000000e+00> : vector<128x32xf32>
    %74 = tpu.matmul %72, %73, %cst_44 {dimension_numbers = #tpu.dot_dimension_numbers<[1], [0], [0], [1], [0, 0, 1, 1], [], []>} : vector<128x32xf32>, vector<32x32xf32>, vector<128x32xf32> -> vector<128x32xf32>
    %c0_45 = arith.constant 0 : index
    %c0_46 = arith.constant 0 : index
    %75 = vector.load %arg14[%c0_45, %c0_46] : memref<1x32xf32, #tpu.memory_space<vmem>>, vector<1x32xf32>
    %76 = vector.broadcast %75 : vector<1x32xf32> to vector<128x32xf32>
    %77 = arith.addf %74, %76 : vector<128x32xf32>
    %78 = tpu.concatenate %38, %77 in 1 : vector<128x32xf32>, vector<128x32xf32> -> vector<128x64xf32>
    %c0_47 = arith.constant 0 : index
    %c0_48 = arith.constant 0 : index
    %79 = vector.load %arg15[%c0_47, %c0_48] : memref<128x64xf32, #tpu.memory_space<vmem>>, vector<128x64xf32>
    tpu.vector_store %arg15[%c0_47, %c0_48], %78 {strides = array<i32>} : memref<128x64xf32, #tpu.memory_space<vmem>>, vector<128x64xf32>,
    return
  }
}

</mosaic_0001>

<llo_original>
// kernel: hilo_forward.1
$region0: #{hilo_forward.1}
  #allocation0 [shape = 'u32[]', space=smem, size = 0x4, offset = 0x4, fixed_abs, tag = 'smem constant byte address 0x4 - core index']
  #allocation1 [shape = 'u32[72,128]{1,0:T(1,128)}', space=vmem, size = 0x9000, scoped, tag = 'internal scratch']
  %s0 = inlined_call_operand.hbm [shape: f32[128,64], index: 0, kind: input, shape index: {}]
  %s1 = inlined_call_operand.hbm [shape: f32[512,128], index: 1, kind: input, shape index: {}]
  %s2 = inlined_call_operand.hbm [shape: f32[512,32], index: 2, kind: input, shape index: {}]
  %s3 = inlined_call_operand.vmem [shape: f32[512,32], index: 3, kind: input, shape index: {}]
  %s4 = inlined_call_operand.vmem [shape: f32[32,128], index: 4, kind: input, shape index: {}]
  %s5 = inlined_call_operand.vmem [shape: f32[64,32], index: 5, kind: input, shape index: {}]
  %s6 = inlined_call_operand.vmem [shape: f32[64,32], index: 6, kind: input, shape index: {}]
  %s7 = inlined_call_operand.vmem [shape: f32[64,32], index: 7, kind: input, shape index: {}]
  %s8 = inlined_call_operand.vmem [shape: f32[32,32], index: 8, kind: input, shape index: {}]
  %s9 = inlined_call_operand.vmem [shape: f32[1,32], index: 9, kind: input, shape index: {}]
  %s10 = inlined_call_operand.vmem [shape: f32[64,32], index: 10, kind: input, shape index: {}]
  %s11 = inlined_call_operand.vmem [shape: f32[64,32], index: 11, kind: input, shape index: {}]
  %s12 = inlined_call_operand.vmem [shape: f32[64,32], index: 12, kind: input, shape index: {}]
  %s13 = inlined_call_operand.vmem [shape: f32[32,32], index: 13, kind: input, shape index: {}]
  %s14 = inlined_call_operand.vmem [shape: f32[1,32], index: 14, kind: input, shape index: {}]
  %s15 = inlined_call_operand.hbm [shape: f32[128,64], index: 15, kind: output, shape index: {}]
  %s16 = sld [smem:[#allocation0]]
  $region82: #{hilo_forward.1} parent=0
    _
  %s18 = ssub.s32 1, %s16
  %s19 = scalar_select 0, %s18, %s16
  $region1: #{hilo_forward.1} parent=0
    #allocation2 [shape = 'u8[65536]{0}', space=vmem, size = 0x10000, scoped, tag = 'input window, operand 0, single buffered']
    #allocation3 [shape = 's32[1]{0}', space=sflag, size = 0x4, scoped, tag = 'scoped memory for hilo_forward.1']
    #allocation4 [shape = 's32[1]{0}', space=sflag, size = 0x4, scoped, tag = 'scoped memory for hilo_forward.1']
    #allocation5 [shape = 'u8[262144]{0}', space=vmem, size = 0x40000, scoped, tag = 'input window, operand 1, single buffered']
    #allocation6 [shape = 's32[1]{0}', space=sflag, size = 0x4, scoped, tag = 'scoped memory for hilo_forward.1']
    #allocation7 [shape = 'u8[262144]{0}', space=vmem, size = 0x40000, scoped, tag = 'input window, operand 2, single buffered']
    #allocation8 [shape = 'u8[65536]{0}', space=vmem, size = 0x10000, scoped, tag = 'output window, operand 0, single buffered']
    %20 = vsyncpa [#allocation3], 0
    %21 = vsyncpa [#allocation6], 0
    %22 = vsyncpa [#allocation4], 0
    // Predicated region
    $region2: #{hilo_forward.1} parent=1 // pred_check
      _
    $region3: #{hilo_forward.1} parent=1 // pred_check_branch
      %24 = sbr.rel (0) target = $region5
    $region4: #{hilo_forward.1} parent=1 // pred_region
      %26 = vsyncadd [#allocation3], 0
      %s27 = sshll.u32 %s0, 4
      %s28 = int_to_ptr.hbm [resolvable:$true] %s27
      %s29 = sshll.u32 [#allocation2], 4
      %s30 = int_to_ptr.vmem [resolvable:$true] %s29
      %35 = dma.hbm_to_vmem [thread:$0]  %s28, 2048, %s30, [#allocation3], 128, 128, 8
    $region5: #{hilo_forward.1} parent=1 // pred_fallthru
      _
    // Predicated region
    $region6: #{hilo_forward.1} parent=1 // pred_check
      _
    $region7: #{hilo_forward.1} parent=1 // pred_check_branch
      %37 = sbr.rel (0) target = $region9
    $region8: #{hilo_forward.1} parent=1 // pred_region
      %39 = vsyncadd [#allocation6], 0
      %s40 = sshll.u32 %s1, 4
      %s41 = int_to_ptr.hbm [resolvable:$true] %s40
      %s42 = sshll.u32 [#allocation5], 4
      %s43 = int_to_ptr.vmem [resolvable:$true] %s42
      %48 = dma.hbm_to_vmem [thread:$0]  %s41, 8192, %s43, [#allocation6], 128, 128, 8
    $region9: #{hilo_forward.1} parent=1 // pred_fallthru
      _
    // Predicated region
    $region10: #{hilo_forward.1} parent=1 // pred_check
      _
    $region11: #{hilo_forward.1} parent=1 // pred_check_branch
      %50 = sbr.rel (0) target = $region13
    $region12: #{hilo_forward.1} parent=1 // pred_region
      %52 = vsyncadd [#allocation6], 0
      %s53 = sshll.u32 %s2, 4
      %s54 = int_to_ptr.hbm [resolvable:$true] %s53
      %s55 = sshll.u32 [#allocation7], 4
      %s56 = int_to_ptr.vmem [resolvable:$true] %s55
      %61 = dma.hbm_to_vmem [thread:$0]  %s54, 8192, %s56, [#allocation6], 128, 128, 8
    $region13: #{hilo_forward.1} parent=1 // pred_fallthru
      _
    // Predicated region
    $region14: #{hilo_forward.1} parent=1 // pred_check
      _
    $region15: #{hilo_forward.1} parent=1 // pred_check_branch
      %63 = sbr.rel (0) target = $region17
    $region16: #{hilo_forward.1} parent=1 // pred_region
      _
    $region17: #{hilo_forward.1} parent=1 // pred_fallthru
      _
    // Predicated region
    $region18: #{hilo_forward.1} parent=1 // pred_check
      _
    $region19: #{hilo_forward.1} parent=1 // pred_check_branch
      %65 = sbr.rel (0) target = $region21
    $region20: #{hilo_forward.1} parent=1 // pred_region
      _
    $region21: #{hilo_forward.1} parent=1 // pred_fallthru
      _
    // Predicated region
    $region22: #{hilo_forward.1} parent=1 // pred_check
      _
    $region23: #{hilo_forward.1} parent=1 // pred_check_branch
      %67 = sbr.rel (0) target = $region25
    $region24: #{hilo_forward.1} parent=1 // pred_region
      _
    $region25: #{hilo_forward.1} parent=1 // pred_fallthru
      _
    // Predicated region
    $region26: #{hilo_forward.1} parent=1 // pred_check
      _
    $region27: #{hilo_forward.1} parent=1 // pred_check_branch
      %69 = sbr.rel (0) target = $region29
    $region28: #{hilo_forward.1} parent=1 // pred_region
      _
    $region29: #{hilo_forward.1} parent=1 // pred_fallthru
      _
    // Predicated region
    $region30: #{hilo_forward.1} parent=1 // pred_check
      _
    $region31: #{hilo_forward.1} parent=1 // pred_check_branch
      %71 = sbr.rel (0) target = $region33
    $region32: #{hilo_forward.1} parent=1 // pred_region
      _
    $region33: #{hilo_forward.1} parent=1 // pred_fallthru
      _
    // Predicated region
    $region34: #{hilo_forward.1} parent=1 // pred_check
      _
    $region35: #{hilo_forward.1} parent=1 // pred_check_branch
      %73 = sbr.rel (0) target = $region37
    $region36: #{hilo_forward.1} parent=1 // pred_region
      _
    $region37: #{hilo_forward.1} parent=1 // pred_fallthru
      _
    // Predicated region
    $region38: #{hilo_forward.1} parent=1 // pred_check
      _
    $region39: #{hilo_forward.1} parent=1 // pred_check_branch
      %75 = sbr.rel (0) target = $region41
    $region40: #{hilo_forward.1} parent=1 // pred_region
      _
    $region41: #{hilo_forward.1} parent=1 // pred_fallthru
      _
    // Predicated region
    $region42: #{hilo_forward.1} parent=1 // pred_check
      _
    $region43: #{hilo_forward.1} parent=1 // pred_check_branch
      %77 = sbr.rel (0) target = $region45
    $region44: #{hilo_forward.1} parent=1 // pred_region
      _
    $region45: #{hilo_forward.1} parent=1 // pred_fallthru
      _
    // Predicated region
    $region46: #{hilo_forward.1} parent=1 // pred_check
      _
    $region47: #{hilo_forward.1} parent=1 // pred_check_branch
      %79 = sbr.rel (0) target = $region49
    $region48: #{hilo_forward.1} parent=1 // pred_region
      _
    $region49: #{hilo_forward.1} parent=1 // pred_fallthru
      _
    // Predicated region
    $region50: #{hilo_forward.1} parent=1 // pred_check
      _
    $region51: #{hilo_forward.1} parent=1 // pred_check_branch
      %81 = sbr.rel (0) target = $region53
    $region52: #{hilo_forward.1} parent=1 // pred_region
      _
    $region53: #{hilo_forward.1} parent=1 // pred_fallthru
      _
    // Predicated region
    $region54: #{hilo_forward.1} parent=1 // pred_check
      _
    $region55: #{hilo_forward.1} parent=1 // pred_check_branch
      %83 = sbr.rel (0) target = $region57
    $region56: #{hilo_forward.1} parent=1 // pred_region
      _
    $region57: #{hilo_forward.1} parent=1 // pred_fallthru
      _
    // Predicated region
    $region58: #{hilo_forward.1} parent=1 // pred_check
      _
    $region59: #{hilo_forward.1} parent=1 // pred_check_branch
      %85 = sbr.rel (0) target = $region61
    $region60: #{hilo_forward.1} parent=1 // pred_region
      _
    $region61: #{hilo_forward.1} parent=1 // pred_fallthru
      _
    // Predicated region
    $region62: #{hilo_forward.1} parent=1 // pred_check
      _
    $region63: #{hilo_forward.1} parent=1 // pred_check_branch
      %87 = sbr.rel (0) target = $region65
    $region64: #{hilo_forward.1} parent=1 // pred_region
      %89 = dma.done [#allocation3], 2048
    $region65: #{hilo_forward.1} parent=1 // pred_fallthru
      _
    // Predicated region
    $region66: #{hilo_forward.1} parent=1 // pred_check
      _
    $region67: #{hilo_forward.1} parent=1 // pred_check_branch
      %91 = sbr.rel (0) target = $region69
    $region68: #{hilo_forward.1} parent=1 // pred_region
      %93 = dma.done [#allocation6], 8192
    $region69: #{hilo_forward.1} parent=1 // pred_fallthru
      _
    // Predicated region
    $region70: #{hilo_forward.1} parent=1 // pred_check
      _
    $region71: #{hilo_forward.1} parent=1 // pred_check_branch
      %95 = sbr.rel (0) target = $region73
    $region72: #{hilo_forward.1} parent=1 // pred_region
      %97 = dma.done [#allocation6], 8192
    $region73: #{hilo_forward.1} parent=1 // pred_fallthru
      _
    %v98 = vld [vmem:[#allocation2] sm:$0xff]
    %v99 = vld [vmem:[#allocation2 + $0x8] sm:$0xff]
    %v100 = vld [vmem:[#allocation2 + $0x10] sm:$0xff]
    %v101 = vld [vmem:[#allocation2 + $0x18] sm:$0xff]
    %v102 = vld [vmem:[#allocation2 + $0x20] sm:$0xff]
    %v103 = vld [vmem:[#allocation2 + $0x28] sm:$0xff]
    %v104 = vld [vmem:[#allocation2 + $0x30] sm:$0xff]
    %v105 = vld [vmem:[#allocation2 + $0x38] sm:$0xff]
    %v106 = vld [vmem:[#allocation2 + $0x40] sm:$0xff]
    %v107 = vld [vmem:[#allocation2 + $0x48] sm:$0xff]
    %v108 = vld [vmem:[#allocation2 + $0x50] sm:$0xff]
    %v109 = vld [vmem:[#allocation2 + $0x58] sm:$0xff]
    %v110 = vld [vmem:[#allocation2 + $0x60] sm:$0xff]
    %v111 = vld [vmem:[#allocation2 + $0x68] sm:$0xff]
    %v112 = vld [vmem:[#allocation2 + $0x70] sm:$0xff]
    %v113 = vld [vmem:[#allocation2 + $0x78] sm:$0xff]
    %v114 = vld [vmem:[%s3] sm:$0xff]
    %v115 = vld [vmem:[%s3 + $0x8] sm:$0xff]
    %v116 = vld [vmem:[%s3 + $0x10] sm:$0xff]
    %v117 = vld [vmem:[%s3 + $0x18] sm:$0xff]
    %v118 = vld [vmem:[%s3 + $0x20] sm:$0xff]
    %v119 = vld [vmem:[%s3 + $0x28] sm:$0xff]
    %v120 = vld [vmem:[%s3 + $0x30] sm:$0xff]
    %v121 = vld [vmem:[%s3 + $0x38] sm:$0xff]
    %v122 = vld [vmem:[%s3 + $0x40] sm:$0xff]
    %v123 = vld [vmem:[%s3 + $0x48] sm:$0xff]
    %v124 = vld [vmem:[%s3 + $0x50] sm:$0xff]
    %v125 = vld [vmem:[%s3 + $0x58] sm:$0xff]
    %v126 = vld [vmem:[%s3 + $0x60] sm:$0xff]
    %v127 = vld [vmem:[%s3 + $0x68] sm:$0xff]
    %v128 = vld [vmem:[%s3 + $0x70] sm:$0xff]
    %v129 = vld [vmem:[%s3 + $0x78] sm:$0xff]
    %v130 = vld [vmem:[%s3 + $0x80] sm:$0xff]
    %v131 = vld [vmem:[%s3 + $0x88] sm:$0xff]
    %v132 = vld [vmem:[%s3 + $0x90] sm:$0xff]
    %v133 = vld [vmem:[%s3 + $0x98] sm:$0xff]
    %v134 = vld [vmem:[%s3 + $0xa0] sm:$0xff]
    %v135 = vld [vmem:[%s3 + $0xa8] sm:$0xff]
    %v136 = vld [vmem:[%s3 + $0xb0] sm:$0xff]
    %v137 = vld [vmem:[%s3 + $0xb8] sm:$0xff]
    %v138 = vld [vmem:[%s3 + $0xc0] sm:$0xff]
    %v139 = vld [vmem:[%s3 + $0xc8] sm:$0xff]
    %v140 = vld [vmem:[%s3 + $0xd0] sm:$0xff]
    %v141 = vld [vmem:[%s3 + $0xd8] sm:$0xff]
    %v142 = vld [vmem:[%s3 + $0xe0] sm:$0xff]
    %v143 = vld [vmem:[%s3 + $0xe8] sm:$0xff]
    %v144 = vld [vmem:[%s3 + $0xf0] sm:$0xff]
    %v145 = vld [vmem:[%s3 + $0xf8] sm:$0xff]
    %v146 = vld [vmem:[%s3 + $0x100] sm:$0xff]
    %v147 = vld [vmem:[%s3 + $0x108] sm:$0xff]
    %v148 = vld [vmem:[%s3 + $0x110] sm:$0xff]
    %v149 = vld [vmem:[%s3 + $0x118] sm:$0xff]
    %v150 = vld [vmem:[%s3 + $0x120] sm:$0xff]
    %v151 = vld [vmem:[%s3 + $0x128] sm:$0xff]
    %v152 = vld [vmem:[%s3 + $0x130] sm:$0xff]
    %v153 = vld [vmem:[%s3 + $0x138] sm:$0xff]
    %v154 = vld [vmem:[%s3 + $0x140] sm:$0xff]
    %v155 = vld [vmem:[%s3 + $0x148] sm:$0xff]
    %v156 = vld [vmem:[%s3 + $0x150] sm:$0xff]
    %v157 = vld [vmem:[%s3 + $0x158] sm:$0xff]
    %v158 = vld [vmem:[%s3 + $0x160] sm:$0xff]
    %v159 = vld [vmem:[%s3 + $0x168] sm:$0xff]
    %v160 = vld [vmem:[%s3 + $0x170] sm:$0xff]
    %v161 = vld [vmem:[%s3 + $0x178] sm:$0xff]
    %v162 = vld [vmem:[%s3 + $0x180] sm:$0xff]
    %v163 = vld [vmem:[%s3 + $0x188] sm:$0xff]
    %v164 = vld [vmem:[%s3 + $0x190] sm:$0xff]
    %v165 = vld [vmem:[%s3 + $0x198] sm:$0xff]
    %v166 = vld [vmem:[%s3 + $0x1a0] sm:$0xff]
    %v167 = vld [vmem:[%s3 + $0x1a8] sm:$0xff]
    %v168 = vld [vmem:[%s3 + $0x1b0] sm:$0xff]
    %v169 = vld [vmem:[%s3 + $0x1b8] sm:$0xff]
    %v170 = vld [vmem:[%s3 + $0x1c0] sm:$0xff]
    %v171 = vld [vmem:[%s3 + $0x1c8] sm:$0xff]
    %v172 = vld [vmem:[%s3 + $0x1d0] sm:$0xff]
    %v173 = vld [vmem:[%s3 + $0x1d8] sm:$0xff]
    %v174 = vld [vmem:[%s3 + $0x1e0] sm:$0xff]
    %v175 = vld [vmem:[%s3 + $0x1e8] sm:$0xff]
    %v176 = vld [vmem:[%s3 + $0x1f0] sm:$0xff]
    %v177 = vld [vmem:[%s3 + $0x1f8] sm:$0xff]
    %v178 = vld [vmem:[%s5] sm:$0xff]
    %v179 = vld [vmem:[%s5 + $0x8] sm:$0xff]
    %v180 = vld [vmem:[%s5 + $0x10] sm:$0xff]
    %v181 = vld [vmem:[%s5 + $0x18] sm:$0xff]
    %v182 = vld [vmem:[%s5 + $0x20] sm:$0xff]
    %v183 = vld [vmem:[%s5 + $0x28] sm:$0xff]
    %v184 = vld [vmem:[%s5 + $0x30] sm:$0xff]
    %v185 = vld [vmem:[%s5 + $0x38] sm:$0xff]
    %vm186 = vcmask 523264
    %v188 = vsel %vm186, %v98, 0
    %v191 = vsel %vm186, %v99, 0
    %v194 = vsel %vm186, %v100, 0
    %v197 = vsel %vm186, %v101, 0
    %v200 = vsel %vm186, %v102, 0
    %v203 = vsel %vm186, %v103, 0
    %v206 = vsel %vm186, %v104, 0
    %v209 = vsel %vm186, %v105, 0
    %v212 = vsel %vm186, %v106, 0
    %v215 = vsel %vm186, %v107, 0
    %v218 = vsel %vm186, %v108, 0
    %v221 = vsel %vm186, %v109, 0
    %v224 = vsel %vm186, %v110, 0
    %v227 = vsel %vm186, %v111, 0
    %v230 = vsel %vm186, %v112, 0
    %v233 = vsel %vm186, %v113, 0
    %235 = vmatpush.msra.mxu0 0.0
    %236 = vmatpush.msra.mxu0 0.0
    %237 = vmatpush.msra.mxu0 0.0
    %238 = vmatpush.msra.mxu0 0.0
    %239 = vmatpush.msra.mxu0 0.0
    %240 = vmatpush.msra.mxu0 0.0
    %241 = vmatpush.msra.mxu0 0.0
    %242 = vmatpush.msra.mxu0 0.0
    %243 = vmatpush.msra.mxu0 %v185
    %244 = vmatpush.msra.mxu0 %v184
    %245 = vmatpush.msra.mxu0 %v183
    %246 = vmatpush.msra.mxu0 %v182
    %247 = vmatpush.msra.mxu0 %v181
    %248 = vmatpush.msra.mxu0 %v180
    %249 = vmatpush.msra.mxu0 %v179
    %250 = vmatpush.msra.mxu0 %v178
    %251 = vmatmul.f32.gmra.mxu0 %v188
    %v252 = vpop.f32.mrf.mxu0
    %v253 = vadd.f32 0.0, %v252
    %254 = vmatmul.f32.gmra.mxu0 %v191
    %v255 = vpop.f32.mrf.mxu0
    %v256 = vadd.f32 0.0, %v255
    %257 = vmatmul.f32.gmra.mxu0 %v194
    %v258 = vpop.f32.mrf.mxu0
    %v259 = vadd.f32 0.0, %v258
    %260 = vmatmul.f32.gmra.mxu0 %v197
    %v261 = vpop.f32.mrf.mxu0
    %v262 = vadd.f32 0.0, %v261
    %263 = vmatmul.f32.gmra.mxu0 %v200
    %v264 = vpop.f32.mrf.mxu0
    %v265 = vadd.f32 0.0, %v264
    %266 = vmatmul.f32.gmra.mxu0 %v203
    %v267 = vpop.f32.mrf.mxu0
    %v268 = vadd.f32 0.0, %v267
    %269 = vmatmul.f32.gmra.mxu0 %v206
    %v270 = vpop.f32.mrf.mxu0
    %v271 = vadd.f32 0.0, %v270
    %272 = vmatmul.f32.gmra.mxu0 %v209
    %v273 = vpop.f32.mrf.mxu0
    %v274 = vadd.f32 0.0, %v273
    %275 = vmatmul.f32.gmra.mxu0 %v212
    %v276 = vpop.f32.mrf.mxu0
    %v277 = vadd.f32 0.0, %v276
    %278 = vmatmul.f32.gmra.mxu0 %v215
    %v279 = vpop.f32.mrf.mxu0
    %v280 = vadd.f32 0.0, %v279
    %281 = vmatmul.f32.gmra.mxu0 %v218
    %v282 = vpop.f32.mrf.mxu0
    %v283 = vadd.f32 0.0, %v282
    %284 = vmatmul.f32.gmra.mxu0 %v221
    %v285 = vpop.f32.mrf.mxu0
    %v286 = vadd.f32 0.0, %v285
    %287 = vmatmul.f32.gmra.mxu0 %v224
    %v288 = vpop.f32.mrf.mxu0
    %v289 = vadd.f32 0.0, %v288
    %290 = vmatmul.f32.gmra.mxu0 %v227
    %v291 = vpop.f32.mrf.mxu0
    %v292 = vadd.f32 0.0, %v291
    %293 = vmatmul.f32.gmra.mxu0 %v230
    %v294 = vpop.f32.mrf.mxu0
    %v295 = vadd.f32 0.0, %v294
    %296 = vmatmul.f32.gmra.mxu0 %v233
    %v297 = vpop.f32.mrf.mxu0
    %v298 = vadd.f32 0.0, %v297
    %299 = vdwg.mxu0
    %v300 = vld [vmem:[%s6] sm:$0xff]
    %v301 = vld [vmem:[%s6 + $0x8] sm:$0xff]
    %v302 = vld [vmem:[%s6 + $0x10] sm:$0xff]
    %v303 = vld [vmem:[%s6 + $0x18] sm:$0xff]
    %v304 = vld [vmem:[%s6 + $0x20] sm:$0xff]
    %v305 = vld [vmem:[%s6 + $0x28] sm:$0xff]
    %v306 = vld [vmem:[%s6 + $0x30] sm:$0xff]
    %v307 = vld [vmem:[%s6 + $0x38] sm:$0xff]
    %308 = vmatpush.msra.mxu0 0.0
    %309 = vmatpush.msra.mxu0 0.0
    %310 = vmatpush.msra.mxu0 0.0
    %311 = vmatpush.msra.mxu0 0.0
    %312 = vmatpush.msra.mxu0 0.0
    %313 = vmatpush.msra.mxu0 0.0
    %314 = vmatpush.msra.mxu0 0.0
    %315 = vmatpush.msra.mxu0 0.0
    %316 = vmatpush.msra.mxu0 %v307
    %317 = vmatpush.msra.mxu0 %v306
    %318 = vmatpush.msra.mxu0 %v305
    %319 = vmatpush.msra.mxu0 %v304
    %320 = vmatpush.msra.mxu0 %v303
    %321 = vmatpush.msra.mxu0 %v302
    %322 = vmatpush.msra.mxu0 %v301
    %323 = vmatpush.msra.mxu0 %v300
    %324 = vmatmul.f32.gmra.mxu0 %v188
    %v325 = vpop.f32.mrf.mxu0
    %v326 = vadd.f32 0.0, %v325
    %327 = vmatmul.f32.gmra.mxu0 %v191
    %v328 = vpop.f32.mrf.mxu0
    %v329 = vadd.f32 0.0, %v328
    %330 = vmatmul.f32.gmra.mxu0 %v194
    %v331 = vpop.f32.mrf.mxu0
    %v332 = vadd.f32 0.0, %v331
    %333 = vmatmul.f32.gmra.mxu0 %v197
    %v334 = vpop.f32.mrf.mxu0
    %v335 = vadd.f32 0.0, %v334
    %336 = vmatmul.f32.gmra.mxu0 %v200
    %v337 = vpop.f32.mrf.mxu0
    %v338 = vadd.f32 0.0, %v337
    %339 = vmatmul.f32.gmra.mxu0 %v203
    %v340 = vpop.f32.mrf.mxu0
    %v341 = vadd.f32 0.0, %v340
    %342 = vmatmul.f32.gmra.mxu0 %v206
    %v343 = vpop.f32.mrf.mxu0
    %v344 = vadd.f32 0.0, %v343
    %345 = vmatmul.f32.gmra.mxu0 %v209
    %v346 = vpop.f32.mrf.mxu0
    %v347 = vadd.f32 0.0, %v346
    %348 = vmatmul.f32.gmra.mxu0 %v212
    %v349 = vpop.f32.mrf.mxu0
    %v350 = vadd.f32 0.0, %v349
    %351 = vmatmul.f32.gmra.mxu0 %v215
    %v352 = vpop.f32.mrf.mxu0
    %v353 = vadd.f32 0.0, %v352
    %354 = vmatmul.f32.gmra.mxu0 %v218
    %v355 = vpop.f32.mrf.mxu0
    %v356 = vadd.f32 0.0, %v355
    %357 = vmatmul.f32.gmra.mxu0 %v221
    %v358 = vpop.f32.mrf.mxu0
    %v359 = vadd.f32 0.0, %v358
    %360 = vmatmul.f32.gmra.mxu0 %v224
    %v361 = vpop.f32.mrf.mxu0
    %v362 = vadd.f32 0.0, %v361
    %363 = vmatmul.f32.gmra.mxu0 %v227
    %v364 = vpop.f32.mrf.mxu0
    %v365 = vadd.f32 0.0, %v364
    %366 = vmatmul.f32.gmra.mxu0 %v230
    %v367 = vpop.f32.mrf.mxu0
    %v368 = vadd.f32 0.0, %v367
    %369 = vmatmul.f32.gmra.mxu0 %v233
    %v370 = vpop.f32.mrf.mxu0
    %v371 = vadd.f32 0.0, %v370
    %372 = vdwg.mxu0
    %v373 = vld [vmem:[%s7] sm:$0xff]
    %v374 = vld [vmem:[%s7 + $0x8] sm:$0xff]
    %v375 = vld [vmem:[%s7 + $0x10] sm:$0xff]
    %v376 = vld [vmem:[%s7 + $0x18] sm:$0xff]
    %v377 = vld [vmem:[%s7 + $0x20] sm:$0xff]
    %v378 = vld [vmem:[%s7 + $0x28] sm:$0xff]
    %v379 = vld [vmem:[%s7 + $0x30] sm:$0xff]
    %v380 = vld [vmem:[%s7 + $0x38] sm:$0xff]
    %381 = vmatpush.msra.mxu0 0.0
    %382 = vmatpush.msra.mxu0 0.0
    %383 = vmatpush.msra.mxu0 0.0
    %384 = vmatpush.msra.mxu0 0.0
    %385 = vmatpush.msra.mxu0 0.0
    %386 = vmatpush.msra.mxu0 0.0
    %387 = vmatpush.msra.mxu0 0.0
    %388 = vmatpush.msra.mxu0 0.0
    %389 = vmatpush.msra.mxu0 %v380
    %390 = vmatpush.msra.mxu0 %v379
    %391 = vmatpush.msra.mxu0 %v378
    %392 = vmatpush.msra.mxu0 %v377
    %393 = vmatpush.msra.mxu0 %v376
    %394 = vmatpush.msra.mxu0 %v375
    %395 = vmatpush.msra.mxu0 %v374
    %396 = vmatpush.msra.mxu0 %v373
    %397 = vmatmul.f32.gmra.mxu0 %v188
    %v398 = vpop.f32.mrf.mxu0
    %v399 = vadd.f32 0.0, %v398
    %400 = vmatmul.f32.gmra.mxu0 %v191
    %v401 = vpop.f32.mrf.mxu0
    %v402 = vadd.f32 0.0, %v401
    %403 = vmatmul.f32.gmra.mxu0 %v194
    %v404 = vpop.f32.mrf.mxu0
    %v405 = vadd.f32 0.0, %v404
    %406 = vmatmul.f32.gmra.mxu0 %v197
    %v407 = vpop.f32.mrf.mxu0
    %v408 = vadd.f32 0.0, %v407
    %409 = vmatmul.f32.gmra.mxu0 %v200
    %v410 = vpop.f32.mrf.mxu0
    %v411 = vadd.f32 0.0, %v410
    %412 = vmatmul.f32.gmra.mxu0 %v203
    %v413 = vpop.f32.mrf.mxu0
    %v414 = vadd.f32 0.0, %v413
    %415 = vmatmul.f32.gmra.mxu0 %v206
    %v416 = vpop.f32.mrf.mxu0
    %v417 = vadd.f32 0.0, %v416
    %418 = vmatmul.f32.gmra.mxu0 %v209
    %v419 = vpop.f32.mrf.mxu0
    %v420 = vadd.f32 0.0, %v419
    %421 = vmatmul.f32.gmra.mxu0 %v212
    %v422 = vpop.f32.mrf.mxu0
    %v423 = vadd.f32 0.0, %v422
    %424 = vmatmul.f32.gmra.mxu0 %v215
    %v425 = vpop.f32.mrf.mxu0
    %v426 = vadd.f32 0.0, %v425
    %427 = vmatmul.f32.gmra.mxu0 %v218
    %v428 = vpop.f32.mrf.mxu0
    %v429 = vadd.f32 0.0, %v428
    %430 = vmatmul.f32.gmra.mxu0 %v221
    %v431 = vpop.f32.mrf.mxu0
    %v432 = vadd.f32 0.0, %v431
    %433 = vmatmul.f32.gmra.mxu0 %v224
    %v434 = vpop.f32.mrf.mxu0
    %v435 = vadd.f32 0.0, %v434
    %436 = vmatmul.f32.gmra.mxu0 %v227
    %v437 = vpop.f32.mrf.mxu0
    %v438 = vadd.f32 0.0, %v437
    %439 = vmatmul.f32.gmra.mxu0 %v230
    %v440 = vpop.f32.mrf.mxu0
    %v441 = vadd.f32 0.0, %v440
    %442 = vmatmul.f32.gmra.mxu0 %v233
    %v443 = vpop.f32.mrf.mxu0
    %v444 = vadd.f32 0.0, %v443
    %445 = vdwg.mxu0
    %v446 = vld [vmem:[#allocation5] sm:$0xff]
    %v447 = vld [vmem:[#allocation5 + $0x8] sm:$0xff]
    %v448 = vld [vmem:[#allocation5 + $0x10] sm:$0xff]
    %v449 = vld [vmem:[#allocation5 + $0x18] sm:$0xff]
    %v450 = vld [vmem:[#allocation5 + $0x20] sm:$0xff]
    %v451 = vld [vmem:[#allocation5 + $0x28] sm:$0xff]
    %v452 = vld [vmem:[#allocation5 + $0x30] sm:$0xff]
    %v453 = vld [vmem:[#allocation5 + $0x38] sm:$0xff]
    %v454 = vld [vmem:[#allocation5 + $0x40] sm:$0xff]
    %v455 = vld [vmem:[#allocation5 + $0x48] sm:$0xff]
    %v456 = vld [vmem:[#allocation5 + $0x50] sm:$0xff]
    %v457 = vld [vmem:[#allocation5 + $0x58] sm:$0xff]
    %v458 = vld [vmem:[#allocation5 + $0x60] sm:$0xff]
    %v459 = vld [vmem:[#allocation5 + $0x68] sm:$0xff]
    %v460 = vld [vmem:[#allocation5 + $0x70] sm:$0xff]
    %v461 = vld [vmem:[#allocation5 + $0x78] sm:$0xff]
    %v462 = vld [vmem:[#allocation5 + $0x80] sm:$0xff]
    %v463 = vld [vmem:[#allocation5 + $0x88] sm:$0xff]
    %v464 = vld [vmem:[#allocation5 + $0x90] sm:$0xff]
    %v465 = vld [vmem:[#allocation5 + $0x98] sm:$0xff]
    %v466 = vld [vmem:[#allocation5 + $0xa0] sm:$0xff]
    %v467 = vld [vmem:[#allocation5 + $0xa8] sm:$0xff]
    %v468 = vld [vmem:[#allocation5 + $0xb0] sm:$0xff]
    %v469 = vld [vmem:[#allocation5 + $0xb8] sm:$0xff]
    %v470 = vld [vmem:[#allocation5 + $0xc0] sm:$0xff]
    %v471 = vld [vmem:[#allocation5 + $0xc8] sm:$0xff]
    %v472 = vld [vmem:[#allocation5 + $0xd0] sm:$0xff]
    %v473 = vld [vmem:[#allocation5 + $0xd8] sm:$0xff]
    %v474 = vld [vmem:[#allocation5 + $0xe0] sm:$0xff]
    %v475 = vld [vmem:[#allocation5 + $0xe8] sm:$0xff]
    %v476 = vld [vmem:[#allocation5 + $0xf0] sm:$0xff]
    %v477 = vld [vmem:[#allocation5 + $0xf8] sm:$0xff]
    %v478 = vld [vmem:[#allocation5 + $0x100] sm:$0xff]
    %v479 = vld [vmem:[#allocation5 + $0x108] sm:$0xff]
    %v480 = vld [vmem:[#allocation5 + $0x110] sm:$0xff]
    %v481 = vld [vmem:[#allocation5 + $0x118] sm:$0xff]
    %v482 = vld [vmem:[#allocation5 + $0x120] sm:$0xff]
    %v483 = vld [vmem:[#allocation5 + $0x128] sm:$0xff]
    %v484 = vld [vmem:[#allocation5 + $0x130] sm:$0xff]
    %v485 = vld [vmem:[#allocation5 + $0x138] sm:$0xff]
    %v486 = vld [vmem:[#allocation5 + $0x140] sm:$0xff]
    %v487 = vld [vmem:[#allocation5 + $0x148] sm:$0xff]
    %v488 = vld [vmem:[#allocation5 + $0x150] sm:$0xff]
    %v489 = vld [vmem:[#allocation5 + $0x158] sm:$0xff]
    %v490 = vld [vmem:[#allocation5 + $0x160] sm:$0xff]
    %v491 = vld [vmem:[#allocation5 + $0x168] sm:$0xff]
    %v492 = vld [vmem:[#allocation5 + $0x170] sm:$0xff]
    %v493 = vld [vmem:[#allocation5 + $0x178] sm:$0xff]
    %v494 = vld [vmem:[#allocation5 + $0x180] sm:$0xff]
    %v495 = vld [vmem:[#allocation5 + $0x188] sm:$0xff]
    %v496 = vld [vmem:[#allocation5 + $0x190] sm:$0xff]
    %v497 = vld [vmem:[#allocation5 + $0x198] sm:$0xff]
    %v498 = vld [vmem:[#allocation5 + $0x1a0] sm:$0xff]
    %v499 = vld [vmem:[#allocation5 + $0x1a8] sm:$0xff]
    %v500 = vld [vmem:[#allocation5 + $0x1b0] sm:$0xff]
    %v501 = vld [vmem:[#allocation5 + $0x1b8] sm:$0xff]
    %v502 = vld [vmem:[#allocation5 + $0x1c0] sm:$0xff]
    %v503 = vld [vmem:[#allocation5 + $0x1c8] sm:$0xff]
    %v504 = vld [vmem:[#allocation5 + $0x1d0] sm:$0xff]
    %v505 = vld [vmem:[#allocation5 + $0x1d8] sm:$0xff]
    %v506 = vld [vmem:[#allocation5 + $0x1e0] sm:$0xff]
    %v507 = vld [vmem:[#allocation5 + $0x1e8] sm:$0xff]
    %v508 = vld [vmem:[#allocation5 + $0x1f0] sm:$0xff]
    %v509 = vld [vmem:[#allocation5 + $0x1f8] sm:$0xff]
    %v510 = vmul.f32 %v253, %v114
    %v511 = vmul.f32 %v256, %v115
    %v512 = vmul.f32 %v259, %v116
    %v513 = vmul.f32 %v262, %v117
    %v514 = vmul.f32 %v265, %v118
    %v515 = vmul.f32 %v268, %v119
    %v516 = vmul.f32 %v271, %v120
    %v517 = vmul.f32 %v274, %v121
    %v518 = vmul.f32 %v277, %v122
    %v519 = vmul.f32 %v280, %v123
    %v520 = vmul.f32 %v283, %v124
    %v521 = vmul.f32 %v286, %v125
    %v522 = vmul.f32 %v289, %v126
    %v523 = vmul.f32 %v292, %v127
    %v524 = vmul.f32 %v295, %v128
    %v525 = vmul.f32 %v298, %v129
    %v526 = vmul.f32 %v253, %v130
    %v527 = vmul.f32 %v256, %v131
    %v528 = vmul.f32 %v259, %v132
    %v529 = vmul.f32 %v262, %v133
    %v530 = vmul.f32 %v265, %v134
    %v531 = vmul.f32 %v268, %v135
    %v532 = vmul.f32 %v271, %v136
    %v533 = vmul.f32 %v274, %v137
    %v534 = vmul.f32 %v277, %v138
    %v535 = vmul.f32 %v280, %v139
    %v536 = vmul.f32 %v283, %v140
    %v537 = vmul.f32 %v286, %v141
    %v538 = vmul.f32 %v289, %v142
    %v539 = vmul.f32 %v292, %v143
    %v540 = vmul.f32 %v295, %v144
    %v541 = vmul.f32 %v298, %v145
    %v542 = vmul.f32 %v253, %v146
    %v543 = vmul.f32 %v256, %v147
    %v544 = vmul.f32 %v259, %v148
    %v545 = vmul.f32 %v262, %v149
    %v546 = vmul.f32 %v265, %v150
    %v547 = vmul.f32 %v268, %v151
    %v548 = vmul.f32 %v271, %v152
    %v549 = vmul.f32 %v274, %v153
    %v550 = vmul.f32 %v277, %v154
    %v551 = vmul.f32 %v280, %v155
    %v552 = vmul.f32 %v283, %v156
    %v553 = vmul.f32 %v286, %v157
    %v554 = vmul.f32 %v289, %v158
    %v555 = vmul.f32 %v292, %v159
    %v556 = vmul.f32 %v295, %v160
    %v557 = vmul.f32 %v298, %v161
    %v558 = vmul.f32 %v253, %v162
    %v559 = vmul.f32 %v256, %v163
    %v560 = vmul.f32 %v259, %v164
    %v561 = vmul.f32 %v262, %v165
    %v562 = vmul.f32 %v265, %v166
    %v563 = vmul.f32 %v268, %v167
    %v564 = vmul.f32 %v271, %v168
    %v565 = vmul.f32 %v274, %v169
    %v566 = vmul.f32 %v277, %v170
    %v567 = vmul.f32 %v280, %v171
    %v568 = vmul.f32 %v283, %v172
    %v569 = vmul.f32 %v286, %v173
    %v570 = vmul.f32 %v289, %v174
    %v571 = vmul.f32 %v292, %v175
    %v572 = vmul.f32 %v295, %v176
    %v573 = vmul.f32 %v298, %v177
    %vm574 = vcmask 261120
    %v576 = vsel %vm574, %v510, 0
    %v579 = vsel %vm574, %v511, 0
    %v582 = vsel %vm574, %v512, 0
    %v585 = vsel %vm574, %v513, 0
    %v588 = vsel %vm574, %v514, 0
    %v591 = vsel %vm574, %v515, 0
    %v594 = vsel %vm574, %v516, 0
    %v597 = vsel %vm574, %v517, 0
    %v600 = vsel %vm574, %v518, 0
    %v603 = vsel %vm574, %v519, 0
    %v606 = vsel %vm574, %v520, 0
    %v609 = vsel %vm574, %v521, 0
    %v612 = vsel %vm574, %v522, 0
    %v615 = vsel %vm574, %v523, 0
    %v618 = vsel %vm574, %v524, 0
    %v621 = vsel %vm574, %v525, 0
    %v624 = vsel %vm574, %v526, 0
    %v627 = vsel %vm574, %v527, 0
    %v630 = vsel %vm574, %v528, 0
    %v633 = vsel %vm574, %v529, 0
    %v636 = vsel %vm574, %v530, 0
    %v639 = vsel %vm574, %v531, 0
    %v642 = vsel %vm574, %v532, 0
    %v645 = vsel %vm574, %v533, 0
    %v648 = vsel %vm574, %v534, 0
    %v651 = vsel %vm574, %v535, 0
    %v654 = vsel %vm574, %v536, 0
    %v657 = vsel %vm574, %v537, 0
    %v660 = vsel %vm574, %v538, 0
    %v663 = vsel %vm574, %v539, 0
    %v666 = vsel %vm574, %v540, 0
    %v669 = vsel %vm574, %v541, 0
    %v672 = vsel %vm574, %v542, 0
    %v675 = vsel %vm574, %v543, 0
    %v678 = vsel %vm574, %v544, 0
    %v681 = vsel %vm574, %v545, 0
    %v684 = vsel %vm574, %v546, 0
    %v687 = vsel %vm574, %v547, 0
    %v690 = vsel %vm574, %v548, 0
    %v693 = vsel %vm574, %v549, 0
    %v696 = vsel %vm574, %v550, 0
    %v699 = vsel %vm574, %v551, 0
    %v702 = vsel %vm574, %v552, 0
    %v705 = vsel %vm574, %v553, 0
    %v708 = vsel %vm574, %v554, 0
    %v711 = vsel %vm574, %v555, 0
    %v714 = vsel %vm574, %v556, 0
    %v717 = vsel %vm574, %v557, 0
    %v720 = vsel %vm574, %v558, 0
    %v723 = vsel %vm574, %v559, 0
    %v726 = vsel %vm574, %v560, 0
    %v729 = vsel %vm574, %v561, 0
    %v732 = vsel %vm574, %v562, 0
    %v735 = vsel %vm574, %v563, 0
    %v738 = vsel %vm574, %v564, 0
    %v741 = vsel %vm574, %v565, 0
    %v744 = vsel %vm574, %v566, 0
    %v747 = vsel %vm574, %v567, 0
    %v750 = vsel %vm574, %v568, 0
    %v753 = vsel %vm574, %v569, 0
    %v756 = vsel %vm574, %v570, 0
    %v759 = vsel %vm574, %v571, 0
    %v762 = vsel %vm574, %v572, 0
    %v765 = vsel %vm574, %v573, 0
    %v768 = vsel %vm574, %v326, 0
    %v771 = vsel %vm574, %v329, 0
    %v774 = vsel %vm574, %v332, 0
    %v777 = vsel %vm574, %v335, 0
    %v780 = vsel %vm574, %v338, 0
    %v783 = vsel %vm574, %v341, 0
    %v786 = vsel %vm574, %v344, 0
    %v789 = vsel %vm574, %v347, 0
    %v792 = vsel %vm574, %v350, 0
    %v795 = vsel %vm574, %v353, 0
    %v798 = vsel %vm574, %v356, 0
    %v801 = vsel %vm574, %v359, 0
    %v804 = vsel %vm574, %v362, 0
    %v807 = vsel %vm574, %v365, 0
    %v810 = vsel %vm574, %v368, 0
    %v813 = vsel %vm574, %v371, 0
    %815 = vmatpush.xpose.msra.mxu0 %v813
    %816 = vmatpush.xpose.msra.mxu0 %v810
    %817 = vmatpush.xpose.msra.mxu0 %v807
    %818 = vmatpush.xpose.msra.mxu0 %v804
    %819 = vmatpush.xpose.msra.mxu0 %v801
    %820 = vmatpush.xpose.msra.mxu0 %v798
    %821 = vmatpush.xpose.msra.mxu0 %v795
    %822 = vmatpush.xpose.msra.mxu0 %v792
    %823 = vmatpush.xpose.msra.mxu0 %v789
    %824 = vmatpush.xpose.msra.mxu0 %v786
    %825 = vmatpush.xpose.msra.mxu0 %v783
    %826 = vmatpush.xpose.msra.mxu0 %v780
    %827 = vmatpush.xpose.msra.mxu0 %v777
    %828 = vmatpush.xpose.msra.mxu0 %v774
    %829 = vmatpush.xpose.msra.mxu0 %v771
    %830 = vmatpush.xpose.msra.mxu0 %v768
    %831 = vmatmul.f32.gmra.mxu0 %v576
    %v832 = vpop.f32.mrf.mxu0
    %v833 = vadd.f32 0.0, %v832
    %834 = vmatmul.f32.gmra.mxu0 %v579
    %v835 = vpop.f32.mrf.mxu0
    %v836 = vadd.f32 0.0, %v835
    %837 = vmatmul.f32.gmra.mxu0 %v582
    %v838 = vpop.f32.mrf.mxu0
    %v839 = vadd.f32 0.0, %v838
    %840 = vmatmul.f32.gmra.mxu0 %v585
    %v841 = vpop.f32.mrf.mxu0
    %v842 = vadd.f32 0.0, %v841
    %843 = vmatmul.f32.gmra.mxu0 %v588
    %v844 = vpop.f32.mrf.mxu0
    %v845 = vadd.f32 0.0, %v844
    %846 = vmatmul.f32.gmra.mxu0 %v591
    %v847 = vpop.f32.mrf.mxu0
    %v848 = vadd.f32 0.0, %v847
    %849 = vmatmul.f32.gmra.mxu0 %v594
    %v850 = vpop.f32.mrf.mxu0
    %v851 = vadd.f32 0.0, %v850
    %852 = vmatmul.f32.gmra.mxu0 %v597
    %v853 = vpop.f32.mrf.mxu0
    %v854 = vadd.f32 0.0, %v853
    %855 = vmatmul.f32.gmra.mxu0 %v600
    %v856 = vpop.f32.mrf.mxu0
    %v857 = vadd.f32 0.0, %v856
    %858 = vmatmul.f32.gmra.mxu0 %v603
    %v859 = vpop.f32.mrf.mxu0
    %v860 = vadd.f32 0.0, %v859
    %861 = vmatmul.f32.gmra.mxu0 %v606
    %v862 = vpop.f32.mrf.mxu0
    %v863 = vadd.f32 0.0, %v862
    %864 = vmatmul.f32.gmra.mxu0 %v609
    %v865 = vpop.f32.mrf.mxu0
    %v866 = vadd.f32 0.0, %v865
    %867 = vmatmul.f32.gmra.mxu0 %v612
    %v868 = vpop.f32.mrf.mxu0
    %v869 = vadd.f32 0.0, %v868
    %870 = vmatmul.f32.gmra.mxu0 %v615
    %v871 = vpop.f32.mrf.mxu0
    %v872 = vadd.f32 0.0, %v871
    %873 = vmatmul.f32.gmra.mxu0 %v618
    %v874 = vpop.f32.mrf.mxu0
    %v875 = vadd.f32 0.0, %v874
    %876 = vmatmul.f32.gmra.mxu0 %v621
    %v877 = vpop.f32.mrf.mxu0
    %v878 = vadd.f32 0.0, %v877
    %879 = vmatmul.f32.gmra.mxu0 %v624
    %v880 = vpop.f32.mrf.mxu0
    %v881 = vadd.f32 0.0, %v880
    %882 = vmatmul.f32.gmra.mxu0 %v627
    %v883 = vpop.f32.mrf.mxu0
    %v884 = vadd.f32 0.0, %v883
    %885 = vmatmul.f32.gmra.mxu0 %v630
    %v886 = vpop.f32.mrf.mxu0
    %v887 = vadd.f32 0.0, %v886
    %888 = vmatmul.f32.gmra.mxu0 %v633
    %v889 = vpop.f32.mrf.mxu0
    %v890 = vadd.f32 0.0, %v889
    %891 = vmatmul.f32.gmra.mxu0 %v636
    %v892 = vpop.f32.mrf.mxu0
    %v893 = vadd.f32 0.0, %v892
    %894 = vmatmul.f32.gmra.mxu0 %v639
    %v895 = vpop.f32.mrf.mxu0
    %v896 = vadd.f32 0.0, %v895
    %897 = vmatmul.f32.gmra.mxu0 %v642
    %v898 = vpop.f32.mrf.mxu0
    %v899 = vadd.f32 0.0, %v898
    %900 = vmatmul.f32.gmra.mxu0 %v645
    %v901 = vpop.f32.mrf.mxu0
    %v902 = vadd.f32 0.0, %v901
    %903 = vmatmul.f32.gmra.mxu0 %v648
    %v904 = vpop.f32.mrf.mxu0
    %v905 = vadd.f32 0.0, %v904
    %906 = vmatmul.f32.gmra.mxu0 %v651
    %v907 = vpop.f32.mrf.mxu0
    %v908 = vadd.f32 0.0, %v907
    %909 = vmatmul.f32.gmra.mxu0 %v654
    %v910 = vpop.f32.mrf.mxu0
    %v911 = vadd.f32 0.0, %v910
    %912 = vmatmul.f32.gmra.mxu0 %v657
    %v913 = vpop.f32.mrf.mxu0
    %v914 = vadd.f32 0.0, %v913
    %915 = vmatmul.f32.gmra.mxu0 %v660
    %v916 = vpop.f32.mrf.mxu0
    %v917 = vadd.f32 0.0, %v916
    %918 = vmatmul.f32.gmra.mxu0 %v663
    %v919 = vpop.f32.mrf.mxu0
    %v920 = vadd.f32 0.0, %v919
    %921 = vmatmul.f32.gmra.mxu0 %v666
    %v922 = vpop.f32.mrf.mxu0
    %v923 = vadd.f32 0.0, %v922
    %924 = vmatmul.f32.gmra.mxu0 %v669
    %v925 = vpop.f32.mrf.mxu0
    %v926 = vadd.f32 0.0, %v925
    %927 = vmatmul.f32.gmra.mxu0 %v672
    %v928 = vpop.f32.mrf.mxu0
    %v929 = vadd.f32 0.0, %v928
    %930 = vmatmul.f32.gmra.mxu0 %v675
    %v931 = vpop.f32.mrf.mxu0
    %v932 = vadd.f32 0.0, %v931
    %933 = vmatmul.f32.gmra.mxu0 %v678
    %v934 = vpop.f32.mrf.mxu0
    %v935 = vadd.f32 0.0, %v934
    %936 = vmatmul.f32.gmra.mxu0 %v681
    %v937 = vpop.f32.mrf.mxu0
    %v938 = vadd.f32 0.0, %v937
    %939 = vmatmul.f32.gmra.mxu0 %v684
    %v940 = vpop.f32.mrf.mxu0
    %v941 = vadd.f32 0.0, %v940
    %942 = vmatmul.f32.gmra.mxu0 %v687
    %v943 = vpop.f32.mrf.mxu0
    %v944 = vadd.f32 0.0, %v943
    %945 = vmatmul.f32.gmra.mxu0 %v690
    %v946 = vpop.f32.mrf.mxu0
    %v947 = vadd.f32 0.0, %v946
    %948 = vmatmul.f32.gmra.mxu0 %v693
    %v949 = vpop.f32.mrf.mxu0
    %v950 = vadd.f32 0.0, %v949
    %951 = vmatmul.f32.gmra.mxu0 %v696
    %v952 = vpop.f32.mrf.mxu0
    %v953 = vadd.f32 0.0, %v952
    %954 = vmatmul.f32.gmra.mxu0 %v699
    %v955 = vpop.f32.mrf.mxu0
    %v956 = vadd.f32 0.0, %v955
    %957 = vmatmul.f32.gmra.mxu0 %v702
    %v958 = vpop.f32.mrf.mxu0
    %v959 = vadd.f32 0.0, %v958
    %960 = vmatmul.f32.gmra.mxu0 %v705
    %v961 = vpop.f32.mrf.mxu0
    %v962 = vadd.f32 0.0, %v961
    %963 = vmatmul.f32.gmra.mxu0 %v708
    %v964 = vpop.f32.mrf.mxu0
    %v965 = vadd.f32 0.0, %v964
    %966 = vmatmul.f32.gmra.mxu0 %v711
    %v967 = vpop.f32.mrf.mxu0
    %v968 = vadd.f32 0.0, %v967
    %969 = vmatmul.f32.gmra.mxu0 %v714
    %v970 = vpop.f32.mrf.mxu0
    %v971 = vadd.f32 0.0, %v970
    %972 = vmatmul.f32.gmra.mxu0 %v717
    %v973 = vpop.f32.mrf.mxu0
    %v974 = vadd.f32 0.0, %v973
    %975 = vmatmul.f32.gmra.mxu0 %v720
    %v976 = vpop.f32.mrf.mxu0
    %v977 = vadd.f32 0.0, %v976
    %978 = vmatmul.f32.gmra.mxu0 %v723
    %v979 = vpop.f32.mrf.mxu0
    %v980 = vadd.f32 0.0, %v979
    %981 = vmatmul.f32.gmra.mxu0 %v726
    %v982 = vpop.f32.mrf.mxu0
    %v983 = vadd.f32 0.0, %v982
    %984 = vmatmul.f32.gmra.mxu0 %v729
    %v985 = vpop.f32.mrf.mxu0
    %v986 = vadd.f32 0.0, %v985
    %987 = vmatmul.f32.gmra.mxu0 %v732
    %v988 = vpop.f32.mrf.mxu0
    %v989 = vadd.f32 0.0, %v988
    %990 = vmatmul.f32.gmra.mxu0 %v735
    %v991 = vpop.f32.mrf.mxu0
    %v992 = vadd.f32 0.0, %v991
    %993 = vmatmul.f32.gmra.mxu0 %v738
    %v994 = vpop.f32.mrf.mxu0
    %v995 = vadd.f32 0.0, %v994
    %996 = vmatmul.f32.gmra.mxu0 %v741
    %v997 = vpop.f32.mrf.mxu0
    %v998 = vadd.f32 0.0, %v997
    %999 = vmatmul.f32.gmra.mxu0 %v744
    %v1000 = vpop.f32.mrf.mxu0
    %v1001 = vadd.f32 0.0, %v1000
    %1002 = vmatmul.f32.gmra.mxu0 %v747
    %v1003 = vpop.f32.mrf.mxu0
    %v1004 = vadd.f32 0.0, %v1003
    %1005 = vmatmul.f32.gmra.mxu0 %v750
    %v1006 = vpop.f32.mrf.mxu0
    %v1007 = vadd.f32 0.0, %v1006
    %1008 = vmatmul.f32.gmra.mxu0 %v753
    %v1009 = vpop.f32.mrf.mxu0
    %v1010 = vadd.f32 0.0, %v1009
    %1011 = vmatmul.f32.gmra.mxu0 %v756
    %v1012 = vpop.f32.mrf.mxu0
    %v1013 = vadd.f32 0.0, %v1012
    %1014 = vmatmul.f32.gmra.mxu0 %v759
    %v1015 = vpop.f32.mrf.mxu0
    %v1016 = vadd.f32 0.0, %v1015
    %1017 = vmatmul.f32.gmra.mxu0 %v762
    %v1018 = vpop.f32.mrf.mxu0
    %v1019 = vadd.f32 0.0, %v1018
    %1020 = vmatmul.f32.gmra.mxu0 %v765
    %v1021 = vpop.f32.mrf.mxu0
    %v1022 = vadd.f32 0.0, %v1021
    %1023 = vdwg.mxu0
    %v1024 = vmul.f32 %v833, 0.35355338
    %v1025 = vmul.f32 %v836, 0.35355338
    %v1026 = vmul.f32 %v839, 0.35355338
    %v1027 = vmul.f32 %v842, 0.35355338
    %v1028 = vmul.f32 %v845, 0.35355338
    %v1029 = vmul.f32 %v848, 0.35355338
    %v1030 = vmul.f32 %v851, 0.35355338
    %v1031 = vmul.f32 %v854, 0.35355338
    %v1032 = vmul.f32 %v857, 0.35355338
    %v1033 = vmul.f32 %v860, 0.35355338
    %v1034 = vmul.f32 %v863, 0.35355338
    %v1035 = vmul.f32 %v866, 0.35355338
    %v1036 = vmul.f32 %v869, 0.35355338
    %v1037 = vmul.f32 %v872, 0.35355338
    %v1038 = vmul.f32 %v875, 0.35355338
    %v1039 = vmul.f32 %v878, 0.35355338
    %v1040 = vmul.f32 %v881, 0.35355338
    %v1041 = vmul.f32 %v884, 0.35355338
    %v1042 = vmul.f32 %v887, 0.35355338
    %v1043 = vmul.f32 %v890, 0.35355338
    %v1044 = vmul.f32 %v893, 0.35355338
    %v1045 = vmul.f32 %v896, 0.35355338
    %v1046 = vmul.f32 %v899, 0.35355338
    %v1047 = vmul.f32 %v902, 0.35355338
    %v1048 = vmul.f32 %v905, 0.35355338
    %v1049 = vmul.f32 %v908, 0.35355338
    %v1050 = vmul.f32 %v911, 0.35355338
    %v1051 = vmul.f32 %v914, 0.35355338
    %v1052 = vmul.f32 %v917, 0.35355338
    %v1053 = vmul.f32 %v920, 0.35355338
    %v1054 = vmul.f32 %v923, 0.35355338
    %v1055 = vmul.f32 %v926, 0.35355338
    %v1056 = vmul.f32 %v929, 0.35355338
    %v1057 = vmul.f32 %v932, 0.35355338
    %v1058 = vmul.f32 %v935, 0.35355338
    %v1059 = vmul.f32 %v938, 0.35355338
    %v1060 = vmul.f32 %v941, 0.35355338
    %v1061 = vmul.f32 %v944, 0.35355338
    %v1062 = vmul.f32 %v947, 0.35355338
    %v1063 = vmul.f32 %v950, 0.35355338
    %v1064 = vmul.f32 %v953, 0.35355338
    %v1065 = vmul.f32 %v956, 0.35355338
    %v1066 = vmul.f32 %v959, 0.35355338
    %v1067 = vmul.f32 %v962, 0.35355338
    %v1068 = vmul.f32 %v965, 0.35355338
    %v1069 = vmul.f32 %v968, 0.35355338
    %v1070 = vmul.f32 %v971, 0.35355338
    %v1071 = vmul.f32 %v974, 0.35355338
    %v1072 = vmul.f32 %v977, 0.35355338
    %v1073 = vmul.f32 %v980, 0.35355338
    %v1074 = vmul.f32 %v983, 0.35355338
    %v1075 = vmul.f32 %v986, 0.35355338
    %v1076 = vmul.f32 %v989, 0.35355338
    %v1077 = vmul.f32 %v992, 0.35355338
    %v1078 = vmul.f32 %v995, 0.35355338
    %v1079 = vmul.f32 %v998, 0.35355338
    %v1080 = vmul.f32 %v1001, 0.35355338
    %v1081 = vmul.f32 %v1004, 0.35355338
    %v1082 = vmul.f32 %v1007, 0.35355338
    %v1083 = vmul.f32 %v1010, 0.35355338
    %v1084 = vmul.f32 %v1013, 0.35355338
    %v1085 = vmul.f32 %v1016, 0.35355338
    %v1086 = vmul.f32 %v1019, 0.35355338
    %v1087 = vmul.f32 %v1022, 0.35355338
    %v1088 = vadd.f32 %v1024, %v446
    %v1089 = vadd.f32 %v1025, %v447
    %v1090 = vadd.f32 %v1026, %v448
    %v1091 = vadd.f32 %v1027, %v449
    %v1092 = vadd.f32 %v1028, %v450
    %v1093 = vadd.f32 %v1029, %v451
    %v1094 = vadd.f32 %v1030, %v452
    %v1095 = vadd.f32 %v1031, %v453
    %v1096 = vadd.f32 %v1032, %v454
    %v1097 = vadd.f32 %v1033, %v455
    %v1098 = vadd.f32 %v1034, %v456
    %v1099 = vadd.f32 %v1035, %v457
    %v1100 = vadd.f32 %v1036, %v458
    %v1101 = vadd.f32 %v1037, %v459
    %v1102 = vadd.f32 %v1038, %v460
    %v1103 = vadd.f32 %v1039, %v461
    %v1104 = vadd.f32 %v1040, %v462
    %v1105 = vadd.f32 %v1041, %v463
    %v1106 = vadd.f32 %v1042, %v464
    %v1107 = vadd.f32 %v1043, %v465
    %v1108 = vadd.f32 %v1044, %v466
    %v1109 = vadd.f32 %v1045, %v467
    %v1110 = vadd.f32 %v1046, %v468
    %v1111 = vadd.f32 %v1047, %v469
    %v1112 = vadd.f32 %v1048, %v470
    %v1113 = vadd.f32 %v1049, %v471
    %v1114 = vadd.f32 %v1050, %v472
    %v1115 = vadd.f32 %v1051, %v473
    %v1116 = vadd.f32 %v1052, %v474
    %v1117 = vadd.f32 %v1053, %v475
    %v1118 = vadd.f32 %v1054, %v476
    %v1119 = vadd.f32 %v1055, %v477
    %v1120 = vadd.f32 %v1056, %v478
    %v1121 = vadd.f32 %v1057, %v479
    %v1122 = vadd.f32 %v1058, %v480
    %v1123 = vadd.f32 %v1059, %v481
    %v1124 = vadd.f32 %v1060, %v482
    %v1125 = vadd.f32 %v1061, %v483
    %v1126 = vadd.f32 %v1062, %v484
    %v1127 = vadd.f32 %v1063, %v485
    %v1128 = vadd.f32 %v1064, %v486
    %v1129 = vadd.f32 %v1065, %v487
    %v1130 = vadd.f32 %v1066, %v488
    %v1131 = vadd.f32 %v1067, %v489
    %v1132 = vadd.f32 %v1068, %v490
    %v1133 = vadd.f32 %v1069, %v491
    %v1134 = vadd.f32 %v1070, %v492
    %v1135 = vadd.f32 %v1071, %v493
    %v1136 = vadd.f32 %v1072, %v494
    %v1137 = vadd.f32 %v1073, %v495
    %v1138 = vadd.f32 %v1074, %v496
    %v1139 = vadd.f32 %v1075, %v497
    %v1140 = vadd.f32 %v1076, %v498
    %v1141 = vadd.f32 %v1077, %v499
    %v1142 = vadd.f32 %v1078, %v500
    %v1143 = vadd.f32 %v1079, %v501
    %v1144 = vadd.f32 %v1080, %v502
    %v1145 = vadd.f32 %v1081, %v503
    %v1146 = vadd.f32 %v1082, %v504
    %v1147 = vadd.f32 %v1083, %v505
    %v1148 = vadd.f32 %v1084, %v506
    %v1149 = vadd.f32 %v1085, %v507
    %v1150 = vadd.f32 %v1086, %v508
    %v1151 = vadd.f32 %v1087, %v509
    %1152 = vmax.xlane.f32.xlu0 %v1088
    %v1153 = vpop.xlane.xlu0 %1152
    %1154 = vmax.xlane.f32.xlu0 %v1089
    %v1155 = vpop.xlane.xlu0 %1154
    %1156 = vmax.xlane.f32.xlu0 %v1090
    %v1157 = vpop.xlane.xlu0 %1156
    %1158 = vmax.xlane.f32.xlu0 %v1091
    %v1159 = vpop.xlane.xlu0 %1158
    %1160 = vmax.xlane.f32.xlu0 %v1092
    %v1161 = vpop.xlane.xlu0 %1160
    %1162 = vmax.xlane.f32.xlu0 %v1093
    %v1163 = vpop.xlane.xlu0 %1162
    %1164 = vmax.xlane.f32.xlu0 %v1094
    %v1165 = vpop.xlane.xlu0 %1164
    %1166 = vmax.xlane.f32.xlu0 %v1095
    %v1167 = vpop.xlane.xlu0 %1166
    %1168 = vmax.xlane.f32.xlu0 %v1096
    %v1169 = vpop.xlane.xlu0 %1168
    %1170 = vmax.xlane.f32.xlu0 %v1097
    %v1171 = vpop.xlane.xlu0 %1170
    %1172 = vmax.xlane.f32.xlu0 %v1098
    %v1173 = vpop.xlane.xlu0 %1172
    %1174 = vmax.xlane.f32.xlu0 %v1099
    %v1175 = vpop.xlane.xlu0 %1174
    %1176 = vmax.xlane.f32.xlu0 %v1100
    %v1177 = vpop.xlane.xlu0 %1176
    %1178 = vmax.xlane.f32.xlu0 %v1101
    %v1179 = vpop.xlane.xlu0 %1178
    %1180 = vmax.xlane.f32.xlu0 %v1102
    %v1181 = vpop.xlane.xlu0 %1180
    %1182 = vmax.xlane.f32.xlu0 %v1103
    %v1183 = vpop.xlane.xlu0 %1182
    %1184 = vmax.xlane.f32.xlu0 %v1104
    %v1185 = vpop.xlane.xlu0 %1184
    %1186 = vmax.xlane.f32.xlu0 %v1105
    %v1187 = vpop.xlane.xlu0 %1186
    %1188 = vmax.xlane.f32.xlu0 %v1106
    %v1189 = vpop.xlane.xlu0 %1188
    %1190 = vmax.xlane.f32.xlu0 %v1107
    %v1191 = vpop.xlane.xlu0 %1190
    %1192 = vmax.xlane.f32.xlu0 %v1108
    %v1193 = vpop.xlane.xlu0 %1192
    %1194 = vmax.xlane.f32.xlu0 %v1109
    %v1195 = vpop.xlane.xlu0 %1194
    %1196 = vmax.xlane.f32.xlu0 %v1110
    %v1197 = vpop.xlane.xlu0 %1196
    %1198 = vmax.xlane.f32.xlu0 %v1111
    %v1199 = vpop.xlane.xlu0 %1198
    %1200 = vmax.xlane.f32.xlu0 %v1112
    %v1201 = vpop.xlane.xlu0 %1200
    %1202 = vmax.xlane.f32.xlu0 %v1113
    %v1203 = vpop.xlane.xlu0 %1202
    %1204 = vmax.xlane.f32.xlu0 %v1114
    %v1205 = vpop.xlane.xlu0 %1204
    %1206 = vmax.xlane.f32.xlu0 %v1115
    %v1207 = vpop.xlane.xlu0 %1206
    %1208 = vmax.xlane.f32.xlu0 %v1116
    %v1209 = vpop.xlane.xlu0 %1208
    %1210 = vmax.xlane.f32.xlu0 %v1117
    %v1211 = vpop.xlane.xlu0 %1210
    %1212 = vmax.xlane.f32.xlu0 %v1118
    %v1213 = vpop.xlane.xlu0 %1212
    %1214 = vmax.xlane.f32.xlu0 %v1119
    %v1215 = vpop.xlane.xlu0 %1214
    %1216 = vmax.xlane.f32.xlu0 %v1120
    %v1217 = vpop.xlane.xlu0 %1216
    %1218 = vmax.xlane.f32.xlu0 %v1121
    %v1219 = vpop.xlane.xlu0 %1218
    %1220 = vmax.xlane.f32.xlu0 %v1122
    %v1221 = vpop.xlane.xlu0 %1220
    %1222 = vmax.xlane.f32.xlu0 %v1123
    %v1223 = vpop.xlane.xlu0 %1222
    %1224 = vmax.xlane.f32.xlu0 %v1124
    %v1225 = vpop.xlane.xlu0 %1224
    %1226 = vmax.xlane.f32.xlu0 %v1125
    %v1227 = vpop.xlane.xlu0 %1226
    %1228 = vmax.xlane.f32.xlu0 %v1126
    %v1229 = vpop.xlane.xlu0 %1228
    %1230 = vmax.xlane.f32.xlu0 %v1127
    %v1231 = vpop.xlane.xlu0 %1230
    %1232 = vmax.xlane.f32.xlu0 %v1128
    %v1233 = vpop.xlane.xlu0 %1232
    %1234 = vmax.xlane.f32.xlu0 %v1129
    %v1235 = vpop.xlane.xlu0 %1234
    %1236 = vmax.xlane.f32.xlu0 %v1130
    %v1237 = vpop.xlane.xlu0 %1236
    %1238 = vmax.xlane.f32.xlu0 %v1131
    %v1239 = vpop.xlane.xlu0 %1238
    %1240 = vmax.xlane.f32.xlu0 %v1132
    %v1241 = vpop.xlane.xlu0 %1240
    %1242 = vmax.xlane.f32.xlu0 %v1133
    %v1243 = vpop.xlane.xlu0 %1242
    %1244 = vmax.xlane.f32.xlu0 %v1134
    %v1245 = vpop.xlane.xlu0 %1244
    %1246 = vmax.xlane.f32.xlu0 %v1135
    %v1247 = vpop.xlane.xlu0 %1246
    %1248 = vmax.xlane.f32.xlu0 %v1136
    %v1249 = vpop.xlane.xlu0 %1248
    %1250 = vmax.xlane.f32.xlu0 %v1137
    %v1251 = vpop.xlane.xlu0 %1250
    %1252 = vmax.xlane.f32.xlu0 %v1138
    %v1253 = vpop.xlane.xlu0 %1252
    %1254 = vmax.xlane.f32.xlu0 %v1139
    %v1255 = vpop.xlane.xlu0 %1254
    %1256 = vmax.xlane.f32.xlu0 %v1140
    %v1257 = vpop.xlane.xlu0 %1256
    %1258 = vmax.xlane.f32.xlu0 %v1141
    %v1259 = vpop.xlane.xlu0 %1258
    %1260 = vmax.xlane.f32.xlu0 %v1142
    %v1261 = vpop.xlane.xlu0 %1260
    %1262 = vmax.xlane.f32.xlu0 %v1143
    %v1263 = vpop.xlane.xlu0 %1262
    %1264 = vmax.xlane.f32.xlu0 %v1144
    %v1265 = vpop.xlane.xlu0 %1264
    %1266 = vmax.xlane.f32.xlu0 %v1145
    %v1267 = vpop.xlane.xlu0 %1266
    %1268 = vmax.xlane.f32.xlu0 %v1146
    %v1269 = vpop.xlane.xlu0 %1268
    %1270 = vmax.xlane.f32.xlu0 %v1147
    %v1271 = vpop.xlane.xlu0 %1270
    %1272 = vmax.xlane.f32.xlu0 %v1148
    %v1273 = vpop.xlane.xlu0 %1272
    %1274 = vmax.xlane.f32.xlu0 %v1149
    %v1275 = vpop.xlane.xlu0 %1274
    %1276 = vmax.xlane.f32.xlu0 %v1150
    %v1277 = vpop.xlane.xlu0 %1276
    %1278 = vmax.xlane.f32.xlu0 %v1151
    %v1279 = vpop.xlane.xlu0 %1278
    %v1280 = vsub.f32 %v1088, %v1153
    %v1281 = vsub.f32 %v1089, %v1155
    %v1282 = vsub.f32 %v1090, %v1157
    %v1283 = vsub.f32 %v1091, %v1159
    %v1284 = vsub.f32 %v1092, %v1161
    %v1285 = vsub.f32 %v1093, %v1163
    %v1286 = vsub.f32 %v1094, %v1165
    %v1287 = vsub.f32 %v1095, %v1167
    %v1288 = vsub.f32 %v1096, %v1169
    %v1289 = vsub.f32 %v1097, %v1171
    %v1290 = vsub.f32 %v1098, %v1173
    %v1291 = vsub.f32 %v1099, %v1175
    %v1292 = vsub.f32 %v1100, %v1177
    %v1293 = vsub.f32 %v1101, %v1179
    %v1294 = vsub.f32 %v1102, %v1181
    %v1295 = vsub.f32 %v1103, %v1183
    %v1296 = vsub.f32 %v1104, %v1185
    %v1297 = vsub.f32 %v1105, %v1187
    %v1298 = vsub.f32 %v1106, %v1189
    %v1299 = vsub.f32 %v1107, %v1191
    %v1300 = vsub.f32 %v1108, %v1193
    %v1301 = vsub.f32 %v1109, %v1195
    %v1302 = vsub.f32 %v1110, %v1197
    %v1303 = vsub.f32 %v1111, %v1199
    %v1304 = vsub.f32 %v1112, %v1201
    %v1305 = vsub.f32 %v1113, %v1203
    %v1306 = vsub.f32 %v1114, %v1205
    %v1307 = vsub.f32 %v1115, %v1207
    %v1308 = vsub.f32 %v1116, %v1209
    %v1309 = vsub.f32 %v1117, %v1211
    %v1310 = vsub.f32 %v1118, %v1213
    %v1311 = vsub.f32 %v1119, %v1215
    %v1312 = vsub.f32 %v1120, %v1217
    %v1313 = vsub.f32 %v1121, %v1219
    %v1314 = vsub.f32 %v1122, %v1221
    %v1315 = vsub.f32 %v1123, %v1223
    %v1316 = vsub.f32 %v1124, %v1225
    %v1317 = vsub.f32 %v1125, %v1227
    %v1318 = vsub.f32 %v1126, %v1229
    %v1319 = vsub.f32 %v1127, %v1231
    %v1320 = vsub.f32 %v1128, %v1233
    %v1321 = vsub.f32 %v1129, %v1235
    %v1322 = vsub.f32 %v1130, %v1237
    %v1323 = vsub.f32 %v1131, %v1239
    %v1324 = vsub.f32 %v1132, %v1241
    %v1325 = vsub.f32 %v1133, %v1243
    %v1326 = vsub.f32 %v1134, %v1245
    %v1327 = vsub.f32 %v1135, %v1247
    %v1328 = vsub.f32 %v1136, %v1249
    %v1329 = vsub.f32 %v1137, %v1251
    %v1330 = vsub.f32 %v1138, %v1253
    %v1331 = vsub.f32 %v1139, %v1255
    %v1332 = vsub.f32 %v1140, %v1257
    %v1333 = vsub.f32 %v1141, %v1259
    %v1334 = vsub.f32 %v1142, %v1261
    %v1335 = vsub.f32 %v1143, %v1263
    %v1336 = vsub.f32 %v1144, %v1265
    %v1337 = vsub.f32 %v1145, %v1267
    %v1338 = vsub.f32 %v1146, %v1269
    %v1339 = vsub.f32 %v1147, %v1271
    %v1340 = vsub.f32 %v1148, %v1273
    %v1341 = vsub.f32 %v1149, %v1275
    %v1342 = vsub.f32 %v1150, %v1277
    %v1343 = vsub.f32 %v1151, %v1279
    %v1344 = vmul.f32 %v1280, 1.442695
    %v1345 = vpow.pop %v1344
    %v1346 = vmul.f32 %v1281, 1.442695
    %v1347 = vpow.pop %v1346
    %v1348 = vmul.f32 %v1282, 1.442695
    %v1349 = vpow.pop %v1348
    %v1350 = vmul.f32 %v1283, 1.442695
    %v1351 = vpow.pop %v1350
    %v1352 = vmul.f32 %v1284, 1.442695
    %v1353 = vpow.pop %v1352
    %v1354 = vmul.f32 %v1285, 1.442695
    %v1355 = vpow.pop %v1354
    %v1356 = vmul.f32 %v1286, 1.442695
    %v1357 = vpow.pop %v1356
    %v1358 = vmul.f32 %v1287, 1.442695
    %v1359 = vpow.pop %v1358
    %v1360 = vmul.f32 %v1288, 1.442695
    %v1361 = vpow.pop %v1360
    %v1362 = vmul.f32 %v1289, 1.442695
    %v1363 = vpow.pop %v1362
    %v1364 = vmul.f32 %v1290, 1.442695
    %v1365 = vpow.pop %v1364
    %v1366 = vmul.f32 %v1291, 1.442695
    %v1367 = vpow.pop %v1366
    %v1368 = vmul.f32 %v1292, 1.442695
    %v1369 = vpow.pop %v1368
    %v1370 = vmul.f32 %v1293, 1.442695
    %v1371 = vpow.pop %v1370
    %v1372 = vmul.f32 %v1294, 1.442695
    %v1373 = vpow.pop %v1372
    %v1374 = vmul.f32 %v1295, 1.442695
    %v1375 = vpow.pop %v1374
    %v1376 = vmul.f32 %v1296, 1.442695
    %v1377 = vpow.pop %v1376
    %v1378 = vmul.f32 %v1297, 1.442695
    %v1379 = vpow.pop %v1378
    %v1380 = vmul.f32 %v1298, 1.442695
    %v1381 = vpow.pop %v1380
    %v1382 = vmul.f32 %v1299, 1.442695
    %v1383 = vpow.pop %v1382
    %v1384 = vmul.f32 %v1300, 1.442695
    %v1385 = vpow.pop %v1384
    %v1386 = vmul.f32 %v1301, 1.442695
    %v1387 = vpow.pop %v1386
    %v1388 = vmul.f32 %v1302, 1.442695
    %v1389 = vpow.pop %v1388
    %v1390 = vmul.f32 %v1303, 1.442695
    %v1391 = vpow.pop %v1390
    %v1392 = vmul.f32 %v1304, 1.442695
    %v1393 = vpow.pop %v1392
    %v1394 = vmul.f32 %v1305, 1.442695
    %v1395 = vpow.pop %v1394
    %v1396 = vmul.f32 %v1306, 1.442695
    %v1397 = vpow.pop %v1396
    %v1398 = vmul.f32 %v1307, 1.442695
    %v1399 = vpow.pop %v1398
    %v1400 = vmul.f32 %v1308, 1.442695
    %v1401 = vpow.pop %v1400
    %v1402 = vmul.f32 %v1309, 1.442695
    %v1403 = vpow.pop %v1402
    %v1404 = vmul.f32 %v1310, 1.442695
    %v1405 = vpow.pop %v1404
    %v1406 = vmul.f32 %v1311, 1.442695
    %v1407 = vpow.pop %v1406
    %v1408 = vmul.f32 %v1312, 1.442695
    %v1409 = vpow.pop %v1408
    %v1410 = vmul.f32 %v1313, 1.442695
    %v1411 = vpow.pop %v1410
    %v1412 = vmul.f32 %v1314, 1.442695
    %v1413 = vpow.pop %v1412
    %v1414 = vmul.f32 %v1315, 1.442695
    %v1415 = vpow.pop %v1414
    %v1416 = vmul.f32 %v1316, 1.442695
    %v1417 = vpow.pop %v1416
    %v1418 = vmul.f32 %v1317, 1.442695
    %v1419 = vpow.pop %v1418
    %v1420 = vmul.f32 %v1318, 1.442695
    %v1421 = vpow.pop %v1420
    %v1422 = vmul.f32 %v1319, 1.442695
    %v1423 = vpow.pop %v1422
    %v1424 = vmul.f32 %v1320, 1.442695
    %v1425 = vpow.pop %v1424
    %v1426 = vmul.f32 %v1321, 1.442695
    %v1427 = vpow.pop %v1426
    %v1428 = vmul.f32 %v1322, 1.442695
    %v1429 = vpow.pop %v1428
    %v1430 = vmul.f32 %v1323, 1.442695
    %v1431 = vpow.pop %v1430
    %v1432 = vmul.f32 %v1324, 1.442695
    %v1433 = vpow.pop %v1432
    %v1434 = vmul.f32 %v1325, 1.442695
    %v1435 = vpow.pop %v1434
    %v1436 = vmul.f32 %v1326, 1.442695
    %v1437 = vpow.pop %v1436
    %v1438 = vmul.f32 %v1327, 1.442695
    %v1439 = vpow.pop %v1438
    %v1440 = vmul.f32 %v1328, 1.442695
    %v1441 = vpow.pop %v1440
    %v1442 = vmul.f32 %v1329, 1.442695
    %v1443 = vpow.pop %v1442
    %v1444 = vmul.f32 %v1330, 1.442695
    %v1445 = vpow.pop %v1444
    %v1446 = vmul.f32 %v1331, 1.442695
    %v1447 = vpow.pop %v1446
    %v1448 = vmul.f32 %v1332, 1.442695
    %v1449 = vpow.pop %v1448
    %v1450 = vmul.f32 %v1333, 1.442695
    %v1451 = vpow.pop %v1450
    %v1452 = vmul.f32 %v1334, 1.442695
    %v1453 = vpow.pop %v1452
    %v1454 = vmul.f32 %v1335, 1.442695
    %v1455 = vpow.pop %v1454
    %v1456 = vmul.f32 %v1336, 1.442695
    %v1457 = vpow.pop %v1456
    %v1458 = vmul.f32 %v1337, 1.442695
    %v1459 = vpow.pop %v1458
    %v1460 = vmul.f32 %v1338, 1.442695
    %v1461 = vpow.pop %v1460
    %v1462 = vmul.f32 %v1339, 1.442695
    %v1463 = vpow.pop %v1462
    %v1464 = vmul.f32 %v1340, 1.442695
    %v1465 = vpow.pop %v1464
    %v1466 = vmul.f32 %v1341, 1.442695
    %v1467 = vpow.pop %v1466
    %v1468 = vmul.f32 %v1342, 1.442695
    %v1469 = vpow.pop %v1468
    %v1470 = vmul.f32 %v1343, 1.442695
    %v1471 = vpow.pop %v1470
    %1472 = vadd.xlane.f32.xlu0 %v1345
    %v1473 = vpop.xlane.xlu0 %1472
    %1474 = vadd.xlane.f32.xlu0 %v1347
    %v1475 = vpop.xlane.xlu0 %1474
    %1476 = vadd.xlane.f32.xlu0 %v1349
    %v1477 = vpop.xlane.xlu0 %1476
    %1478 = vadd.xlane.f32.xlu0 %v1351
    %v1479 = vpop.xlane.xlu0 %1478
    %1480 = vadd.xlane.f32.xlu0 %v1353
    %v1481 = vpop.xlane.xlu0 %1480
    %1482 = vadd.xlane.f32.xlu0 %v1355
    %v1483 = vpop.xlane.xlu0 %1482
    %1484 = vadd.xlane.f32.xlu0 %v1357
    %v1485 = vpop.xlane.xlu0 %1484
    %1486 = vadd.xlane.f32.xlu0 %v1359
    %v1487 = vpop.xlane.xlu0 %1486
    %1488 = vadd.xlane.f32.xlu0 %v1361
    %v1489 = vpop.xlane.xlu0 %1488
    %1490 = vadd.xlane.f32.xlu0 %v1363
    %v1491 = vpop.xlane.xlu0 %1490
    %1492 = vadd.xlane.f32.xlu0 %v1365
    %v1493 = vpop.xlane.xlu0 %1492
    %1494 = vadd.xlane.f32.xlu0 %v1367
    %v1495 = vpop.xlane.xlu0 %1494
    %1496 = vadd.xlane.f32.xlu0 %v1369
    %v1497 = vpop.xlane.xlu0 %1496
    %1498 = vadd.xlane.f32.xlu0 %v1371
    %v1499 = vpop.xlane.xlu0 %1498
    %1500 = vadd.xlane.f32.xlu0 %v1373
    %v1501 = vpop.xlane.xlu0 %1500
    %1502 = vadd.xlane.f32.xlu0 %v1375
    %v1503 = vpop.xlane.xlu0 %1502
    %1504 = vadd.xlane.f32.xlu0 %v1377
    %v1505 = vpop.xlane.xlu0 %1504
    %1506 = vadd.xlane.f32.xlu0 %v1379
    %v1507 = vpop.xlane.xlu0 %1506
    %1508 = vadd.xlane.f32.xlu0 %v1381
    %v1509 = vpop.xlane.xlu0 %1508
    %1510 = vadd.xlane.f32.xlu0 %v1383
    %v1511 = vpop.xlane.xlu0 %1510
    %1512 = vadd.xlane.f32.xlu0 %v1385
    %v1513 = vpop.xlane.xlu0 %1512
    %1514 = vadd.xlane.f32.xlu0 %v1387
    %v1515 = vpop.xlane.xlu0 %1514
    %1516 = vadd.xlane.f32.xlu0 %v1389
    %v1517 = vpop.xlane.xlu0 %1516
    %1518 = vadd.xlane.f32.xlu0 %v1391
    %v1519 = vpop.xlane.xlu0 %1518
    %1520 = vadd.xlane.f32.xlu0 %v1393
    %v1521 = vpop.xlane.xlu0 %1520
    %1522 = vadd.xlane.f32.xlu0 %v1395
    %v1523 = vpop.xlane.xlu0 %1522
    %1524 = vadd.xlane.f32.xlu0 %v1397
    %v1525 = vpop.xlane.xlu0 %1524
    %1526 = vadd.xlane.f32.xlu0 %v1399
    %v1527 = vpop.xlane.xlu0 %1526
    %1528 = vadd.xlane.f32.xlu0 %v1401
    %v1529 = vpop.xlane.xlu0 %1528
    %1530 = vadd.xlane.f32.xlu0 %v1403
    %v1531 = vpop.xlane.xlu0 %1530
    %1532 = vadd.xlane.f32.xlu0 %v1405
    %v1533 = vpop.xlane.xlu0 %1532
    %1534 = vadd.xlane.f32.xlu0 %v1407
    %v1535 = vpop.xlane.xlu0 %1534
    %1536 = vadd.xlane.f32.xlu0 %v1409
    %v1537 = vpop.xlane.xlu0 %1536
    %1538 = vadd.xlane.f32.xlu0 %v1411
    %v1539 = vpop.xlane.xlu0 %1538
    %1540 = vadd.xlane.f32.xlu0 %v1413
    %v1541 = vpop.xlane.xlu0 %1540
    %1542 = vadd.xlane.f32.xlu0 %v1415
    %v1543 = vpop.xlane.xlu0 %1542
    %1544 = vadd.xlane.f32.xlu0 %v1417
    %v1545 = vpop.xlane.xlu0 %1544
    %1546 = vadd.xlane.f32.xlu0 %v1419
    %v1547 = vpop.xlane.xlu0 %1546
    %1548 = vadd.xlane.f32.xlu0 %v1421
    %v1549 = vpop.xlane.xlu0 %1548
    %1550 = vadd.xlane.f32.xlu0 %v1423
    %v1551 = vpop.xlane.xlu0 %1550
    %1552 = vadd.xlane.f32.xlu0 %v1425
    %v1553 = vpop.xlane.xlu0 %1552
    %1554 = vadd.xlane.f32.xlu0 %v1427
    %v1555 = vpop.xlane.xlu0 %1554
    %1556 = vadd.xlane.f32.xlu0 %v1429
    %v1557 = vpop.xlane.xlu0 %1556
    %1558 = vadd.xlane.f32.xlu0 %v1431
    %v1559 = vpop.xlane.xlu0 %1558
    %1560 = vadd.xlane.f32.xlu0 %v1433
    %v1561 = vpop.xlane.xlu0 %1560
    %1562 = vadd.xlane.f32.xlu0 %v1435
    %v1563 = vpop.xlane.xlu0 %1562
    %1564 = vadd.xlane.f32.xlu0 %v1437
    %v1565 = vpop.xlane.xlu0 %1564
    %1566 = vadd.xlane.f32.xlu0 %v1439
    %v1567 = vpop.xlane.xlu0 %1566
    %1568 = vadd.xlane.f32.xlu0 %v1441
    %v1569 = vpop.xlane.xlu0 %1568
    %1570 = vadd.xlane.f32.xlu0 %v1443
    %v1571 = vpop.xlane.xlu0 %1570
    %1572 = vadd.xlane.f32.xlu0 %v1445
    %v1573 = vpop.xlane.xlu0 %1572
    %1574 = vadd.xlane.f32.xlu0 %v1447
    %v1575 = vpop.xlane.xlu0 %1574
    %1576 = vadd.xlane.f32.xlu0 %v1449
    %v1577 = vpop.xlane.xlu0 %1576
    %1578 = vadd.xlane.f32.xlu0 %v1451
    %v1579 = vpop.xlane.xlu0 %1578
    %1580 = vadd.xlane.f32.xlu0 %v1453
    %v1581 = vpop.xlane.xlu0 %1580
    %1582 = vadd.xlane.f32.xlu0 %v1455
    %v1583 = vpop.xlane.xlu0 %1582
    %1584 = vadd.xlane.f32.xlu0 %v1457
    %v1585 = vpop.xlane.xlu0 %1584
    %1586 = vadd.xlane.f32.xlu0 %v1459
    %v1587 = vpop.xlane.xlu0 %1586
    %1588 = vadd.xlane.f32.xlu0 %v1461
    %v1589 = vpop.xlane.xlu0 %1588
    %1590 = vadd.xlane.f32.xlu0 %v1463
    %v1591 = vpop.xlane.xlu0 %1590
    %1592 = vadd.xlane.f32.xlu0 %v1465
    %v1593 = vpop.xlane.xlu0 %1592
    %1594 = vadd.xlane.f32.xlu0 %v1467
    %v1595 = vpop.xlane.xlu0 %1594
    %1596 = vadd.xlane.f32.xlu0 %v1469
    %v1597 = vpop.xlane.xlu0 %1596
    %1598 = vadd.xlane.f32.xlu0 %v1471
    %v1599 = vpop.xlane.xlu0 %1598
    %v1600 = vrcp.pop %v1473
    %v1601 = vmul.f32 %v1473, %v1600
    %v1602 = vsub.f32 1.0, %v1601
    %v1603 = vmul.f32 %v1600, %v1602
    %v1604 = vadd.f32 %v1600, %v1603
    %vm1605 = vweird.f32 %v1473
    %vm1606 = vweird.f32 %v1600
    %vm1607 = vmor %vm1605, %vm1606
    %v1608 = vsel %vm1607, %v1600, %v1604
    %v1609 = vand.u32 2147483647, %v1473
    %vm1610 = vcmp.eq.f32.partialorder %v1609, 8.507059e+37
    %v1611 = vand.u32 %v1473, 2147483648
    %v1612 = vor.u32 1.1754944e-38, %v1611
    %v1613 = vsel %vm1610, %v1612, %v1608
    %v1614 = vmul.f32 %v1345, %v1613
    %v1615 = vrcp.pop %v1475
    %v1616 = vmul.f32 %v1475, %v1615
    %v1617 = vsub.f32 1.0, %v1616
    %v1618 = vmul.f32 %v1615, %v1617
    %v1619 = vadd.f32 %v1615, %v1618
    %vm1620 = vweird.f32 %v1475
    %vm1621 = vweird.f32 %v1615
    %vm1622 = vmor %vm1620, %vm1621
    %v1623 = vsel %vm1622, %v1615, %v1619
    %v1624 = vand.u32 2147483647, %v1475
    %vm1625 = vcmp.eq.f32.partialorder %v1624, 8.507059e+37
    %v1626 = vand.u32 %v1475, 2147483648
    %v1627 = vor.u32 1.1754944e-38, %v1626
    %v1628 = vsel %vm1625, %v1627, %v1623
    %v1629 = vmul.f32 %v1347, %v1628
    %v1630 = vrcp.pop %v1477
    %v1631 = vmul.f32 %v1477, %v1630
    %v1632 = vsub.f32 1.0, %v1631
    %v1633 = vmul.f32 %v1630, %v1632
    %v1634 = vadd.f32 %v1630, %v1633
    %vm1635 = vweird.f32 %v1477
    %vm1636 = vweird.f32 %v1630
    %vm1637 = vmor %vm1635, %vm1636
    %v1638 = vsel %vm1637, %v1630, %v1634
    %v1639 = vand.u32 2147483647, %v1477
    %vm1640 = vcmp.eq.f32.partialorder %v1639, 8.507059e+37
    %v1641 = vand.u32 %v1477, 2147483648
    %v1642 = vor.u32 1.1754944e-38, %v1641
    %v1643 = vsel %vm1640, %v1642, %v1638
    %v1644 = vmul.f32 %v1349, %v1643
    %v1645 = vrcp.pop %v1479
    %v1646 = vmul.f32 %v1479, %v1645
    %v1647 = vsub.f32 1.0, %v1646
    %v1648 = vmul.f32 %v1645, %v1647
    %v1649 = vadd.f32 %v1645, %v1648
    %vm1650 = vweird.f32 %v1479
    %vm1651 = vweird.f32 %v1645
    %vm1652 = vmor %vm1650, %vm1651
    %v1653 = vsel %vm1652, %v1645, %v1649
    %v1654 = vand.u32 2147483647, %v1479
    %vm1655 = vcmp.eq.f32.partialorder %v1654, 8.507059e+37
    %v1656 = vand.u32 %v1479, 2147483648
    %v1657 = vor.u32 1.1754944e-38, %v1656
    %v1658 = vsel %vm1655, %v1657, %v1653
    %v1659 = vmul.f32 %v1351, %v1658
    %v1660 = vrcp.pop %v1481
    %v1661 = vmul.f32 %v1481, %v1660
    %v1662 = vsub.f32 1.0, %v1661
    %v1663 = vmul.f32 %v1660, %v1662
    %v1664 = vadd.f32 %v1660, %v1663
    %vm1665 = vweird.f32 %v1481
    %vm1666 = vweird.f32 %v1660
    %vm1667 = vmor %vm1665, %vm1666
    %v1668 = vsel %vm1667, %v1660, %v1664
    %v1669 = vand.u32 2147483647, %v1481
    %vm1670 = vcmp.eq.f32.partialorder %v1669, 8.507059e+37
    %v1671 = vand.u32 %v1481, 2147483648
    %v1672 = vor.u32 1.1754944e-38, %v1671
    %v1673 = vsel %vm1670, %v1672, %v1668
    %v1674 = vmul.f32 %v1353, %v1673
    %v1675 = vrcp.pop %v1483
    %v1676 = vmul.f32 %v1483, %v1675
    %v1677 = vsub.f32 1.0, %v1676
    %v1678 = vmul.f32 %v1675, %v1677
    %v1679 = vadd.f32 %v1675, %v1678
    %vm1680 = vweird.f32 %v1483
    %vm1681 = vweird.f32 %v1675
    %vm1682 = vmor %vm1680, %vm1681
    %v1683 = vsel %vm1682, %v1675, %v1679
    %v1684 = vand.u32 2147483647, %v1483
    %vm1685 = vcmp.eq.f32.partialorder %v1684, 8.507059e+37
    %v1686 = vand.u32 %v1483, 2147483648
    %v1687 = vor.u32 1.1754944e-38, %v1686
    %v1688 = vsel %vm1685, %v1687, %v1683
    %v1689 = vmul.f32 %v1355, %v1688
    %v1690 = vrcp.pop %v1485
    %v1691 = vmul.f32 %v1485, %v1690
    %v1692 = vsub.f32 1.0, %v1691
    %v1693 = vmul.f32 %v1690, %v1692
    %v1694 = vadd.f32 %v1690, %v1693
    %vm1695 = vweird.f32 %v1485
    %vm1696 = vweird.f32 %v1690
    %vm1697 = vmor %vm1695, %vm1696
    %v1698 = vsel %vm1697, %v1690, %v1694
    %v1699 = vand.u32 2147483647, %v1485
    %vm1700 = vcmp.eq.f32.partialorder %v1699, 8.507059e+37
    %v1701 = vand.u32 %v1485, 2147483648
    %v1702 = vor.u32 1.1754944e-38, %v1701
    %v1703 = vsel %vm1700, %v1702, %v1698
    %v1704 = vmul.f32 %v1357, %v1703
    %v1705 = vrcp.pop %v1487
    %v1706 = vmul.f32 %v1487, %v1705
    %v1707 = vsub.f32 1.0, %v1706
    %v1708 = vmul.f32 %v1705, %v1707
    %v1709 = vadd.f32 %v1705, %v1708
    %vm1710 = vweird.f32 %v1487
    %vm1711 = vweird.f32 %v1705
    %vm1712 = vmor %vm1710, %vm1711
    %v1713 = vsel %vm1712, %v1705, %v1709
    %v1714 = vand.u32 2147483647, %v1487
    %vm1715 = vcmp.eq.f32.partialorder %v1714, 8.507059e+37
    %v1716 = vand.u32 %v1487, 2147483648
    %v1717 = vor.u32 1.1754944e-38, %v1716
    %v1718 = vsel %vm1715, %v1717, %v1713
    %v1719 = vmul.f32 %v1359, %v1718
    %v1720 = vrcp.pop %v1489
    %v1721 = vmul.f32 %v1489, %v1720
    %v1722 = vsub.f32 1.0, %v1721
    %v1723 = vmul.f32 %v1720, %v1722
    %v1724 = vadd.f32 %v1720, %v1723
    %vm1725 = vweird.f32 %v1489
    %vm1726 = vweird.f32 %v1720
    %vm1727 = vmor %vm1725, %vm1726
    %v1728 = vsel %vm1727, %v1720, %v1724
    %v1729 = vand.u32 2147483647, %v1489
    %vm1730 = vcmp.eq.f32.partialorder %v1729, 8.507059e+37
    %v1731 = vand.u32 %v1489, 2147483648
    %v1732 = vor.u32 1.1754944e-38, %v1731
    %v1733 = vsel %vm1730, %v1732, %v1728
    %v1734 = vmul.f32 %v1361, %v1733
    %v1735 = vrcp.pop %v1491
    %v1736 = vmul.f32 %v1491, %v1735
    %v1737 = vsub.f32 1.0, %v1736
    %v1738 = vmul.f32 %v1735, %v1737
    %v1739 = vadd.f32 %v1735, %v1738
    %vm1740 = vweird.f32 %v1491
    %vm1741 = vweird.f32 %v1735
    %vm1742 = vmor %vm1740, %vm1741
    %v1743 = vsel %vm1742, %v1735, %v1739
    %v1744 = vand.u32 2147483647, %v1491
    %vm1745 = vcmp.eq.f32.partialorder %v1744, 8.507059e+37
    %v1746 = vand.u32 %v1491, 2147483648
    %v1747 = vor.u32 1.1754944e-38, %v1746
    %v1748 = vsel %vm1745, %v1747, %v1743
    %v1749 = vmul.f32 %v1363, %v1748
    %v1750 = vrcp.pop %v1493
    %v1751 = vmul.f32 %v1493, %v1750
    %v1752 = vsub.f32 1.0, %v1751
    %v1753 = vmul.f32 %v1750, %v1752
    %v1754 = vadd.f32 %v1750, %v1753
    %vm1755 = vweird.f32 %v1493
    %vm1756 = vweird.f32 %v1750
    %vm1757 = vmor %vm1755, %vm1756
    %v1758 = vsel %vm1757, %v1750, %v1754
    %v1759 = vand.u32 2147483647, %v1493
    %vm1760 = vcmp.eq.f32.partialorder %v1759, 8.507059e+37
    %v1761 = vand.u32 %v1493, 2147483648
    %v1762 = vor.u32 1.1754944e-38, %v1761
    %v1763 = vsel %vm1760, %v1762, %v1758
    %v1764 = vmul.f32 %v1365, %v1763
    %v1765 = vrcp.pop %v1495
    %v1766 = vmul.f32 %v1495, %v1765
    %v1767 = vsub.f32 1.0, %v1766
    %v1768 = vmul.f32 %v1765, %v1767
    %v1769 = vadd.f32 %v1765, %v1768
    %vm1770 = vweird.f32 %v1495
    %vm1771 = vweird.f32 %v1765
    %vm1772 = vmor %vm1770, %vm1771
    %v1773 = vsel %vm1772, %v1765, %v1769
    %v1774 = vand.u32 2147483647, %v1495
    %vm1775 = vcmp.eq.f32.partialorder %v1774, 8.507059e+37
    %v1776 = vand.u32 %v1495, 2147483648
    %v1777 = vor.u32 1.1754944e-38, %v1776
    %v1778 = vsel %vm1775, %v1777, %v1773
    %v1779 = vmul.f32 %v1367, %v1778
    %v1780 = vrcp.pop %v1497
    %v1781 = vmul.f32 %v1497, %v1780
    %v1782 = vsub.f32 1.0, %v1781
    %v1783 = vmul.f32 %v1780, %v1782
    %v1784 = vadd.f32 %v1780, %v1783
    %vm1785 = vweird.f32 %v1497
    %vm1786 = vweird.f32 %v1780
    %vm1787 = vmor %vm1785, %vm1786
    %v1788 = vsel %vm1787, %v1780, %v1784
    %v1789 = vand.u32 2147483647, %v1497
    %vm1790 = vcmp.eq.f32.partialorder %v1789, 8.507059e+37
    %v1791 = vand.u32 %v1497, 2147483648
    %v1792 = vor.u32 1.1754944e-38, %v1791
    %v1793 = vsel %vm1790, %v1792, %v1788
    %v1794 = vmul.f32 %v1369, %v1793
    %v1795 = vrcp.pop %v1499
    %v1796 = vmul.f32 %v1499, %v1795
    %v1797 = vsub.f32 1.0, %v1796
    %v1798 = vmul.f32 %v1795, %v1797
    %v1799 = vadd.f32 %v1795, %v1798
    %vm1800 = vweird.f32 %v1499
    %vm1801 = vweird.f32 %v1795
    %vm1802 = vmor %vm1800, %vm1801
    %v1803 = vsel %vm1802, %v1795, %v1799
    %v1804 = vand.u32 2147483647, %v1499
    %vm1805 = vcmp.eq.f32.partialorder %v1804, 8.507059e+37
    %v1806 = vand.u32 %v1499, 2147483648
    %v1807 = vor.u32 1.1754944e-38, %v1806
    %v1808 = vsel %vm1805, %v1807, %v1803
    %v1809 = vmul.f32 %v1371, %v1808
    %v1810 = vrcp.pop %v1501
    %v1811 = vmul.f32 %v1501, %v1810
    %v1812 = vsub.f32 1.0, %v1811
    %v1813 = vmul.f32 %v1810, %v1812
    %v1814 = vadd.f32 %v1810, %v1813
    %vm1815 = vweird.f32 %v1501
    %vm1816 = vweird.f32 %v1810
    %vm1817 = vmor %vm1815, %vm1816
    %v1818 = vsel %vm1817, %v1810, %v1814
    %v1819 = vand.u32 2147483647, %v1501
    %vm1820 = vcmp.eq.f32.partialorder %v1819, 8.507059e+37
    %v1821 = vand.u32 %v1501, 2147483648
    %v1822 = vor.u32 1.1754944e-38, %v1821
    %v1823 = vsel %vm1820, %v1822, %v1818
    %v1824 = vmul.f32 %v1373, %v1823
    %v1825 = vrcp.pop %v1503
    %v1826 = vmul.f32 %v1503, %v1825
    %v1827 = vsub.f32 1.0, %v1826
    %v1828 = vmul.f32 %v1825, %v1827
    %v1829 = vadd.f32 %v1825, %v1828
    %vm1830 = vweird.f32 %v1503
    %vm1831 = vweird.f32 %v1825
    %vm1832 = vmor %vm1830, %vm1831
    %v1833 = vsel %vm1832, %v1825, %v1829
    %v1834 = vand.u32 2147483647, %v1503
    %vm1835 = vcmp.eq.f32.partialorder %v1834, 8.507059e+37
    %v1836 = vand.u32 %v1503, 2147483648
    %v1837 = vor.u32 1.1754944e-38, %v1836
    %v1838 = vsel %vm1835, %v1837, %v1833
    %v1839 = vmul.f32 %v1375, %v1838
    %v1840 = vrcp.pop %v1505
    %v1841 = vmul.f32 %v1505, %v1840
    %v1842 = vsub.f32 1.0, %v1841
    %v1843 = vmul.f32 %v1840, %v1842
    %v1844 = vadd.f32 %v1840, %v1843
    %vm1845 = vweird.f32 %v1505
    %vm1846 = vweird.f32 %v1840
    %vm1847 = vmor %vm1845, %vm1846
    %v1848 = vsel %vm1847, %v1840, %v1844
    %v1849 = vand.u32 2147483647, %v1505
    %vm1850 = vcmp.eq.f32.partialorder %v1849, 8.507059e+37
    %v1851 = vand.u32 %v1505, 2147483648
    %v1852 = vor.u32 1.1754944e-38, %v1851
    %v1853 = vsel %vm1850, %v1852, %v1848
    %v1854 = vmul.f32 %v1377, %v1853
    %v1855 = vrcp.pop %v1507
    %v1856 = vmul.f32 %v1507, %v1855
    %v1857 = vsub.f32 1.0, %v1856
    %v1858 = vmul.f32 %v1855, %v1857
    %v1859 = vadd.f32 %v1855, %v1858
    %vm1860 = vweird.f32 %v1507
    %vm1861 = vweird.f32 %v1855
    %vm1862 = vmor %vm1860, %vm1861
    %v1863 = vsel %vm1862, %v1855, %v1859
    %v1864 = vand.u32 2147483647, %v1507
    %vm1865 = vcmp.eq.f32.partialorder %v1864, 8.507059e+37
    %v1866 = vand.u32 %v1507, 2147483648
    %v1867 = vor.u32 1.1754944e-38, %v1866
    %v1868 = vsel %vm1865, %v1867, %v1863
    %v1869 = vmul.f32 %v1379, %v1868
    %v1870 = vrcp.pop %v1509
    %v1871 = vmul.f32 %v1509, %v1870
    %v1872 = vsub.f32 1.0, %v1871
    %v1873 = vmul.f32 %v1870, %v1872
    %v1874 = vadd.f32 %v1870, %v1873
    %vm1875 = vweird.f32 %v1509
    %vm1876 = vweird.f32 %v1870
    %vm1877 = vmor %vm1875, %vm1876
    %v1878 = vsel %vm1877, %v1870, %v1874
    %v1879 = vand.u32 2147483647, %v1509
    %vm1880 = vcmp.eq.f32.partialorder %v1879, 8.507059e+37
    %v1881 = vand.u32 %v1509, 2147483648
    %v1882 = vor.u32 1.1754944e-38, %v1881
    %v1883 = vsel %vm1880, %v1882, %v1878
    %v1884 = vmul.f32 %v1381, %v1883
    %v1885 = vrcp.pop %v1511
    %v1886 = vmul.f32 %v1511, %v1885
    %v1887 = vsub.f32 1.0, %v1886
    %v1888 = vmul.f32 %v1885, %v1887
    %v1889 = vadd.f32 %v1885, %v1888
    %vm1890 = vweird.f32 %v1511
    %vm1891 = vweird.f32 %v1885
    %vm1892 = vmor %vm1890, %vm1891
    %v1893 = vsel %vm1892, %v1885, %v1889
    %v1894 = vand.u32 2147483647, %v1511
    %vm1895 = vcmp.eq.f32.partialorder %v1894, 8.507059e+37
    %v1896 = vand.u32 %v1511, 2147483648
    %v1897 = vor.u32 1.1754944e-38, %v1896
    %v1898 = vsel %vm1895, %v1897, %v1893
    %v1899 = vmul.f32 %v1383, %v1898
    %v1900 = vrcp.pop %v1513
    %v1901 = vmul.f32 %v1513, %v1900
    %v1902 = vsub.f32 1.0, %v1901
    %v1903 = vmul.f32 %v1900, %v1902
    %v1904 = vadd.f32 %v1900, %v1903
    %vm1905 = vweird.f32 %v1513
    %vm1906 = vweird.f32 %v1900
    %vm1907 = vmor %vm1905, %vm1906
    %v1908 = vsel %vm1907, %v1900, %v1904
    %v1909 = vand.u32 2147483647, %v1513
    %vm1910 = vcmp.eq.f32.partialorder %v1909, 8.507059e+37
    %v1911 = vand.u32 %v1513, 2147483648
    %v1912 = vor.u32 1.1754944e-38, %v1911
    %v1913 = vsel %vm1910, %v1912, %v1908
    %v1914 = vmul.f32 %v1385, %v1913
    %v1915 = vrcp.pop %v1515
    %v1916 = vmul.f32 %v1515, %v1915
    %v1917 = vsub.f32 1.0, %v1916
    %v1918 = vmul.f32 %v1915, %v1917
    %v1919 = vadd.f32 %v1915, %v1918
    %vm1920 = vweird.f32 %v1515
    %vm1921 = vweird.f32 %v1915
    %vm1922 = vmor %vm1920, %vm1921
    %v1923 = vsel %vm1922, %v1915, %v1919
    %v1924 = vand.u32 2147483647, %v1515
    %vm1925 = vcmp.eq.f32.partialorder %v1924, 8.507059e+37
    %v1926 = vand.u32 %v1515, 2147483648
    %v1927 = vor.u32 1.1754944e-38, %v1926
    %v1928 = vsel %vm1925, %v1927, %v1923
    %v1929 = vmul.f32 %v1387, %v1928
    %v1930 = vrcp.pop %v1517
    %v1931 = vmul.f32 %v1517, %v1930
    %v1932 = vsub.f32 1.0, %v1931
    %v1933 = vmul.f32 %v1930, %v1932
    %v1934 = vadd.f32 %v1930, %v1933
    %vm1935 = vweird.f32 %v1517
    %vm1936 = vweird.f32 %v1930
    %vm1937 = vmor %vm1935, %vm1936
    %v1938 = vsel %vm1937, %v1930, %v1934
    %v1939 = vand.u32 2147483647, %v1517
    %vm1940 = vcmp.eq.f32.partialorder %v1939, 8.507059e+37
    %v1941 = vand.u32 %v1517, 2147483648
    %v1942 = vor.u32 1.1754944e-38, %v1941
    %v1943 = vsel %vm1940, %v1942, %v1938
    %v1944 = vmul.f32 %v1389, %v1943
    %v1945 = vrcp.pop %v1519
    %v1946 = vmul.f32 %v1519, %v1945
    %v1947 = vsub.f32 1.0, %v1946
    %v1948 = vmul.f32 %v1945, %v1947
    %v1949 = vadd.f32 %v1945, %v1948
    %vm1950 = vweird.f32 %v1519
    %vm1951 = vweird.f32 %v1945
    %vm1952 = vmor %vm1950, %vm1951
    %v1953 = vsel %vm1952, %v1945, %v1949
    %v1954 = vand.u32 2147483647, %v1519
    %vm1955 = vcmp.eq.f32.partialorder %v1954, 8.507059e+37
    %v1956 = vand.u32 %v1519, 2147483648
    %v1957 = vor.u32 1.1754944e-38, %v1956
    %v1958 = vsel %vm1955, %v1957, %v1953
    %v1959 = vmul.f32 %v1391, %v1958
    %v1960 = vrcp.pop %v1521
    %v1961 = vmul.f32 %v1521, %v1960
    %v1962 = vsub.f32 1.0, %v1961
    %v1963 = vmul.f32 %v1960, %v1962
    %v1964 = vadd.f32 %v1960, %v1963
    %vm1965 = vweird.f32 %v1521
    %vm1966 = vweird.f32 %v1960
    %vm1967 = vmor %vm1965, %vm1966
    %v1968 = vsel %vm1967, %v1960, %v1964
    %v1969 = vand.u32 2147483647, %v1521
    %vm1970 = vcmp.eq.f32.partialorder %v1969, 8.507059e+37
    %v1971 = vand.u32 %v1521, 2147483648
    %v1972 = vor.u32 1.1754944e-38, %v1971
    %v1973 = vsel %vm1970, %v1972, %v1968
    %v1974 = vmul.f32 %v1393, %v1973
    %v1975 = vrcp.pop %v1523
    %v1976 = vmul.f32 %v1523, %v1975
    %v1977 = vsub.f32 1.0, %v1976
    %v1978 = vmul.f32 %v1975, %v1977
    %v1979 = vadd.f32 %v1975, %v1978
    %vm1980 = vweird.f32 %v1523
    %vm1981 = vweird.f32 %v1975
    %vm1982 = vmor %vm1980, %vm1981
    %v1983 = vsel %vm1982, %v1975, %v1979
    %v1984 = vand.u32 2147483647, %v1523
    %vm1985 = vcmp.eq.f32.partialorder %v1984, 8.507059e+37
    %v1986 = vand.u32 %v1523, 2147483648
    %v1987 = vor.u32 1.1754944e-38, %v1986
    %v1988 = vsel %vm1985, %v1987, %v1983
    %v1989 = vmul.f32 %v1395, %v1988
    %v1990 = vrcp.pop %v1525
    %v1991 = vmul.f32 %v1525, %v1990
    %v1992 = vsub.f32 1.0, %v1991
    %v1993 = vmul.f32 %v1990, %v1992
    %v1994 = vadd.f32 %v1990, %v1993
    %vm1995 = vweird.f32 %v1525
    %vm1996 = vweird.f32 %v1990
    %vm1997 = vmor %vm1995, %vm1996
    %v1998 = vsel %vm1997, %v1990, %v1994
    %v1999 = vand.u32 2147483647, %v1525
    %vm2000 = vcmp.eq.f32.partialorder %v1999, 8.507059e+37
    %v2001 = vand.u32 %v1525, 2147483648
    %v2002 = vor.u32 1.1754944e-38, %v2001
    %v2003 = vsel %vm2000, %v2002, %v1998
    %v2004 = vmul.f32 %v1397, %v2003
    %v2005 = vrcp.pop %v1527
    %v2006 = vmul.f32 %v1527, %v2005
    %v2007 = vsub.f32 1.0, %v2006
    %v2008 = vmul.f32 %v2005, %v2007
    %v2009 = vadd.f32 %v2005, %v2008
    %vm2010 = vweird.f32 %v1527
    %vm2011 = vweird.f32 %v2005
    %vm2012 = vmor %vm2010, %vm2011
    %v2013 = vsel %vm2012, %v2005, %v2009
    %v2014 = vand.u32 2147483647, %v1527
    %vm2015 = vcmp.eq.f32.partialorder %v2014, 8.507059e+37
    %v2016 = vand.u32 %v1527, 2147483648
    %v2017 = vor.u32 1.1754944e-38, %v2016
    %v2018 = vsel %vm2015, %v2017, %v2013
    %v2019 = vmul.f32 %v1399, %v2018
    %v2020 = vrcp.pop %v1529
    %v2021 = vmul.f32 %v1529, %v2020
    %v2022 = vsub.f32 1.0, %v2021
    %v2023 = vmul.f32 %v2020, %v2022
    %v2024 = vadd.f32 %v2020, %v2023
    %vm2025 = vweird.f32 %v1529
    %vm2026 = vweird.f32 %v2020
    %vm2027 = vmor %vm2025, %vm2026
    %v2028 = vsel %vm2027, %v2020, %v2024
    %v2029 = vand.u32 2147483647, %v1529
    %vm2030 = vcmp.eq.f32.partialorder %v2029, 8.507059e+37
    %v2031 = vand.u32 %v1529, 2147483648
    %v2032 = vor.u32 1.1754944e-38, %v2031
    %v2033 = vsel %vm2030, %v2032, %v2028
    %v2034 = vmul.f32 %v1401, %v2033
    %v2035 = vrcp.pop %v1531
    %v2036 = vmul.f32 %v1531, %v2035
    %v2037 = vsub.f32 1.0, %v2036
    %v2038 = vmul.f32 %v2035, %v2037
    %v2039 = vadd.f32 %v2035, %v2038
    %vm2040 = vweird.f32 %v1531
    %vm2041 = vweird.f32 %v2035
    %vm2042 = vmor %vm2040, %vm2041
    %v2043 = vsel %vm2042, %v2035, %v2039
    %v2044 = vand.u32 2147483647, %v1531
    %vm2045 = vcmp.eq.f32.partialorder %v2044, 8.507059e+37
    %v2046 = vand.u32 %v1531, 2147483648
    %v2047 = vor.u32 1.1754944e-38, %v2046
    %v2048 = vsel %vm2045, %v2047, %v2043
    %v2049 = vmul.f32 %v1403, %v2048
    %v2050 = vrcp.pop %v1533
    %v2051 = vmul.f32 %v1533, %v2050
    %v2052 = vsub.f32 1.0, %v2051
    %v2053 = vmul.f32 %v2050, %v2052
    %v2054 = vadd.f32 %v2050, %v2053
    %vm2055 = vweird.f32 %v1533
    %vm2056 = vweird.f32 %v2050
    %vm2057 = vmor %vm2055, %vm2056
    %v2058 = vsel %vm2057, %v2050, %v2054
    %v2059 = vand.u32 2147483647, %v1533
    %vm2060 = vcmp.eq.f32.partialorder %v2059, 8.507059e+37
    %v2061 = vand.u32 %v1533, 2147483648
    %v2062 = vor.u32 1.1754944e-38, %v2061
    %v2063 = vsel %vm2060, %v2062, %v2058
    %v2064 = vmul.f32 %v1405, %v2063
    %v2065 = vrcp.pop %v1535
    %v2066 = vmul.f32 %v1535, %v2065
    %v2067 = vsub.f32 1.0, %v2066
    %v2068 = vmul.f32 %v2065, %v2067
    %v2069 = vadd.f32 %v2065, %v2068
    %vm2070 = vweird.f32 %v1535
    %vm2071 = vweird.f32 %v2065
    %vm2072 = vmor %vm2070, %vm2071
    %v2073 = vsel %vm2072, %v2065, %v2069
    %v2074 = vand.u32 2147483647, %v1535
    %vm2075 = vcmp.eq.f32.partialorder %v2074, 8.507059e+37
    %v2076 = vand.u32 %v1535, 2147483648
    %v2077 = vor.u32 1.1754944e-38, %v2076
    %v2078 = vsel %vm2075, %v2077, %v2073
    %v2079 = vmul.f32 %v1407, %v2078
    %v2080 = vrcp.pop %v1537
    %v2081 = vmul.f32 %v1537, %v2080
    %v2082 = vsub.f32 1.0, %v2081
    %v2083 = vmul.f32 %v2080, %v2082
    %v2084 = vadd.f32 %v2080, %v2083
    %vm2085 = vweird.f32 %v1537
    %vm2086 = vweird.f32 %v2080
    %vm2087 = vmor %vm2085, %vm2086
    %v2088 = vsel %vm2087, %v2080, %v2084
    %v2089 = vand.u32 2147483647, %v1537
    %vm2090 = vcmp.eq.f32.partialorder %v2089, 8.507059e+37
    %v2091 = vand.u32 %v1537, 2147483648
    %v2092 = vor.u32 1.1754944e-38, %v2091
    %v2093 = vsel %vm2090, %v2092, %v2088
    %v2094 = vmul.f32 %v1409, %v2093
    %v2095 = vrcp.pop %v1539
    %v2096 = vmul.f32 %v1539, %v2095
    %v2097 = vsub.f32 1.0, %v2096
    %v2098 = vmul.f32 %v2095, %v2097
    %v2099 = vadd.f32 %v2095, %v2098
    %vm2100 = vweird.f32 %v1539
    %vm2101 = vweird.f32 %v2095
    %vm2102 = vmor %vm2100, %vm2101
    %v2103 = vsel %vm2102, %v2095, %v2099
    %v2104 = vand.u32 2147483647, %v1539
    %vm2105 = vcmp.eq.f32.partialorder %v2104, 8.507059e+37
    %v2106 = vand.u32 %v1539, 2147483648
    %v2107 = vor.u32 1.1754944e-38, %v2106
    %v2108 = vsel %vm2105, %v2107, %v2103
    %v2109 = vmul.f32 %v1411, %v2108
    %v2110 = vrcp.pop %v1541
    %v2111 = vmul.f32 %v1541, %v2110
    %v2112 = vsub.f32 1.0, %v2111
    %v2113 = vmul.f32 %v2110, %v2112
    %v2114 = vadd.f32 %v2110, %v2113
    %vm2115 = vweird.f32 %v1541
    %vm2116 = vweird.f32 %v2110
    %vm2117 = vmor %vm2115, %vm2116
    %v2118 = vsel %vm2117, %v2110, %v2114
    %v2119 = vand.u32 2147483647, %v1541
    %vm2120 = vcmp.eq.f32.partialorder %v2119, 8.507059e+37
    %v2121 = vand.u32 %v1541, 2147483648
    %v2122 = vor.u32 1.1754944e-38, %v2121
    %v2123 = vsel %vm2120, %v2122, %v2118
    %v2124 = vmul.f32 %v1413, %v2123
    %v2125 = vrcp.pop %v1543
    %v2126 = vmul.f32 %v1543, %v2125
    %v2127 = vsub.f32 1.0, %v2126
    %v2128 = vmul.f32 %v2125, %v2127
    %v2129 = vadd.f32 %v2125, %v2128
    %vm2130 = vweird.f32 %v1543
    %vm2131 = vweird.f32 %v2125
    %vm2132 = vmor %vm2130, %vm2131
    %v2133 = vsel %vm2132, %v2125, %v2129
    %v2134 = vand.u32 2147483647, %v1543
    %vm2135 = vcmp.eq.f32.partialorder %v2134, 8.507059e+37
    %v2136 = vand.u32 %v1543, 2147483648
    %v2137 = vor.u32 1.1754944e-38, %v2136
    %v2138 = vsel %vm2135, %v2137, %v2133
    %v2139 = vmul.f32 %v1415, %v2138
    %v2140 = vrcp.pop %v1545
    %v2141 = vmul.f32 %v1545, %v2140
    %v2142 = vsub.f32 1.0, %v2141
    %v2143 = vmul.f32 %v2140, %v2142
    %v2144 = vadd.f32 %v2140, %v2143
    %vm2145 = vweird.f32 %v1545
    %vm2146 = vweird.f32 %v2140
    %vm2147 = vmor %vm2145, %vm2146
    %v2148 = vsel %vm2147, %v2140, %v2144
    %v2149 = vand.u32 2147483647, %v1545
    %vm2150 = vcmp.eq.f32.partialorder %v2149, 8.507059e+37
    %v2151 = vand.u32 %v1545, 2147483648
    %v2152 = vor.u32 1.1754944e-38, %v2151
    %v2153 = vsel %vm2150, %v2152, %v2148
    %v2154 = vmul.f32 %v1417, %v2153
    %v2155 = vrcp.pop %v1547
    %v2156 = vmul.f32 %v1547, %v2155
    %v2157 = vsub.f32 1.0, %v2156
    %v2158 = vmul.f32 %v2155, %v2157
    %v2159 = vadd.f32 %v2155, %v2158
    %vm2160 = vweird.f32 %v1547
    %vm2161 = vweird.f32 %v2155
    %vm2162 = vmor %vm2160, %vm2161
    %v2163 = vsel %vm2162, %v2155, %v2159
    %v2164 = vand.u32 2147483647, %v1547
    %vm2165 = vcmp.eq.f32.partialorder %v2164, 8.507059e+37
    %v2166 = vand.u32 %v1547, 2147483648
    %v2167 = vor.u32 1.1754944e-38, %v2166
    %v2168 = vsel %vm2165, %v2167, %v2163
    %v2169 = vmul.f32 %v1419, %v2168
    %v2170 = vrcp.pop %v1549
    %v2171 = vmul.f32 %v1549, %v2170
    %v2172 = vsub.f32 1.0, %v2171
    %v2173 = vmul.f32 %v2170, %v2172
    %v2174 = vadd.f32 %v2170, %v2173
    %vm2175 = vweird.f32 %v1549
    %vm2176 = vweird.f32 %v2170
    %vm2177 = vmor %vm2175, %vm2176
    %v2178 = vsel %vm2177, %v2170, %v2174
    %v2179 = vand.u32 2147483647, %v1549
    %vm2180 = vcmp.eq.f32.partialorder %v2179, 8.507059e+37
    %v2181 = vand.u32 %v1549, 2147483648
    %v2182 = vor.u32 1.1754944e-38, %v2181
    %v2183 = vsel %vm2180, %v2182, %v2178
    %v2184 = vmul.f32 %v1421, %v2183
    %v2185 = vrcp.pop %v1551
    %v2186 = vmul.f32 %v1551, %v2185
    %v2187 = vsub.f32 1.0, %v2186
    %v2188 = vmul.f32 %v2185, %v2187
    %v2189 = vadd.f32 %v2185, %v2188
    %vm2190 = vweird.f32 %v1551
    %vm2191 = vweird.f32 %v2185
    %vm2192 = vmor %vm2190, %vm2191
    %v2193 = vsel %vm2192, %v2185, %v2189
    %v2194 = vand.u32 2147483647, %v1551
    %vm2195 = vcmp.eq.f32.partialorder %v2194, 8.507059e+37
    %v2196 = vand.u32 %v1551, 2147483648
    %v2197 = vor.u32 1.1754944e-38, %v2196
    %v2198 = vsel %vm2195, %v2197, %v2193
    %v2199 = vmul.f32 %v1423, %v2198
    %v2200 = vrcp.pop %v1553
    %v2201 = vmul.f32 %v1553, %v2200
    %v2202 = vsub.f32 1.0, %v2201
    %v2203 = vmul.f32 %v2200, %v2202
    %v2204 = vadd.f32 %v2200, %v2203
    %vm2205 = vweird.f32 %v1553
    %vm2206 = vweird.f32 %v2200
    %vm2207 = vmor %vm2205, %vm2206
    %v2208 = vsel %vm2207, %v2200, %v2204
    %v2209 = vand.u32 2147483647, %v1553
    %vm2210 = vcmp.eq.f32.partialorder %v2209, 8.507059e+37
    %v2211 = vand.u32 %v1553, 2147483648
    %v2212 = vor.u32 1.1754944e-38, %v2211
    %v2213 = vsel %vm2210, %v2212, %v2208
    %v2214 = vmul.f32 %v1425, %v2213
    %v2215 = vrcp.pop %v1555
    %v2216 = vmul.f32 %v1555, %v2215
    %v2217 = vsub.f32 1.0, %v2216
    %v2218 = vmul.f32 %v2215, %v2217
    %v2219 = vadd.f32 %v2215, %v2218
    %vm2220 = vweird.f32 %v1555
    %vm2221 = vweird.f32 %v2215
    %vm2222 = vmor %vm2220, %vm2221
    %v2223 = vsel %vm2222, %v2215, %v2219
    %v2224 = vand.u32 2147483647, %v1555
    %vm2225 = vcmp.eq.f32.partialorder %v2224, 8.507059e+37
    %v2226 = vand.u32 %v1555, 2147483648
    %v2227 = vor.u32 1.1754944e-38, %v2226
    %v2228 = vsel %vm2225, %v2227, %v2223
    %v2229 = vmul.f32 %v1427, %v2228
    %v2230 = vrcp.pop %v1557
    %v2231 = vmul.f32 %v1557, %v2230
    %v2232 = vsub.f32 1.0, %v2231
    %v2233 = vmul.f32 %v2230, %v2232
    %v2234 = vadd.f32 %v2230, %v2233
    %vm2235 = vweird.f32 %v1557
    %vm2236 = vweird.f32 %v2230
    %vm2237 = vmor %vm2235, %vm2236
    %v2238 = vsel %vm2237, %v2230, %v2234
    %v2239 = vand.u32 2147483647, %v1557
    %vm2240 = vcmp.eq.f32.partialorder %v2239, 8.507059e+37
    %v2241 = vand.u32 %v1557, 2147483648
    %v2242 = vor.u32 1.1754944e-38, %v2241
    %v2243 = vsel %vm2240, %v2242, %v2238
    %v2244 = vmul.f32 %v1429, %v2243
    %v2245 = vrcp.pop %v1559
    %v2246 = vmul.f32 %v1559, %v2245
    %v2247 = vsub.f32 1.0, %v2246
    %v2248 = vmul.f32 %v2245, %v2247
    %v2249 = vadd.f32 %v2245, %v2248
    %vm2250 = vweird.f32 %v1559
    %vm2251 = vweird.f32 %v2245
    %vm2252 = vmor %vm2250, %vm2251
    %v2253 = vsel %vm2252, %v2245, %v2249
    %v2254 = vand.u32 2147483647, %v1559
    %vm2255 = vcmp.eq.f32.partialorder %v2254, 8.507059e+37
    %v2256 = vand.u32 %v1559, 2147483648
    %v2257 = vor.u32 1.1754944e-38, %v2256
    %v2258 = vsel %vm2255, %v2257, %v2253
    %v2259 = vmul.f32 %v1431, %v2258
    %v2260 = vrcp.pop %v1561
    %v2261 = vmul.f32 %v1561, %v2260
    %v2262 = vsub.f32 1.0, %v2261
    %v2263 = vmul.f32 %v2260, %v2262
    %v2264 = vadd.f32 %v2260, %v2263
    %vm2265 = vweird.f32 %v1561
    %vm2266 = vweird.f32 %v2260
    %vm2267 = vmor %vm2265, %vm2266
    %v2268 = vsel %vm2267, %v2260, %v2264
    %v2269 = vand.u32 2147483647, %v1561
    %vm2270 = vcmp.eq.f32.partialorder %v2269, 8.507059e+37
    %v2271 = vand.u32 %v1561, 2147483648
    %v2272 = vor.u32 1.1754944e-38, %v2271
    %v2273 = vsel %vm2270, %v2272, %v2268
    %v2274 = vmul.f32 %v1433, %v2273
    %v2275 = vrcp.pop %v1563
    %v2276 = vmul.f32 %v1563, %v2275
    %v2277 = vsub.f32 1.0, %v2276
    %v2278 = vmul.f32 %v2275, %v2277
    %v2279 = vadd.f32 %v2275, %v2278
    %vm2280 = vweird.f32 %v1563
    %vm2281 = vweird.f32 %v2275
    %vm2282 = vmor %vm2280, %vm2281
    %v2283 = vsel %vm2282, %v2275, %v2279
    %v2284 = vand.u32 2147483647, %v1563
    %vm2285 = vcmp.eq.f32.partialorder %v2284, 8.507059e+37
    %v2286 = vand.u32 %v1563, 2147483648
    %v2287 = vor.u32 1.1754944e-38, %v2286
    %v2288 = vsel %vm2285, %v2287, %v2283
    %v2289 = vmul.f32 %v1435, %v2288
    %v2290 = vrcp.pop %v1565
    %v2291 = vmul.f32 %v1565, %v2290
    %v2292 = vsub.f32 1.0, %v2291
    %v2293 = vmul.f32 %v2290, %v2292
    %v2294 = vadd.f32 %v2290, %v2293
    %vm2295 = vweird.f32 %v1565
    %vm2296 = vweird.f32 %v2290
    %vm2297 = vmor %vm2295, %vm2296
    %v2298 = vsel %vm2297, %v2290, %v2294
    %v2299 = vand.u32 2147483647, %v1565
    %vm2300 = vcmp.eq.f32.partialorder %v2299, 8.507059e+37
    %v2301 = vand.u32 %v1565, 2147483648
    %v2302 = vor.u32 1.1754944e-38, %v2301
    %v2303 = vsel %vm2300, %v2302, %v2298
    %v2304 = vmul.f32 %v1437, %v2303
    %v2305 = vrcp.pop %v1567
    %v2306 = vmul.f32 %v1567, %v2305
    %v2307 = vsub.f32 1.0, %v2306
    %v2308 = vmul.f32 %v2305, %v2307
    %v2309 = vadd.f32 %v2305, %v2308
    %vm2310 = vweird.f32 %v1567
    %vm2311 = vweird.f32 %v2305
    %vm2312 = vmor %vm2310, %vm2311
    %v2313 = vsel %vm2312, %v2305, %v2309
    %v2314 = vand.u32 2147483647, %v1567
    %vm2315 = vcmp.eq.f32.partialorder %v2314, 8.507059e+37
    %v2316 = vand.u32 %v1567, 2147483648
    %v2317 = vor.u32 1.1754944e-38, %v2316
    %v2318 = vsel %vm2315, %v2317, %v2313
    %v2319 = vmul.f32 %v1439, %v2318
    %v2320 = vrcp.pop %v1569
    %v2321 = vmul.f32 %v1569, %v2320
    %v2322 = vsub.f32 1.0, %v2321
    %v2323 = vmul.f32 %v2320, %v2322
    %v2324 = vadd.f32 %v2320, %v2323
    %vm2325 = vweird.f32 %v1569
    %vm2326 = vweird.f32 %v2320
    %vm2327 = vmor %vm2325, %vm2326
    %v2328 = vsel %vm2327, %v2320, %v2324
    %v2329 = vand.u32 2147483647, %v1569
    %vm2330 = vcmp.eq.f32.partialorder %v2329, 8.507059e+37
    %v2331 = vand.u32 %v1569, 2147483648
    %v2332 = vor.u32 1.1754944e-38, %v2331
    %v2333 = vsel %vm2330, %v2332, %v2328
    %v2334 = vmul.f32 %v1441, %v2333
    %v2335 = vrcp.pop %v1571
    %v2336 = vmul.f32 %v1571, %v2335
    %v2337 = vsub.f32 1.0, %v2336
    %v2338 = vmul.f32 %v2335, %v2337
    %v2339 = vadd.f32 %v2335, %v2338
    %vm2340 = vweird.f32 %v1571
    %vm2341 = vweird.f32 %v2335
    %vm2342 = vmor %vm2340, %vm2341
    %v2343 = vsel %vm2342, %v2335, %v2339
    %v2344 = vand.u32 2147483647, %v1571
    %vm2345 = vcmp.eq.f32.partialorder %v2344, 8.507059e+37
    %v2346 = vand.u32 %v1571, 2147483648
    %v2347 = vor.u32 1.1754944e-38, %v2346
    %v2348 = vsel %vm2345, %v2347, %v2343
    %v2349 = vmul.f32 %v1443, %v2348
    %v2350 = vrcp.pop %v1573
    %v2351 = vmul.f32 %v1573, %v2350
    %v2352 = vsub.f32 1.0, %v2351
    %v2353 = vmul.f32 %v2350, %v2352
    %v2354 = vadd.f32 %v2350, %v2353
    %vm2355 = vweird.f32 %v1573
    %vm2356 = vweird.f32 %v2350
    %vm2357 = vmor %vm2355, %vm2356
    %v2358 = vsel %vm2357, %v2350, %v2354
    %v2359 = vand.u32 2147483647, %v1573
    %vm2360 = vcmp.eq.f32.partialorder %v2359, 8.507059e+37
    %v2361 = vand.u32 %v1573, 2147483648
    %v2362 = vor.u32 1.1754944e-38, %v2361
    %v2363 = vsel %vm2360, %v2362, %v2358
    %v2364 = vmul.f32 %v1445, %v2363
    %v2365 = vrcp.pop %v1575
    %v2366 = vmul.f32 %v1575, %v2365
    %v2367 = vsub.f32 1.0, %v2366
    %v2368 = vmul.f32 %v2365, %v2367
    %v2369 = vadd.f32 %v2365, %v2368
    %vm2370 = vweird.f32 %v1575
    %vm2371 = vweird.f32 %v2365
    %vm2372 = vmor %vm2370, %vm2371
    %v2373 = vsel %vm2372, %v2365, %v2369
    %v2374 = vand.u32 2147483647, %v1575
    %vm2375 = vcmp.eq.f32.partialorder %v2374, 8.507059e+37
    %v2376 = vand.u32 %v1575, 2147483648
    %v2377 = vor.u32 1.1754944e-38, %v2376
    %v2378 = vsel %vm2375, %v2377, %v2373
    %v2379 = vmul.f32 %v1447, %v2378
    %v2380 = vrcp.pop %v1577
    %v2381 = vmul.f32 %v1577, %v2380
    %v2382 = vsub.f32 1.0, %v2381
    %v2383 = vmul.f32 %v2380, %v2382
    %v2384 = vadd.f32 %v2380, %v2383
    %vm2385 = vweird.f32 %v1577
    %vm2386 = vweird.f32 %v2380
    %vm2387 = vmor %vm2385, %vm2386
    %v2388 = vsel %vm2387, %v2380, %v2384
    %v2389 = vand.u32 2147483647, %v1577
    %vm2390 = vcmp.eq.f32.partialorder %v2389, 8.507059e+37
    %v2391 = vand.u32 %v1577, 2147483648
    %v2392 = vor.u32 1.1754944e-38, %v2391
    %v2393 = vsel %vm2390, %v2392, %v2388
    %v2394 = vmul.f32 %v1449, %v2393
    %v2395 = vrcp.pop %v1579
    %v2396 = vmul.f32 %v1579, %v2395
    %v2397 = vsub.f32 1.0, %v2396
    %v2398 = vmul.f32 %v2395, %v2397
    %v2399 = vadd.f32 %v2395, %v2398
    %vm2400 = vweird.f32 %v1579
    %vm2401 = vweird.f32 %v2395
    %vm2402 = vmor %vm2400, %vm2401
    %v2403 = vsel %vm2402, %v2395, %v2399
    %v2404 = vand.u32 2147483647, %v1579
    %vm2405 = vcmp.eq.f32.partialorder %v2404, 8.507059e+37
    %v2406 = vand.u32 %v1579, 2147483648
    %v2407 = vor.u32 1.1754944e-38, %v2406
    %v2408 = vsel %vm2405, %v2407, %v2403
    %v2409 = vmul.f32 %v1451, %v2408
    %v2410 = vrcp.pop %v1581
    %v2411 = vmul.f32 %v1581, %v2410
    %v2412 = vsub.f32 1.0, %v2411
    %v2413 = vmul.f32 %v2410, %v2412
    %v2414 = vadd.f32 %v2410, %v2413
    %vm2415 = vweird.f32 %v1581
    %vm2416 = vweird.f32 %v2410
    %vm2417 = vmor %vm2415, %vm2416
    %v2418 = vsel %vm2417, %v2410, %v2414
    %v2419 = vand.u32 2147483647, %v1581
    %vm2420 = vcmp.eq.f32.partialorder %v2419, 8.507059e+37
    %v2421 = vand.u32 %v1581, 2147483648
    %v2422 = vor.u32 1.1754944e-38, %v2421
    %v2423 = vsel %vm2420, %v2422, %v2418
    %v2424 = vmul.f32 %v1453, %v2423
    %v2425 = vrcp.pop %v1583
    %v2426 = vmul.f32 %v1583, %v2425
    %v2427 = vsub.f32 1.0, %v2426
    %v2428 = vmul.f32 %v2425, %v2427
    %v2429 = vadd.f32 %v2425, %v2428
    %vm2430 = vweird.f32 %v1583
    %vm2431 = vweird.f32 %v2425
    %vm2432 = vmor %vm2430, %vm2431
    %v2433 = vsel %vm2432, %v2425, %v2429
    %v2434 = vand.u32 2147483647, %v1583
    %vm2435 = vcmp.eq.f32.partialorder %v2434, 8.507059e+37
    %v2436 = vand.u32 %v1583, 2147483648
    %v2437 = vor.u32 1.1754944e-38, %v2436
    %v2438 = vsel %vm2435, %v2437, %v2433
    %v2439 = vmul.f32 %v1455, %v2438
    %v2440 = vrcp.pop %v1585
    %v2441 = vmul.f32 %v1585, %v2440
    %v2442 = vsub.f32 1.0, %v2441
    %v2443 = vmul.f32 %v2440, %v2442
    %v2444 = vadd.f32 %v2440, %v2443
    %vm2445 = vweird.f32 %v1585
    %vm2446 = vweird.f32 %v2440
    %vm2447 = vmor %vm2445, %vm2446
    %v2448 = vsel %vm2447, %v2440, %v2444
    %v2449 = vand.u32 2147483647, %v1585
    %vm2450 = vcmp.eq.f32.partialorder %v2449, 8.507059e+37
    %v2451 = vand.u32 %v1585, 2147483648
    %v2452 = vor.u32 1.1754944e-38, %v2451
    %v2453 = vsel %vm2450, %v2452, %v2448
    %v2454 = vmul.f32 %v1457, %v2453
    %v2455 = vrcp.pop %v1587
    %v2456 = vmul.f32 %v1587, %v2455
    %v2457 = vsub.f32 1.0, %v2456
    %v2458 = vmul.f32 %v2455, %v2457
    %v2459 = vadd.f32 %v2455, %v2458
    %vm2460 = vweird.f32 %v1587
    %vm2461 = vweird.f32 %v2455
    %vm2462 = vmor %vm2460, %vm2461
    %v2463 = vsel %vm2462, %v2455, %v2459
    %v2464 = vand.u32 2147483647, %v1587
    %vm2465 = vcmp.eq.f32.partialorder %v2464, 8.507059e+37
    %v2466 = vand.u32 %v1587, 2147483648
    %v2467 = vor.u32 1.1754944e-38, %v2466
    %v2468 = vsel %vm2465, %v2467, %v2463
    %v2469 = vmul.f32 %v1459, %v2468
    %v2470 = vrcp.pop %v1589
    %v2471 = vmul.f32 %v1589, %v2470
    %v2472 = vsub.f32 1.0, %v2471
    %v2473 = vmul.f32 %v2470, %v2472
    %v2474 = vadd.f32 %v2470, %v2473
    %vm2475 = vweird.f32 %v1589
    %vm2476 = vweird.f32 %v2470
    %vm2477 = vmor %vm2475, %vm2476
    %v2478 = vsel %vm2477, %v2470, %v2474
    %v2479 = vand.u32 2147483647, %v1589
    %vm2480 = vcmp.eq.f32.partialorder %v2479, 8.507059e+37
    %v2481 = vand.u32 %v1589, 2147483648
    %v2482 = vor.u32 1.1754944e-38, %v2481
    %v2483 = vsel %vm2480, %v2482, %v2478
    %v2484 = vmul.f32 %v1461, %v2483
    %v2485 = vrcp.pop %v1591
    %v2486 = vmul.f32 %v1591, %v2485
    %v2487 = vsub.f32 1.0, %v2486
    %v2488 = vmul.f32 %v2485, %v2487
    %v2489 = vadd.f32 %v2485, %v2488
    %vm2490 = vweird.f32 %v1591
    %vm2491 = vweird.f32 %v2485
    %vm2492 = vmor %vm2490, %vm2491
    %v2493 = vsel %vm2492, %v2485, %v2489
    %v2494 = vand.u32 2147483647, %v1591
    %vm2495 = vcmp.eq.f32.partialorder %v2494, 8.507059e+37
    %v2496 = vand.u32 %v1591, 2147483648
    %v2497 = vor.u32 1.1754944e-38, %v2496
    %v2498 = vsel %vm2495, %v2497, %v2493
    %v2499 = vmul.f32 %v1463, %v2498
    %v2500 = vrcp.pop %v1593
    %v2501 = vmul.f32 %v1593, %v2500
    %v2502 = vsub.f32 1.0, %v2501
    %v2503 = vmul.f32 %v2500, %v2502
    %v2504 = vadd.f32 %v2500, %v2503
    %vm2505 = vweird.f32 %v1593
    %vm2506 = vweird.f32 %v2500
    %vm2507 = vmor %vm2505, %vm2506
    %v2508 = vsel %vm2507, %v2500, %v2504
    %v2509 = vand.u32 2147483647, %v1593
    %vm2510 = vcmp.eq.f32.partialorder %v2509, 8.507059e+37
    %v2511 = vand.u32 %v1593, 2147483648
    %v2512 = vor.u32 1.1754944e-38, %v2511
    %v2513 = vsel %vm2510, %v2512, %v2508
    %v2514 = vmul.f32 %v1465, %v2513
    %v2515 = vrcp.pop %v1595
    %v2516 = vmul.f32 %v1595, %v2515
    %v2517 = vsub.f32 1.0, %v2516
    %v2518 = vmul.f32 %v2515, %v2517
    %v2519 = vadd.f32 %v2515, %v2518
    %vm2520 = vweird.f32 %v1595
    %vm2521 = vweird.f32 %v2515
    %vm2522 = vmor %vm2520, %vm2521
    %v2523 = vsel %vm2522, %v2515, %v2519
    %v2524 = vand.u32 2147483647, %v1595
    %vm2525 = vcmp.eq.f32.partialorder %v2524, 8.507059e+37
    %v2526 = vand.u32 %v1595, 2147483648
    %v2527 = vor.u32 1.1754944e-38, %v2526
    %v2528 = vsel %vm2525, %v2527, %v2523
    %v2529 = vmul.f32 %v1467, %v2528
    %v2530 = vrcp.pop %v1597
    %v2531 = vmul.f32 %v1597, %v2530
    %v2532 = vsub.f32 1.0, %v2531
    %v2533 = vmul.f32 %v2530, %v2532
    %v2534 = vadd.f32 %v2530, %v2533
    %vm2535 = vweird.f32 %v1597
    %vm2536 = vweird.f32 %v2530
    %vm2537 = vmor %vm2535, %vm2536
    %v2538 = vsel %vm2537, %v2530, %v2534
    %v2539 = vand.u32 2147483647, %v1597
    %vm2540 = vcmp.eq.f32.partialorder %v2539, 8.507059e+37
    %v2541 = vand.u32 %v1597, 2147483648
    %v2542 = vor.u32 1.1754944e-38, %v2541
    %v2543 = vsel %vm2540, %v2542, %v2538
    %v2544 = vmul.f32 %v1469, %v2543
    %v2545 = vrcp.pop %v1599
    %v2546 = vmul.f32 %v1599, %v2545
    %v2547 = vsub.f32 1.0, %v2546
    %v2548 = vmul.f32 %v2545, %v2547
    %v2549 = vadd.f32 %v2545, %v2548
    %vm2550 = vweird.f32 %v1599
    %vm2551 = vweird.f32 %v2545
    %vm2552 = vmor %vm2550, %vm2551
    %v2553 = vsel %vm2552, %v2545, %v2549
    %v2554 = vand.u32 2147483647, %v1599
    %vm2555 = vcmp.eq.f32.partialorder %v2554, 8.507059e+37
    %v2556 = vand.u32 %v1599, 2147483648
    %v2557 = vor.u32 1.1754944e-38, %v2556
    %v2558 = vsel %vm2555, %v2557, %v2553
    %v2559 = vmul.f32 %v1471, %v2558
    %2560 = vmatpush.msra.mxu0 %v444
    %2561 = vmatpush.msra.mxu0 %v441
    %2562 = vmatpush.msra.mxu0 %v438
    %2563 = vmatpush.msra.mxu0 %v435
    %2564 = vmatpush.msra.mxu0 %v432
    %2565 = vmatpush.msra.mxu0 %v429
    %2566 = vmatpush.msra.mxu0 %v426
    %2567 = vmatpush.msra.mxu0 %v423
    %2568 = vmatpush.msra.mxu0 %v420
    %2569 = vmatpush.msra.mxu0 %v417
    %2570 = vmatpush.msra.mxu0 %v414
    %2571 = vmatpush.msra.mxu0 %v411
    %2572 = vmatpush.msra.mxu0 %v408
    %2573 = vmatpush.msra.mxu0 %v405
    %2574 = vmatpush.msra.mxu0 %v402
    %2575 = vmatpush.msra.mxu0 %v399
    %2576 = vmatmul.f32.gmra.mxu0 %v1614
    %v2577 = vpop.f32.mrf.mxu0
    %v2578 = vadd.f32 0.0, %v2577
    %2579 = vmatmul.f32.gmra.mxu0 %v1629
    %v2580 = vpop.f32.mrf.mxu0
    %v2581 = vadd.f32 0.0, %v2580
    %2582 = vmatmul.f32.gmra.mxu0 %v1644
    %v2583 = vpop.f32.mrf.mxu0
    %v2584 = vadd.f32 0.0, %v2583
    %2585 = vmatmul.f32.gmra.mxu0 %v1659
    %v2586 = vpop.f32.mrf.mxu0
    %v2587 = vadd.f32 0.0, %v2586
    %2588 = vmatmul.f32.gmra.mxu0 %v1674
    %v2589 = vpop.f32.mrf.mxu0
    %v2590 = vadd.f32 0.0, %v2589
    %2591 = vmatmul.f32.gmra.mxu0 %v1689
    %v2592 = vpop.f32.mrf.mxu0
    %v2593 = vadd.f32 0.0, %v2592
    %2594 = vmatmul.f32.gmra.mxu0 %v1704
    %v2595 = vpop.f32.mrf.mxu0
    %v2596 = vadd.f32 0.0, %v2595
    %2597 = vmatmul.f32.gmra.mxu0 %v1719
    %v2598 = vpop.f32.mrf.mxu0
    %v2599 = vadd.f32 0.0, %v2598
    %2600 = vmatmul.f32.gmra.mxu0 %v1734
    %v2601 = vpop.f32.mrf.mxu0
    %v2602 = vadd.f32 0.0, %v2601
    %2603 = vmatmul.f32.gmra.mxu0 %v1749
    %v2604 = vpop.f32.mrf.mxu0
    %v2605 = vadd.f32 0.0, %v2604
    %2606 = vmatmul.f32.gmra.mxu0 %v1764
    %v2607 = vpop.f32.mrf.mxu0
    %v2608 = vadd.f32 0.0, %v2607
    %2609 = vmatmul.f32.gmra.mxu0 %v1779
    %v2610 = vpop.f32.mrf.mxu0
    %v2611 = vadd.f32 0.0, %v2610
    %2612 = vmatmul.f32.gmra.mxu0 %v1794
    %v2613 = vpop.f32.mrf.mxu0
    %v2614 = vadd.f32 0.0, %v2613
    %2615 = vmatmul.f32.gmra.mxu0 %v1809
    %v2616 = vpop.f32.mrf.mxu0
    %v2617 = vadd.f32 0.0, %v2616
    %2618 = vmatmul.f32.gmra.mxu0 %v1824
    %v2619 = vpop.f32.mrf.mxu0
    %v2620 = vadd.f32 0.0, %v2619
    %2621 = vmatmul.f32.gmra.mxu0 %v1839
    %v2622 = vpop.f32.mrf.mxu0
    %v2623 = vadd.f32 0.0, %v2622
    %2624 = vmatmul.f32.gmra.mxu0 %v1854
    %v2625 = vpop.f32.mrf.mxu0
    %v2626 = vadd.f32 0.0, %v2625
    %2627 = vmatmul.f32.gmra.mxu0 %v1869
    %v2628 = vpop.f32.mrf.mxu0
    %v2629 = vadd.f32 0.0, %v2628
    %2630 = vmatmul.f32.gmra.mxu0 %v1884
    %v2631 = vpop.f32.mrf.mxu0
    %v2632 = vadd.f32 0.0, %v2631
    %2633 = vmatmul.f32.gmra.mxu0 %v1899
    %v2634 = vpop.f32.mrf.mxu0
    %v2635 = vadd.f32 0.0, %v2634
    %2636 = vmatmul.f32.gmra.mxu0 %v1914
    %v2637 = vpop.f32.mrf.mxu0
    %v2638 = vadd.f32 0.0, %v2637
    %2639 = vmatmul.f32.gmra.mxu0 %v1929
    %v2640 = vpop.f32.mrf.mxu0
    %v2641 = vadd.f32 0.0, %v2640
    %2642 = vmatmul.f32.gmra.mxu0 %v1944
    %v2643 = vpop.f32.mrf.mxu0
    %v2644 = vadd.f32 0.0, %v2643
    %2645 = vmatmul.f32.gmra.mxu0 %v1959
    %v2646 = vpop.f32.mrf.mxu0
    %v2647 = vadd.f32 0.0, %v2646
    %2648 = vmatmul.f32.gmra.mxu0 %v1974
    %v2649 = vpop.f32.mrf.mxu0
    %v2650 = vadd.f32 0.0, %v2649
    %2651 = vmatmul.f32.gmra.mxu0 %v1989
    %v2652 = vpop.f32.mrf.mxu0
    %v2653 = vadd.f32 0.0, %v2652
    %2654 = vmatmul.f32.gmra.mxu0 %v2004
    %v2655 = vpop.f32.mrf.mxu0
    %v2656 = vadd.f32 0.0, %v2655
    %2657 = vmatmul.f32.gmra.mxu0 %v2019
    %v2658 = vpop.f32.mrf.mxu0
    %v2659 = vadd.f32 0.0, %v2658
    %2660 = vmatmul.f32.gmra.mxu0 %v2034
    %v2661 = vpop.f32.mrf.mxu0
    %v2662 = vadd.f32 0.0, %v2661
    %2663 = vmatmul.f32.gmra.mxu0 %v2049
    %v2664 = vpop.f32.mrf.mxu0
    %v2665 = vadd.f32 0.0, %v2664
    %2666 = vmatmul.f32.gmra.mxu0 %v2064
    %v2667 = vpop.f32.mrf.mxu0
    %v2668 = vadd.f32 0.0, %v2667
    %2669 = vmatmul.f32.gmra.mxu0 %v2079
    %v2670 = vpop.f32.mrf.mxu0
    %v2671 = vadd.f32 0.0, %v2670
    %2672 = vmatmul.f32.gmra.mxu0 %v2094
    %v2673 = vpop.f32.mrf.mxu0
    %v2674 = vadd.f32 0.0, %v2673
    %2675 = vmatmul.f32.gmra.mxu0 %v2109
    %v2676 = vpop.f32.mrf.mxu0
    %v2677 = vadd.f32 0.0, %v2676
    %2678 = vmatmul.f32.gmra.mxu0 %v2124
    %v2679 = vpop.f32.mrf.mxu0
    %v2680 = vadd.f32 0.0, %v2679
    %2681 = vmatmul.f32.gmra.mxu0 %v2139
    %v2682 = vpop.f32.mrf.mxu0
    %v2683 = vadd.f32 0.0, %v2682
    %2684 = vmatmul.f32.gmra.mxu0 %v2154
    %v2685 = vpop.f32.mrf.mxu0
    %v2686 = vadd.f32 0.0, %v2685
    %2687 = vmatmul.f32.gmra.mxu0 %v2169
    %v2688 = vpop.f32.mrf.mxu0
    %v2689 = vadd.f32 0.0, %v2688
    %2690 = vmatmul.f32.gmra.mxu0 %v2184
    %v2691 = vpop.f32.mrf.mxu0
    %v2692 = vadd.f32 0.0, %v2691
    %2693 = vmatmul.f32.gmra.mxu0 %v2199
    %v2694 = vpop.f32.mrf.mxu0
    %v2695 = vadd.f32 0.0, %v2694
    %2696 = vmatmul.f32.gmra.mxu0 %v2214
    %v2697 = vpop.f32.mrf.mxu0
    %v2698 = vadd.f32 0.0, %v2697
    %2699 = vmatmul.f32.gmra.mxu0 %v2229
    %v2700 = vpop.f32.mrf.mxu0
    %v2701 = vadd.f32 0.0, %v2700
    %2702 = vmatmul.f32.gmra.mxu0 %v2244
    %v2703 = vpop.f32.mrf.mxu0
    %v2704 = vadd.f32 0.0, %v2703
    %2705 = vmatmul.f32.gmra.mxu0 %v2259
    %v2706 = vpop.f32.mrf.mxu0
    %v2707 = vadd.f32 0.0, %v2706
    %2708 = vmatmul.f32.gmra.mxu0 %v2274
    %v2709 = vpop.f32.mrf.mxu0
    %v2710 = vadd.f32 0.0, %v2709
    %2711 = vmatmul.f32.gmra.mxu0 %v2289
    %v2712 = vpop.f32.mrf.mxu0
    %v2713 = vadd.f32 0.0, %v2712
    %2714 = vmatmul.f32.gmra.mxu0 %v2304
    %v2715 = vpop.f32.mrf.mxu0
    %v2716 = vadd.f32 0.0, %v2715
    %2717 = vmatmul.f32.gmra.mxu0 %v2319
    %v2718 = vpop.f32.mrf.mxu0
    %v2719 = vadd.f32 0.0, %v2718
    %2720 = vmatmul.f32.gmra.mxu0 %v2334
    %v2721 = vpop.f32.mrf.mxu0
    %v2722 = vadd.f32 0.0, %v2721
    %2723 = vmatmul.f32.gmra.mxu0 %v2349
    %v2724 = vpop.f32.mrf.mxu0
    %v2725 = vadd.f32 0.0, %v2724
    %2726 = vmatmul.f32.gmra.mxu0 %v2364
    %v2727 = vpop.f32.mrf.mxu0
    %v2728 = vadd.f32 0.0, %v2727
    %2729 = vmatmul.f32.gmra.mxu0 %v2379
    %v2730 = vpop.f32.mrf.mxu0
    %v2731 = vadd.f32 0.0, %v2730
    %2732 = vmatmul.f32.gmra.mxu0 %v2394
    %v2733 = vpop.f32.mrf.mxu0
    %v2734 = vadd.f32 0.0, %v2733
    %2735 = vmatmul.f32.gmra.mxu0 %v2409
    %v2736 = vpop.f32.mrf.mxu0
    %v2737 = vadd.f32 0.0, %v2736
    %2738 = vmatmul.f32.gmra.mxu0 %v2424
    %v2739 = vpop.f32.mrf.mxu0
    %v2740 = vadd.f32 0.0, %v2739
    %2741 = vmatmul.f32.gmra.mxu0 %v2439
    %v2742 = vpop.f32.mrf.mxu0
    %v2743 = vadd.f32 0.0, %v2742
    %2744 = vmatmul.f32.gmra.mxu0 %v2454
    %v2745 = vpop.f32.mrf.mxu0
    %v2746 = vadd.f32 0.0, %v2745
    %2747 = vmatmul.f32.gmra.mxu0 %v2469
    %v2748 = vpop.f32.mrf.mxu0
    %v2749 = vadd.f32 0.0, %v2748
    %2750 = vmatmul.f32.gmra.mxu0 %v2484
    %v2751 = vpop.f32.mrf.mxu0
    %v2752 = vadd.f32 0.0, %v2751
    %2753 = vmatmul.f32.gmra.mxu0 %v2499
    %v2754 = vpop.f32.mrf.mxu0
    %v2755 = vadd.f32 0.0, %v2754
    %2756 = vmatmul.f32.gmra.mxu0 %v2514
    %v2757 = vpop.f32.mrf.mxu0
    %v2758 = vadd.f32 0.0, %v2757
    %2759 = vmatmul.f32.gmra.mxu0 %v2529
    %v2760 = vpop.f32.mrf.mxu0
    %v2761 = vadd.f32 0.0, %v2760
    %2762 = vmatmul.f32.gmra.mxu0 %v2544
    %v2763 = vpop.f32.mrf.mxu0
    %v2764 = vadd.f32 0.0, %v2763
    %2765 = vmatmul.f32.gmra.mxu0 %v2559
    %v2766 = vpop.f32.mrf.mxu0
    %v2767 = vadd.f32 0.0, %v2766
    %2768 = vdwg.mxu0
    %v2769 = vmul.f32 %v2578, %v114
    %v2770 = vmul.f32 %v2581, %v115
    %v2771 = vmul.f32 %v2584, %v116
    %v2772 = vmul.f32 %v2587, %v117
    %v2773 = vmul.f32 %v2590, %v118
    %v2774 = vmul.f32 %v2593, %v119
    %v2775 = vmul.f32 %v2596, %v120
    %v2776 = vmul.f32 %v2599, %v121
    %v2777 = vmul.f32 %v2602, %v122
    %v2778 = vmul.f32 %v2605, %v123
    %v2779 = vmul.f32 %v2608, %v124
    %v2780 = vmul.f32 %v2611, %v125
    %v2781 = vmul.f32 %v2614, %v126
    %v2782 = vmul.f32 %v2617, %v127
    %v2783 = vmul.f32 %v2620, %v128
    %v2784 = vmul.f32 %v2623, %v129
    %v2785 = vmul.f32 %v2626, %v130
    %v2786 = vmul.f32 %v2629, %v131
    %v2787 = vmul.f32 %v2632, %v132
    %v2788 = vmul.f32 %v2635, %v133
    %v2789 = vmul.f32 %v2638, %v134
    %v2790 = vmul.f32 %v2641, %v135
    %v2791 = vmul.f32 %v2644, %v136
    %v2792 = vmul.f32 %v2647, %v137
    %v2793 = vmul.f32 %v2650, %v138
    %v2794 = vmul.f32 %v2653, %v139
    %v2795 = vmul.f32 %v2656, %v140
    %v2796 = vmul.f32 %v2659, %v141
    %v2797 = vmul.f32 %v2662, %v142
    %v2798 = vmul.f32 %v2665, %v143
    %v2799 = vmul.f32 %v2668, %v144
    %v2800 = vmul.f32 %v2671, %v145
    %v2801 = vmul.f32 %v2674, %v146
    %v2802 = vmul.f32 %v2677, %v147
    %v2803 = vmul.f32 %v2680, %v148
    %v2804 = vmul.f32 %v2683, %v149
    %v2805 = vmul.f32 %v2686, %v150
    %v2806 = vmul.f32 %v2689, %v151
    %v2807 = vmul.f32 %v2692, %v152
    %v2808 = vmul.f32 %v2695, %v153
    %v2809 = vmul.f32 %v2698, %v154
    %v2810 = vmul.f32 %v2701, %v155
    %v2811 = vmul.f32 %v2704, %v156
    %v2812 = vmul.f32 %v2707, %v157
    %v2813 = vmul.f32 %v2710, %v158
    %v2814 = vmul.f32 %v2713, %v159
    %v2815 = vmul.f32 %v2716, %v160
    %v2816 = vmul.f32 %v2719, %v161
    %v2817 = vmul.f32 %v2722, %v162
    %v2818 = vmul.f32 %v2725, %v163
    %v2819 = vmul.f32 %v2728, %v164
    %v2820 = vmul.f32 %v2731, %v165
    %v2821 = vmul.f32 %v2734, %v166
    %v2822 = vmul.f32 %v2737, %v167
    %v2823 = vmul.f32 %v2740, %v168
    %v2824 = vmul.f32 %v2743, %v169
    %v2825 = vmul.f32 %v2746, %v170
    %v2826 = vmul.f32 %v2749, %v171
    %v2827 = vmul.f32 %v2752, %v172
    %v2828 = vmul.f32 %v2755, %v173
    %v2829 = vmul.f32 %v2758, %v174
    %v2830 = vmul.f32 %v2761, %v175
    %v2831 = vmul.f32 %v2764, %v176
    %v2832 = vmul.f32 %v2767, %v177
    %v2833 = vadd.f32 %v2769, %v2785
    %v2834 = vadd.f32 %v2770, %v2786
    %v2835 = vadd.f32 %v2771, %v2787
    %v2836 = vadd.f32 %v2772, %v2788
    %v2837 = vadd.f32 %v2773, %v2789
    %v2838 = vadd.f32 %v2774, %v2790
    %v2839 = vadd.f32 %v2775, %v2791
    %v2840 = vadd.f32 %v2776, %v2792
    %v2841 = vadd.f32 %v2777, %v2793
    %v2842 = vadd.f32 %v2778, %v2794
    %v2843 = vadd.f32 %v2779, %v2795
    %v2844 = vadd.f32 %v2780, %v2796
    %v2845 = vadd.f32 %v2781, %v2797
    %v2846 = vadd.f32 %v2782, %v2798
    %v2847 = vadd.f32 %v2783, %v2799
    %v2848 = vadd.f32 %v2784, %v2800
    %v2849 = vadd.f32 %v2833, %v2801
    %v2850 = vadd.f32 %v2834, %v2802
    %v2851 = vadd.f32 %v2835, %v2803
    %v2852 = vadd.f32 %v2836, %v2804
    %v2853 = vadd.f32 %v2837, %v2805
    %v2854 = vadd.f32 %v2838, %v2806
    %v2855 = vadd.f32 %v2839, %v2807
    %v2856 = vadd.f32 %v2840, %v2808
    %v2857 = vadd.f32 %v2841, %v2809
    %v2858 = vadd.f32 %v2842, %v2810
    %v2859 = vadd.f32 %v2843, %v2811
    %v2860 = vadd.f32 %v2844, %v2812
    %v2861 = vadd.f32 %v2845, %v2813
    %v2862 = vadd.f32 %v2846, %v2814
    %v2863 = vadd.f32 %v2847, %v2815
    %v2864 = vadd.f32 %v2848, %v2816
    %v2865 = vadd.f32 %v2849, %v2817
    %v2866 = vadd.f32 %v2850, %v2818
    %v2867 = vadd.f32 %v2851, %v2819
    %v2868 = vadd.f32 %v2852, %v2820
    %v2869 = vadd.f32 %v2853, %v2821
    %v2870 = vadd.f32 %v2854, %v2822
    %v2871 = vadd.f32 %v2855, %v2823
    %v2872 = vadd.f32 %v2856, %v2824
    %v2873 = vadd.f32 %v2857, %v2825
    %v2874 = vadd.f32 %v2858, %v2826
    %v2875 = vadd.f32 %v2859, %v2827
    %v2876 = vadd.f32 %v2860, %v2828
    %v2877 = vadd.f32 %v2861, %v2829
    %v2878 = vadd.f32 %v2862, %v2830
    %v2879 = vadd.f32 %v2863, %v2831
    %v2880 = vadd.f32 %v2864, %v2832
    %v2881 = vld [vmem:[%s8] sm:$0xff]
    %v2882 = vld [vmem:[%s8 + $0x8] sm:$0xff]
    %v2883 = vld [vmem:[%s8 + $0x10] sm:$0xff]
    %v2884 = vld [vmem:[%s8 + $0x18] sm:$0xff]
    %v2885 = vld [vmem:[%s9] sm:$0x1]
    %v2887 = vperm.slane %v2885, 0
    %v2890 = vsel %vm574, %v2865, 0
    %v2893 = vsel %vm574, %v2866, 0
    %v2896 = vsel %vm574, %v2867, 0
    %v2899 = vsel %vm574, %v2868, 0
    %v2902 = vsel %vm574, %v2869, 0
    %v2905 = vsel %vm574, %v2870, 0
    %v2908 = vsel %vm574, %v2871, 0
    %v2911 = vsel %vm574, %v2872, 0
    %v2914 = vsel %vm574, %v2873, 0
    %v2917 = vsel %vm574, %v2874, 0
    %v2920 = vsel %vm574, %v2875, 0
    %v2923 = vsel %vm574, %v2876, 0
    %v2926 = vsel %vm574, %v2877, 0
    %v2929 = vsel %vm574, %v2878, 0
    %v2932 = vsel %vm574, %v2879, 0
    %v2935 = vsel %vm574, %v2880, 0
    %2937 = vmatpush.msra.mxu0 0.0
    %2938 = vmatpush.msra.mxu0 0.0
    %2939 = vmatpush.msra.mxu0 0.0
    %2940 = vmatpush.msra.mxu0 0.0
    %2941 = vmatpush.msra.mxu0 0.0
    %2942 = vmatpush.msra.mxu0 0.0
    %2943 = vmatpush.msra.mxu0 0.0
    %2944 = vmatpush.msra.mxu0 0.0
    %2945 = vmatpush.msra.mxu0 0.0
    %2946 = vmatpush.msra.mxu0 0.0
    %2947 = vmatpush.msra.mxu0 0.0
    %2948 = vmatpush.msra.mxu0 0.0
    %2949 = vmatpush.msra.mxu0 %v2884
    %2950 = vmatpush.msra.mxu0 %v2883
    %2951 = vmatpush.msra.mxu0 %v2882
    %2952 = vmatpush.msra.mxu0 %v2881
    %2953 = vmatmul.f32.gmra.mxu0 %v2890
    %v2954 = vpop.f32.mrf.mxu0
    %v2955 = vadd.f32 %v2887, %v2954
    %2956 = vmatmul.f32.gmra.mxu0 %v2893
    %v2957 = vpop.f32.mrf.mxu0
    %v2958 = vadd.f32 %v2887, %v2957
    %2959 = vmatmul.f32.gmra.mxu0 %v2896
    %v2960 = vpop.f32.mrf.mxu0
    %v2961 = vadd.f32 %v2887, %v2960
    %2962 = vmatmul.f32.gmra.mxu0 %v2899
    %v2963 = vpop.f32.mrf.mxu0
    %v2964 = vadd.f32 %v2887, %v2963
    %2965 = vmatmul.f32.gmra.mxu0 %v2902
    %v2966 = vpop.f32.mrf.mxu0
    %v2967 = vadd.f32 %v2887, %v2966
    %2968 = vmatmul.f32.gmra.mxu0 %v2905
    %v2969 = vpop.f32.mrf.mxu0
    %v2970 = vadd.f32 %v2887, %v2969
    %2971 = vmatmul.f32.gmra.mxu0 %v2908
    %v2972 = vpop.f32.mrf.mxu0
    %v2973 = vadd.f32 %v2887, %v2972
    %2974 = vmatmul.f32.gmra.mxu0 %v2911
    %v2975 = vpop.f32.mrf.mxu0
    %v2976 = vadd.f32 %v2887, %v2975
    %2977 = vmatmul.f32.gmra.mxu0 %v2914
    %v2978 = vpop.f32.mrf.mxu0
    %v2979 = vadd.f32 %v2887, %v2978
    %2980 = vmatmul.f32.gmra.mxu0 %v2917
    %v2981 = vpop.f32.mrf.mxu0
    %v2982 = vadd.f32 %v2887, %v2981
    %2983 = vmatmul.f32.gmra.mxu0 %v2920
    %v2984 = vpop.f32.mrf.mxu0
    %v2985 = vadd.f32 %v2887, %v2984
    %2986 = vmatmul.f32.gmra.mxu0 %v2923
    %v2987 = vpop.f32.mrf.mxu0
    %v2988 = vadd.f32 %v2887, %v2987
    %2989 = vmatmul.f32.gmra.mxu0 %v2926
    %v2990 = vpop.f32.mrf.mxu0
    %v2991 = vadd.f32 %v2887, %v2990
    %2992 = vmatmul.f32.gmra.mxu0 %v2929
    %v2993 = vpop.f32.mrf.mxu0
    %v2994 = vadd.f32 %v2887, %v2993
    %2995 = vmatmul.f32.gmra.mxu0 %v2932
    %v2996 = vpop.f32.mrf.mxu0
    %v2997 = vadd.f32 %v2887, %v2996
    %2998 = vmatmul.f32.gmra.mxu0 %v2935
    %v2999 = vpop.f32.mrf.mxu0
    %v3000 = vadd.f32 %v2887, %v2999
    %3001 = vdwg.mxu0
    %v3002 = vld [vmem:[%s10] sm:$0xff]
    %v3003 = vld [vmem:[%s10 + $0x8] sm:$0xff]
    %v3004 = vld [vmem:[%s10 + $0x10] sm:$0xff]
    %v3005 = vld [vmem:[%s10 + $0x18] sm:$0xff]
    %v3006 = vld [vmem:[%s10 + $0x20] sm:$0xff]
    %v3007 = vld [vmem:[%s10 + $0x28] sm:$0xff]
    %v3008 = vld [vmem:[%s10 + $0x30] sm:$0xff]
    %v3009 = vld [vmem:[%s10 + $0x38] sm:$0xff]
    %3010 = vmatpush.msra.mxu0 0.0
    %3011 = vmatpush.msra.mxu0 0.0
    %3012 = vmatpush.msra.mxu0 0.0
    %3013 = vmatpush.msra.mxu0 0.0
    %3014 = vmatpush.msra.mxu0 0.0
    %3015 = vmatpush.msra.mxu0 0.0
    %3016 = vmatpush.msra.mxu0 0.0
    %3017 = vmatpush.msra.mxu0 0.0
    %3018 = vmatpush.msra.mxu0 %v3009
    %3019 = vmatpush.msra.mxu0 %v3008
    %3020 = vmatpush.msra.mxu0 %v3007
    %3021 = vmatpush.msra.mxu0 %v3006
    %3022 = vmatpush.msra.mxu0 %v3005
    %3023 = vmatpush.msra.mxu0 %v3004
    %3024 = vmatpush.msra.mxu0 %v3003
    %3025 = vmatpush.msra.mxu0 %v3002
    %3026 = vmatmul.f32.gmra.mxu0 %v188
    %v3027 = vpop.f32.mrf.mxu0
    %v3028 = vadd.f32 0.0, %v3027
    %3029 = vmatmul.f32.gmra.mxu0 %v191
    %v3030 = vpop.f32.mrf.mxu0
    %v3031 = vadd.f32 0.0, %v3030
    %3032 = vmatmul.f32.gmra.mxu0 %v194
    %v3033 = vpop.f32.mrf.mxu0
    %v3034 = vadd.f32 0.0, %v3033
    %3035 = vmatmul.f32.gmra.mxu0 %v197
    %v3036 = vpop.f32.mrf.mxu0
    %v3037 = vadd.f32 0.0, %v3036
    %3038 = vmatmul.f32.gmra.mxu0 %v200
    %v3039 = vpop.f32.mrf.mxu0
    %v3040 = vadd.f32 0.0, %v3039
    %3041 = vmatmul.f32.gmra.mxu0 %v203
    %v3042 = vpop.f32.mrf.mxu0
    %v3043 = vadd.f32 0.0, %v3042
    %3044 = vmatmul.f32.gmra.mxu0 %v206
    %v3045 = vpop.f32.mrf.mxu0
    %v3046 = vadd.f32 0.0, %v3045
    %3047 = vmatmul.f32.gmra.mxu0 %v209
    %v3048 = vpop.f32.mrf.mxu0
    %v3049 = vadd.f32 0.0, %v3048
    %3050 = vmatmul.f32.gmra.mxu0 %v212
    %v3051 = vpop.f32.mrf.mxu0
    %v3052 = vadd.f32 0.0, %v3051
    %3053 = vmatmul.f32.gmra.mxu0 %v215
    %v3054 = vpop.f32.mrf.mxu0
    %v3055 = vadd.f32 0.0, %v3054
    %3056 = vmatmul.f32.gmra.mxu0 %v218
    %v3057 = vpop.f32.mrf.mxu0
    %v3058 = vadd.f32 0.0, %v3057
    %3059 = vmatmul.f32.gmra.mxu0 %v221
    %v3060 = vpop.f32.mrf.mxu0
    %v3061 = vadd.f32 0.0, %v3060
    %3062 = vmatmul.f32.gmra.mxu0 %v224
    %v3063 = vpop.f32.mrf.mxu0
    %v3064 = vadd.f32 0.0, %v3063
    %3065 = vmatmul.f32.gmra.mxu0 %v227
    %v3066 = vpop.f32.mrf.mxu0
    %v3067 = vadd.f32 0.0, %v3066
    %3068 = vmatmul.f32.gmra.mxu0 %v230
    %v3069 = vpop.f32.mrf.mxu0
    %v3070 = vadd.f32 0.0, %v3069
    %3071 = vmatmul.f32.gmra.mxu0 %v233
    %v3072 = vpop.f32.mrf.mxu0
    %v3073 = vadd.f32 0.0, %v3072
    %3074 = vdwg.mxu0
    %v3075 = vld [vmem:[%s4] sm:$0xff]
    %v3076 = vld [vmem:[%s4 + $0x8] sm:$0xff]
    %v3077 = vld [vmem:[%s4 + $0x10] sm:$0xff]
    %v3078 = vld [vmem:[%s4 + $0x18] sm:$0xff]
    %3079 = vmatpush.msra.mxu0 %v113
    %3080 = vmatpush.msra.mxu0 %v112
    %3081 = vmatpush.msra.mxu0 %v111
    %3082 = vmatpush.msra.mxu0 %v110
    %3083 = vmatpush.msra.mxu0 %v109
    %3084 = vmatpush.msra.mxu0 %v108
    %3085 = vmatpush.msra.mxu0 %v107
    %3086 = vmatpush.msra.mxu0 %v106
    %3087 = vmatpush.msra.mxu0 %v105
    %3088 = vmatpush.msra.mxu0 %v104
    %3089 = vmatpush.msra.mxu0 %v103
    %3090 = vmatpush.msra.mxu0 %v102
    %3091 = vmatpush.msra.mxu0 %v101
    %3092 = vmatpush.msra.mxu0 %v100
    %3093 = vmatpush.msra.mxu0 %v99
    %3094 = vmatpush.msra.mxu0 %v98
    %3095 = vmatmul.f32.gmra.mxu0 %v3075
    %v3096 = vpop.f32.mrf.mxu0
    %v3097 = vadd.f32 0.0, %v3096
    %3098 = vmatmul.f32.gmra.mxu0 %v3076
    %v3099 = vpop.f32.mrf.mxu0
    %v3100 = vadd.f32 0.0, %v3099
    %3101 = vmatmul.f32.gmra.mxu0 %v3077
    %v3102 = vpop.f32.mrf.mxu0
    %v3103 = vadd.f32 0.0, %v3102
    %3104 = vmatmul.f32.gmra.mxu0 %v3078
    %v3105 = vpop.f32.mrf.mxu0
    %v3106 = vadd.f32 0.0, %v3105
    %3107 = vdwg.mxu0
    %v3108 = vld [vmem:[%s11] sm:$0xff]
    %v3109 = vld [vmem:[%s11 + $0x8] sm:$0xff]
    %v3110 = vld [vmem:[%s11 + $0x10] sm:$0xff]
    %v3111 = vld [vmem:[%s11 + $0x18] sm:$0xff]
    %v3112 = vld [vmem:[%s11 + $0x20] sm:$0xff]
    %v3113 = vld [vmem:[%s11 + $0x28] sm:$0xff]
    %v3114 = vld [vmem:[%s11 + $0x30] sm:$0xff]
    %v3115 = vld [vmem:[%s11 + $0x38] sm:$0xff]
    %v3117 = vsel %vm186, %v3097, 0
    %v3120 = vsel %vm186, %v3100, 0
    %v3123 = vsel %vm186, %v3103, 0
    %v3126 = vsel %vm186, %v3106, 0
    %3128 = vmatpush.msra.mxu0 0.0
    %3129 = vmatpush.msra.mxu0 0.0
    %3130 = vmatpush.msra.mxu0 0.0
    %3131 = vmatpush.msra.mxu0 0.0
    %3132 = vmatpush.msra.mxu0 0.0
    %3133 = vmatpush.msra.mxu0 0.0
    %3134 = vmatpush.msra.mxu0 0.0
    %3135 = vmatpush.msra.mxu0 0.0
    %3136 = vmatpush.msra.mxu0 %v3115
    %3137 = vmatpush.msra.mxu0 %v3114
    %3138 = vmatpush.msra.mxu0 %v3113
    %3139 = vmatpush.msra.mxu0 %v3112
    %3140 = vmatpush.msra.mxu0 %v3111
    %3141 = vmatpush.msra.mxu0 %v3110
    %3142 = vmatpush.msra.mxu0 %v3109
    %3143 = vmatpush.msra.mxu0 %v3108
    %3144 = vmatmul.f32.gmra.mxu0 %v3117
    %v3145 = vpop.f32.mrf.mxu0
    %v3146 = vadd.f32 0.0, %v3145
    %3147 = vmatmul.f32.gmra.mxu0 %v3120
    %v3148 = vpop.f32.mrf.mxu0
    %v3149 = vadd.f32 0.0, %v3148
    %3150 = vmatmul.f32.gmra.mxu0 %v3123
    %v3151 = vpop.f32.mrf.mxu0
    %v3152 = vadd.f32 0.0, %v3151
    %3153 = vmatmul.f32.gmra.mxu0 %v3126
    %v3154 = vpop.f32.mrf.mxu0
    %v3155 = vadd.f32 0.0, %v3154
    %3156 = vdwg.mxu0
    %v3157 = vld [vmem:[%s12] sm:$0xff]
    %v3158 = vld [vmem:[%s12 + $0x8] sm:$0xff]
    %v3159 = vld [vmem:[%s12 + $0x10] sm:$0xff]
    %v3160 = vld [vmem:[%s12 + $0x18] sm:$0xff]
    %v3161 = vld [vmem:[%s12 + $0x20] sm:$0xff]
    %v3162 = vld [vmem:[%s12 + $0x28] sm:$0xff]
    %v3163 = vld [vmem:[%s12 + $0x30] sm:$0xff]
    %v3164 = vld [vmem:[%s12 + $0x38] sm:$0xff]
    %3165 = vmatpush.msra.mxu0 0.0
    %3166 = vmatpush.msra.mxu0 0.0
    %3167 = vmatpush.msra.mxu0 0.0
    %3168 = vmatpush.msra.mxu0 0.0
    %3169 = vmatpush.msra.mxu0 0.0
    %3170 = vmatpush.msra.mxu0 0.0
    %3171 = vmatpush.msra.mxu0 0.0
    %3172 = vmatpush.msra.mxu0 0.0
    %3173 = vmatpush.msra.mxu0 %v3164
    %3174 = vmatpush.msra.mxu0 %v3163
    %3175 = vmatpush.msra.mxu0 %v3162
    %3176 = vmatpush.msra.mxu0 %v3161
    %3177 = vmatpush.msra.mxu0 %v3160
    %3178 = vmatpush.msra.mxu0 %v3159
    %3179 = vmatpush.msra.mxu0 %v3158
    %3180 = vmatpush.msra.mxu0 %v3157
    %3181 = vmatmul.f32.gmra.mxu0 %v3117
    %v3182 = vpop.f32.mrf.mxu0
    %v3183 = vadd.f32 0.0, %v3182
    %3184 = vmatmul.f32.gmra.mxu0 %v3120
    %v3185 = vpop.f32.mrf.mxu0
    %v3186 = vadd.f32 0.0, %v3185
    %3187 = vmatmul.f32.gmra.mxu0 %v3123
    %v3188 = vpop.f32.mrf.mxu0
    %v3189 = vadd.f32 0.0, %v3188
    %3190 = vmatmul.f32.gmra.mxu0 %v3126
    %v3191 = vpop.f32.mrf.mxu0
    %v3192 = vadd.f32 0.0, %v3191
    %3193 = vdwg.mxu0
    %v3194 = vld [vmem:[#allocation7] sm:$0xff]
    %v3195 = vld [vmem:[#allocation7 + $0x8] sm:$0xff]
    %v3196 = vld [vmem:[#allocation7 + $0x10] sm:$0xff]
    %v3197 = vld [vmem:[#allocation7 + $0x18] sm:$0xff]
    %v3198 = vld [vmem:[#allocation7 + $0x20] sm:$0xff]
    %v3199 = vld [vmem:[#allocation7 + $0x28] sm:$0xff]
    %v3200 = vld [vmem:[#allocation7 + $0x30] sm:$0xff]
    %v3201 = vld [vmem:[#allocation7 + $0x38] sm:$0xff]
    %v3202 = vld [vmem:[#allocation7 + $0x40] sm:$0xff]
    %v3203 = vld [vmem:[#allocation7 + $0x48] sm:$0xff]
    %v3204 = vld [vmem:[#allocation7 + $0x50] sm:$0xff]
    %v3205 = vld [vmem:[#allocation7 + $0x58] sm:$0xff]
    %v3206 = vld [vmem:[#allocation7 + $0x60] sm:$0xff]
    %v3207 = vld [vmem:[#allocation7 + $0x68] sm:$0xff]
    %v3208 = vld [vmem:[#allocation7 + $0x70] sm:$0xff]
    %v3209 = vld [vmem:[#allocation7 + $0x78] sm:$0xff]
    %v3210 = vld [vmem:[#allocation7 + $0x80] sm:$0xff]
    %v3211 = vld [vmem:[#allocation7 + $0x88] sm:$0xff]
    %v3212 = vld [vmem:[#allocation7 + $0x90] sm:$0xff]
    %v3213 = vld [vmem:[#allocation7 + $0x98] sm:$0xff]
    %v3214 = vld [vmem:[#allocation7 + $0xa0] sm:$0xff]
    %v3215 = vld [vmem:[#allocation7 + $0xa8] sm:$0xff]
    %v3216 = vld [vmem:[#allocation7 + $0xb0] sm:$0xff]
    %v3217 = vld [vmem:[#allocation7 + $0xb8] sm:$0xff]
    %v3218 = vld [vmem:[#allocation7 + $0xc0] sm:$0xff]
    %v3219 = vld [vmem:[#allocation7 + $0xc8] sm:$0xff]
    %v3220 = vld [vmem:[#allocation7 + $0xd0] sm:$0xff]
    %v3221 = vld [vmem:[#allocation7 + $0xd8] sm:$0xff]
    %v3222 = vld [vmem:[#allocation7 + $0xe0] sm:$0xff]
    %v3223 = vld [vmem:[#allocation7 + $0xe8] sm:$0xff]
    %v3224 = vld [vmem:[#allocation7 + $0xf0] sm:$0xff]
    %v3225 = vld [vmem:[#allocation7 + $0xf8] sm:$0xff]
    %v3226 = vld [vmem:[#allocation7 + $0x100] sm:$0xff]
    %v3227 = vld [vmem:[#allocation7 + $0x108] sm:$0xff]
    %v3228 = vld [vmem:[#allocation7 + $0x110] sm:$0xff]
    %v3229 = vld [vmem:[#allocation7 + $0x118] sm:$0xff]
    %v3230 = vld [vmem:[#allocation7 + $0x120] sm:$0xff]
    %v3231 = vld [vmem:[#allocation7 + $0x128] sm:$0xff]
    %v3232 = vld [vmem:[#allocation7 + $0x130] sm:$0xff]
    %v3233 = vld [vmem:[#allocation7 + $0x138] sm:$0xff]
    %v3234 = vld [vmem:[#allocation7 + $0x140] sm:$0xff]
    %v3235 = vld [vmem:[#allocation7 + $0x148] sm:$0xff]
    %v3236 = vld [vmem:[#allocation7 + $0x150] sm:$0xff]
    %v3237 = vld [vmem:[#allocation7 + $0x158] sm:$0xff]
    %v3238 = vld [vmem:[#allocation7 + $0x160] sm:$0xff]
    %v3239 = vld [vmem:[#allocation7 + $0x168] sm:$0xff]
    %v3240 = vld [vmem:[#allocation7 + $0x170] sm:$0xff]
    %v3241 = vld [vmem:[#allocation7 + $0x178] sm:$0xff]
    %v3242 = vld [vmem:[#allocation7 + $0x180] sm:$0xff]
    %v3243 = vld [vmem:[#allocation7 + $0x188] sm:$0xff]
    %v3244 = vld [vmem:[#allocation7 + $0x190] sm:$0xff]
    %v3245 = vld [vmem:[#allocation7 + $0x198] sm:$0xff]
    %v3246 = vld [vmem:[#allocation7 + $0x1a0] sm:$0xff]
    %v3247 = vld [vmem:[#allocation7 + $0x1a8] sm:$0xff]
    %v3248 = vld [vmem:[#allocation7 + $0x1b0] sm:$0xff]
    %v3249 = vld [vmem:[#allocation7 + $0x1b8] sm:$0xff]
    %v3250 = vld [vmem:[#allocation7 + $0x1c0] sm:$0xff]
    %v3251 = vld [vmem:[#allocation7 + $0x1c8] sm:$0xff]
    %v3252 = vld [vmem:[#allocation7 + $0x1d0] sm:$0xff]
    %v3253 = vld [vmem:[#allocation7 + $0x1d8] sm:$0xff]
    %v3254 = vld [vmem:[#allocation7 + $0x1e0] sm:$0xff]
    %v3255 = vld [vmem:[#allocation7 + $0x1e8] sm:$0xff]
    %v3256 = vld [vmem:[#allocation7 + $0x1f0] sm:$0xff]
    %v3257 = vld [vmem:[#allocation7 + $0x1f8] sm:$0xff]
    %v3258 = vmul.f32 %v3028, %v114
    %v3259 = vmul.f32 %v3031, %v115
    %v3260 = vmul.f32 %v3034, %v116
    %v3261 = vmul.f32 %v3037, %v117
    %v3262 = vmul.f32 %v3040, %v118
    %v3263 = vmul.f32 %v3043, %v119
    %v3264 = vmul.f32 %v3046, %v120
    %v3265 = vmul.f32 %v3049, %v121
    %v3266 = vmul.f32 %v3052, %v122
    %v3267 = vmul.f32 %v3055, %v123
    %v3268 = vmul.f32 %v3058, %v124
    %v3269 = vmul.f32 %v3061, %v125
    %v3270 = vmul.f32 %v3064, %v126
    %v3271 = vmul.f32 %v3067, %v127
    %v3272 = vmul.f32 %v3070, %v128
    %v3273 = vmul.f32 %v3073, %v129
    %v3274 = vmul.f32 %v3028, %v130
    %v3275 = vmul.f32 %v3031, %v131
    %v3276 = vmul.f32 %v3034, %v132
    %v3277 = vmul.f32 %v3037, %v133
    %v3278 = vmul.f32 %v3040, %v134
    %v3279 = vmul.f32 %v3043, %v135
    %v3280 = vmul.f32 %v3046, %v136
    %v3281 = vmul.f32 %v3049, %v137
    %v3282 = vmul.f32 %v3052, %v138
    %v3283 = vmul.f32 %v3055, %v139
    %v3284 = vmul.f32 %v3058, %v140
    %v3285 = vmul.f32 %v3061, %v141
    %v3286 = vmul.f32 %v3064, %v142
    %v3287 = vmul.f32 %v3067, %v143
    %v3288 = vmul.f32 %v3070, %v144
    %v3289 = vmul.f32 %v3073, %v145
    %v3290 = vmul.f32 %v3028, %v146
    %v3291 = vmul.f32 %v3031, %v147
    %v3292 = vmul.f32 %v3034, %v148
    %v3293 = vmul.f32 %v3037, %v149
    %v3294 = vmul.f32 %v3040, %v150
    %v3295 = vmul.f32 %v3043, %v151
    %v3296 = vmul.f32 %v3046, %v152
    %v3297 = vmul.f32 %v3049, %v153
    %v3298 = vmul.f32 %v3052, %v154
    %v3299 = vmul.f32 %v3055, %v155
    %v3300 = vmul.f32 %v3058, %v156
    %v3301 = vmul.f32 %v3061, %v157
    %v3302 = vmul.f32 %v3064, %v158
    %v3303 = vmul.f32 %v3067, %v159
    %v3304 = vmul.f32 %v3070, %v160
    %v3305 = vmul.f32 %v3073, %v161
    %v3306 = vmul.f32 %v3028, %v162
    %v3307 = vmul.f32 %v3031, %v163
    %v3308 = vmul.f32 %v3034, %v164
    %v3309 = vmul.f32 %v3037, %v165
    %v3310 = vmul.f32 %v3040, %v166
    %v3311 = vmul.f32 %v3043, %v167
    %v3312 = vmul.f32 %v3046, %v168
    %v3313 = vmul.f32 %v3049, %v169
    %v3314 = vmul.f32 %v3052, %v170
    %v3315 = vmul.f32 %v3055, %v171
    %v3316 = vmul.f32 %v3058, %v172
    %v3317 = vmul.f32 %v3061, %v173
    %v3318 = vmul.f32 %v3064, %v174
    %v3319 = vmul.f32 %v3067, %v175
    %v3320 = vmul.f32 %v3070, %v176
    %v3321 = vmul.f32 %v3073, %v177
    %v3323 = vsel %vm574, %v3258, 0
    %v3326 = vsel %vm574, %v3259, 0
    %v3329 = vsel %vm574, %v3260, 0
    %v3332 = vsel %vm574, %v3261, 0
    %v3335 = vsel %vm574, %v3262, 0
    %v3338 = vsel %vm574, %v3263, 0
    %v3341 = vsel %vm574, %v3264, 0
    %v3344 = vsel %vm574, %v3265, 0
    %v3347 = vsel %vm574, %v3266, 0
    %v3350 = vsel %vm574, %v3267, 0
    %v3353 = vsel %vm574, %v3268, 0
    %v3356 = vsel %vm574, %v3269, 0
    %v3359 = vsel %vm574, %v3270, 0
    %v3362 = vsel %vm574, %v3271, 0
    %v3365 = vsel %vm574, %v3272, 0
    %v3368 = vsel %vm574, %v3273, 0
    %v3371 = vsel %vm574, %v3274, 0
    %v3374 = vsel %vm574, %v3275, 0
    %v3377 = vsel %vm574, %v3276, 0
    %v3380 = vsel %vm574, %v3277, 0
    %v3383 = vsel %vm574, %v3278, 0
    %v3386 = vsel %vm574, %v3279, 0
    %v3389 = vsel %vm574, %v3280, 0
    %v3392 = vsel %vm574, %v3281, 0
    %v3395 = vsel %vm574, %v3282, 0
    %v3398 = vsel %vm574, %v3283, 0
    %v3401 = vsel %vm574, %v3284, 0
    %v3404 = vsel %vm574, %v3285, 0
    %v3407 = vsel %vm574, %v3286, 0
    %v3410 = vsel %vm574, %v3287, 0
    %v3413 = vsel %vm574, %v3288, 0
    %v3416 = vsel %vm574, %v3289, 0
    %v3419 = vsel %vm574, %v3290, 0
    %v3422 = vsel %vm574, %v3291, 0
    %v3425 = vsel %vm574, %v3292, 0
    %v3428 = vsel %vm574, %v3293, 0
    %v3431 = vsel %vm574, %v3294, 0
    %v3434 = vsel %vm574, %v3295, 0
    %v3437 = vsel %vm574, %v3296, 0
    %v3440 = vsel %vm574, %v3297, 0
    %v3443 = vsel %vm574, %v3298, 0
    %v3446 = vsel %vm574, %v3299, 0
    %v3449 = vsel %vm574, %v3300, 0
    %v3452 = vsel %vm574, %v3301, 0
    %v3455 = vsel %vm574, %v3302, 0
    %v3458 = vsel %vm574, %v3303, 0
    %v3461 = vsel %vm574, %v3304, 0
    %v3464 = vsel %vm574, %v3305, 0
    %v3467 = vsel %vm574, %v3306, 0
    %v3470 = vsel %vm574, %v3307, 0
    %v3473 = vsel %vm574, %v3308, 0
    %v3476 = vsel %vm574, %v3309, 0
    %v3479 = vsel %vm574, %v3310, 0
    %v3482 = vsel %vm574, %v3311, 0
    %v3485 = vsel %vm574, %v3312, 0
    %v3488 = vsel %vm574, %v3313, 0
    %v3491 = vsel %vm574, %v3314, 0
    %v3494 = vsel %vm574, %v3315, 0
    %v3497 = vsel %vm574, %v3316, 0
    %v3500 = vsel %vm574, %v3317, 0
    %v3503 = vsel %vm574, %v3318, 0
    %v3506 = vsel %vm574, %v3319, 0
    %v3509 = vsel %vm574, %v3320, 0
    %v3512 = vsel %vm574, %v3321, 0
    %v3515 = vsel %vm574, %v3146, 0
    %v3518 = vsel %vm574, %v3149, 0
    %v3521 = vsel %vm574, %v3152, 0
    %v3524 = vsel %vm574, %v3155, 0
    %3526 = vmatpush.xpose.msra.mxu0 0.0
    %3527 = vmatpush.xpose.msra.mxu0 0.0
    %3528 = vmatpush.xpose.msra.mxu0 0.0
    %3529 = vmatpush.xpose.msra.mxu0 0.0
    %3530 = vmatpush.xpose.msra.mxu0 0.0
    %3531 = vmatpush.xpose.msra.mxu0 0.0
    %3532 = vmatpush.xpose.msra.mxu0 0.0
    %3533 = vmatpush.xpose.msra.mxu0 0.0
    %3534 = vmatpush.xpose.msra.mxu0 0.0
    %3535 = vmatpush.xpose.msra.mxu0 0.0
    %3536 = vmatpush.xpose.msra.mxu0 0.0
    %3537 = vmatpush.xpose.msra.mxu0 0.0
    %3538 = vmatpush.xpose.msra.mxu0 %v3524
    %3539 = vmatpush.xpose.msra.mxu0 %v3521
    %3540 = vmatpush.xpose.msra.mxu0 %v3518
    %3541 = vmatpush.xpose.msra.mxu0 %v3515
    %3542 = vmatmul.f32.gmra.mxu0 %v3323
    %v3543 = vpop.f32.mrf.mxu0
    %v3544 = vadd.f32 0.0, %v3543
    %3545 = vmatmul.f32.gmra.mxu0 %v3326
    %v3546 = vpop.f32.mrf.mxu0
    %v3547 = vadd.f32 0.0, %v3546
    %3548 = vmatmul.f32.gmra.mxu0 %v3329
    %v3549 = vpop.f32.mrf.mxu0
    %v3550 = vadd.f32 0.0, %v3549
    %3551 = vmatmul.f32.gmra.mxu0 %v3332
    %v3552 = vpop.f32.mrf.mxu0
    %v3553 = vadd.f32 0.0, %v3552
    %3554 = vmatmul.f32.gmra.mxu0 %v3335
    %v3555 = vpop.f32.mrf.mxu0
    %v3556 = vadd.f32 0.0, %v3555
    %3557 = vmatmul.f32.gmra.mxu0 %v3338
    %v3558 = vpop.f32.mrf.mxu0
    %v3559 = vadd.f32 0.0, %v3558
    %3560 = vmatmul.f32.gmra.mxu0 %v3341
    %v3561 = vpop.f32.mrf.mxu0
    %v3562 = vadd.f32 0.0, %v3561
    %3563 = vmatmul.f32.gmra.mxu0 %v3344
    %v3564 = vpop.f32.mrf.mxu0
    %v3565 = vadd.f32 0.0, %v3564
    %3566 = vmatmul.f32.gmra.mxu0 %v3347
    %v3567 = vpop.f32.mrf.mxu0
    %v3568 = vadd.f32 0.0, %v3567
    %3569 = vmatmul.f32.gmra.mxu0 %v3350
    %v3570 = vpop.f32.mrf.mxu0
    %v3571 = vadd.f32 0.0, %v3570
    %3572 = vmatmul.f32.gmra.mxu0 %v3353
    %v3573 = vpop.f32.mrf.mxu0
    %v3574 = vadd.f32 0.0, %v3573
    %3575 = vmatmul.f32.gmra.mxu0 %v3356
    %v3576 = vpop.f32.mrf.mxu0
    %v3577 = vadd.f32 0.0, %v3576
    %3578 = vmatmul.f32.gmra.mxu0 %v3359
    %v3579 = vpop.f32.mrf.mxu0
    %v3580 = vadd.f32 0.0, %v3579
    %3581 = vmatmul.f32.gmra.mxu0 %v3362
    %v3582 = vpop.f32.mrf.mxu0
    %v3583 = vadd.f32 0.0, %v3582
    %3584 = vmatmul.f32.gmra.mxu0 %v3365
    %v3585 = vpop.f32.mrf.mxu0
    %v3586 = vadd.f32 0.0, %v3585
    %3587 = vmatmul.f32.gmra.mxu0 %v3368
    %v3588 = vpop.f32.mrf.mxu0
    %v3589 = vadd.f32 0.0, %v3588
    %3590 = vmatmul.f32.gmra.mxu0 %v3371
    %v3591 = vpop.f32.mrf.mxu0
    %v3592 = vadd.f32 0.0, %v3591
    %3593 = vmatmul.f32.gmra.mxu0 %v3374
    %v3594 = vpop.f32.mrf.mxu0
    %v3595 = vadd.f32 0.0, %v3594
    %3596 = vmatmul.f32.gmra.mxu0 %v3377
    %v3597 = vpop.f32.mrf.mxu0
    %v3598 = vadd.f32 0.0, %v3597
    %3599 = vmatmul.f32.gmra.mxu0 %v3380
    %v3600 = vpop.f32.mrf.mxu0
    %v3601 = vadd.f32 0.0, %v3600
    %3602 = vmatmul.f32.gmra.mxu0 %v3383
    %v3603 = vpop.f32.mrf.mxu0
    %v3604 = vadd.f32 0.0, %v3603
    %3605 = vmatmul.f32.gmra.mxu0 %v3386
    %v3606 = vpop.f32.mrf.mxu0
    %v3607 = vadd.f32 0.0, %v3606
    %3608 = vmatmul.f32.gmra.mxu0 %v3389
    %v3609 = vpop.f32.mrf.mxu0
    %v3610 = vadd.f32 0.0, %v3609
    %3611 = vmatmul.f32.gmra.mxu0 %v3392
    %v3612 = vpop.f32.mrf.mxu0
    %v3613 = vadd.f32 0.0, %v3612
    %3614 = vmatmul.f32.gmra.mxu0 %v3395
    %v3615 = vpop.f32.mrf.mxu0
    %v3616 = vadd.f32 0.0, %v3615
    %3617 = vmatmul.f32.gmra.mxu0 %v3398
    %v3618 = vpop.f32.mrf.mxu0
    %v3619 = vadd.f32 0.0, %v3618
    %3620 = vmatmul.f32.gmra.mxu0 %v3401
    %v3621 = vpop.f32.mrf.mxu0
    %v3622 = vadd.f32 0.0, %v3621
    %3623 = vmatmul.f32.gmra.mxu0 %v3404
    %v3624 = vpop.f32.mrf.mxu0
    %v3625 = vadd.f32 0.0, %v3624
    %3626 = vmatmul.f32.gmra.mxu0 %v3407
    %v3627 = vpop.f32.mrf.mxu0
    %v3628 = vadd.f32 0.0, %v3627
    %3629 = vmatmul.f32.gmra.mxu0 %v3410
    %v3630 = vpop.f32.mrf.mxu0
    %v3631 = vadd.f32 0.0, %v3630
    %3632 = vmatmul.f32.gmra.mxu0 %v3413
    %v3633 = vpop.f32.mrf.mxu0
    %v3634 = vadd.f32 0.0, %v3633
    %3635 = vmatmul.f32.gmra.mxu0 %v3416
    %v3636 = vpop.f32.mrf.mxu0
    %v3637 = vadd.f32 0.0, %v3636
    %3638 = vmatmul.f32.gmra.mxu0 %v3419
    %v3639 = vpop.f32.mrf.mxu0
    %v3640 = vadd.f32 0.0, %v3639
    %3641 = vmatmul.f32.gmra.mxu0 %v3422
    %v3642 = vpop.f32.mrf.mxu0
    %v3643 = vadd.f32 0.0, %v3642
    %3644 = vmatmul.f32.gmra.mxu0 %v3425
    %v3645 = vpop.f32.mrf.mxu0
    %v3646 = vadd.f32 0.0, %v3645
    %3647 = vmatmul.f32.gmra.mxu0 %v3428
    %v3648 = vpop.f32.mrf.mxu0
    %v3649 = vadd.f32 0.0, %v3648
    %3650 = vmatmul.f32.gmra.mxu0 %v3431
    %v3651 = vpop.f32.mrf.mxu0
    %v3652 = vadd.f32 0.0, %v3651
    %3653 = vmatmul.f32.gmra.mxu0 %v3434
    %v3654 = vpop.f32.mrf.mxu0
    %v3655 = vadd.f32 0.0, %v3654
    %3656 = vmatmul.f32.gmra.mxu0 %v3437
    %v3657 = vpop.f32.mrf.mxu0
    %v3658 = vadd.f32 0.0, %v3657
    %3659 = vmatmul.f32.gmra.mxu0 %v3440
    %v3660 = vpop.f32.mrf.mxu0
    %v3661 = vadd.f32 0.0, %v3660
    %3662 = vmatmul.f32.gmra.mxu0 %v3443
    %v3663 = vpop.f32.mrf.mxu0
    %v3664 = vadd.f32 0.0, %v3663
    %3665 = vmatmul.f32.gmra.mxu0 %v3446
    %v3666 = vpop.f32.mrf.mxu0
    %v3667 = vadd.f32 0.0, %v3666
    %3668 = vmatmul.f32.gmra.mxu0 %v3449
    %v3669 = vpop.f32.mrf.mxu0
    %v3670 = vadd.f32 0.0, %v3669
    %3671 = vmatmul.f32.gmra.mxu0 %v3452
    %v3672 = vpop.f32.mrf.mxu0
    %v3673 = vadd.f32 0.0, %v3672
    %3674 = vmatmul.f32.gmra.mxu0 %v3455
    %v3675 = vpop.f32.mrf.mxu0
    %v3676 = vadd.f32 0.0, %v3675
    %3677 = vmatmul.f32.gmra.mxu0 %v3458
    %v3678 = vpop.f32.mrf.mxu0
    %v3679 = vadd.f32 0.0, %v3678
    %3680 = vmatmul.f32.gmra.mxu0 %v3461
    %v3681 = vpop.f32.mrf.mxu0
    %v3682 = vadd.f32 0.0, %v3681
    %3683 = vmatmul.f32.gmra.mxu0 %v3464
    %v3684 = vpop.f32.mrf.mxu0
    %v3685 = vadd.f32 0.0, %v3684
    %3686 = vmatmul.f32.gmra.mxu0 %v3467
    %v3687 = vpop.f32.mrf.mxu0
    %v3688 = vadd.f32 0.0, %v3687
    %3689 = vmatmul.f32.gmra.mxu0 %v3470
    %v3690 = vpop.f32.mrf.mxu0
    %v3691 = vadd.f32 0.0, %v3690
    %3692 = vmatmul.f32.gmra.mxu0 %v3473
    %v3693 = vpop.f32.mrf.mxu0
    %v3694 = vadd.f32 0.0, %v3693
    %3695 = vmatmul.f32.gmra.mxu0 %v3476
    %v3696 = vpop.f32.mrf.mxu0
    %v3697 = vadd.f32 0.0, %v3696
    %3698 = vmatmul.f32.gmra.mxu0 %v3479
    %v3699 = vpop.f32.mrf.mxu0
    %v3700 = vadd.f32 0.0, %v3699
    %3701 = vmatmul.f32.gmra.mxu0 %v3482
    %v3702 = vpop.f32.mrf.mxu0
    %v3703 = vadd.f32 0.0, %v3702
    %3704 = vmatmul.f32.gmra.mxu0 %v3485
    %v3705 = vpop.f32.mrf.mxu0
    %v3706 = vadd.f32 0.0, %v3705
    %3707 = vmatmul.f32.gmra.mxu0 %v3488
    %v3708 = vpop.f32.mrf.mxu0
    %v3709 = vadd.f32 0.0, %v3708
    %3710 = vmatmul.f32.gmra.mxu0 %v3491
    %v3711 = vpop.f32.mrf.mxu0
    %v3712 = vadd.f32 0.0, %v3711
    %3713 = vmatmul.f32.gmra.mxu0 %v3494
    %v3714 = vpop.f32.mrf.mxu0
    %v3715 = vadd.f32 0.0, %v3714
    %3716 = vmatmul.f32.gmra.mxu0 %v3497
    %v3717 = vpop.f32.mrf.mxu0
    %v3718 = vadd.f32 0.0, %v3717
    %3719 = vmatmul.f32.gmra.mxu0 %v3500
    %v3720 = vpop.f32.mrf.mxu0
    %v3721 = vadd.f32 0.0, %v3720
    %3722 = vmatmul.f32.gmra.mxu0 %v3503
    %v3723 = vpop.f32.mrf.mxu0
    %v3724 = vadd.f32 0.0, %v3723
    %3725 = vmatmul.f32.gmra.mxu0 %v3506
    %v3726 = vpop.f32.mrf.mxu0
    %v3727 = vadd.f32 0.0, %v3726
    %3728 = vmatmul.f32.gmra.mxu0 %v3509
    %v3729 = vpop.f32.mrf.mxu0
    %v3730 = vadd.f32 0.0, %v3729
    %3731 = vmatmul.f32.gmra.mxu0 %v3512
    %v3732 = vpop.f32.mrf.mxu0
    %v3733 = vadd.f32 0.0, %v3732
    %3734 = vdwg.mxu0
    %v3735 = vmul.f32 %v3544, 0.35355338
    %v3736 = vmul.f32 %v3547, 0.35355338
    %v3737 = vmul.f32 %v3550, 0.35355338
    %v3738 = vmul.f32 %v3553, 0.35355338
    %v3739 = vmul.f32 %v3556, 0.35355338
    %v3740 = vmul.f32 %v3559, 0.35355338
    %v3741 = vmul.f32 %v3562, 0.35355338
    %v3742 = vmul.f32 %v3565, 0.35355338
    %v3743 = vmul.f32 %v3568, 0.35355338
    %v3744 = vmul.f32 %v3571, 0.35355338
    %v3745 = vmul.f32 %v3574, 0.35355338
    %v3746 = vmul.f32 %v3577, 0.35355338
    %v3747 = vmul.f32 %v3580, 0.35355338
    %v3748 = vmul.f32 %v3583, 0.35355338
    %v3749 = vmul.f32 %v3586, 0.35355338
    %v3750 = vmul.f32 %v3589, 0.35355338
    %v3751 = vmul.f32 %v3592, 0.35355338
    %v3752 = vmul.f32 %v3595, 0.35355338
    %v3753 = vmul.f32 %v3598, 0.35355338
    %v3754 = vmul.f32 %v3601, 0.35355338
    %v3755 = vmul.f32 %v3604, 0.35355338
    %v3756 = vmul.f32 %v3607, 0.35355338
    %v3757 = vmul.f32 %v3610, 0.35355338
    %v3758 = vmul.f32 %v3613, 0.35355338
    %v3759 = vmul.f32 %v3616, 0.35355338
    %v3760 = vmul.f32 %v3619, 0.35355338
    %v3761 = vmul.f32 %v3622, 0.35355338
    %v3762 = vmul.f32 %v3625, 0.35355338
    %v3763 = vmul.f32 %v3628, 0.35355338
    %v3764 = vmul.f32 %v3631, 0.35355338
    %v3765 = vmul.f32 %v3634, 0.35355338
    %v3766 = vmul.f32 %v3637, 0.35355338
    %v3767 = vmul.f32 %v3640, 0.35355338
    %v3768 = vmul.f32 %v3643, 0.35355338
    %v3769 = vmul.f32 %v3646, 0.35355338
    %v3770 = vmul.f32 %v3649, 0.35355338
    %v3771 = vmul.f32 %v3652, 0.35355338
    %v3772 = vmul.f32 %v3655, 0.35355338
    %v3773 = vmul.f32 %v3658, 0.35355338
    %v3774 = vmul.f32 %v3661, 0.35355338
    %v3775 = vmul.f32 %v3664, 0.35355338
    %v3776 = vmul.f32 %v3667, 0.35355338
    %v3777 = vmul.f32 %v3670, 0.35355338
    %v3778 = vmul.f32 %v3673, 0.35355338
    %v3779 = vmul.f32 %v3676, 0.35355338
    %v3780 = vmul.f32 %v3679, 0.35355338
    %v3781 = vmul.f32 %v3682, 0.35355338
    %v3782 = vmul.f32 %v3685, 0.35355338
    %v3783 = vmul.f32 %v3688, 0.35355338
    %v3784 = vmul.f32 %v3691, 0.35355338
    %v3785 = vmul.f32 %v3694, 0.35355338
    %v3786 = vmul.f32 %v3697, 0.35355338
    %v3787 = vmul.f32 %v3700, 0.35355338
    %v3788 = vmul.f32 %v3703, 0.35355338
    %v3789 = vmul.f32 %v3706, 0.35355338
    %v3790 = vmul.f32 %v3709, 0.35355338
    %v3791 = vmul.f32 %v3712, 0.35355338
    %v3792 = vmul.f32 %v3715, 0.35355338
    %v3793 = vmul.f32 %v3718, 0.35355338
    %v3794 = vmul.f32 %v3721, 0.35355338
    %v3795 = vmul.f32 %v3724, 0.35355338
    %v3796 = vmul.f32 %v3727, 0.35355338
    %v3797 = vmul.f32 %v3730, 0.35355338
    %v3798 = vmul.f32 %v3733, 0.35355338
    %v3799 = vadd.f32 %v3735, %v3194
    %v3800 = vadd.f32 %v3736, %v3195
    %v3801 = vadd.f32 %v3737, %v3196
    %v3802 = vadd.f32 %v3738, %v3197
    %v3803 = vadd.f32 %v3739, %v3198
    %v3804 = vadd.f32 %v3740, %v3199
    %v3805 = vadd.f32 %v3741, %v3200
    %v3806 = vadd.f32 %v3742, %v3201
    %v3807 = vadd.f32 %v3743, %v3202
    %v3808 = vadd.f32 %v3744, %v3203
    %v3809 = vadd.f32 %v3745, %v3204
    %v3810 = vadd.f32 %v3746, %v3205
    %v3811 = vadd.f32 %v3747, %v3206
    %v3812 = vadd.f32 %v3748, %v3207
    %v3813 = vadd.f32 %v3749, %v3208
    %v3814 = vadd.f32 %v3750, %v3209
    %v3815 = vadd.f32 %v3751, %v3210
    %v3816 = vadd.f32 %v3752, %v3211
    %v3817 = vadd.f32 %v3753, %v3212
    %v3818 = vadd.f32 %v3754, %v3213
    %v3819 = vadd.f32 %v3755, %v3214
    %v3820 = vadd.f32 %v3756, %v3215
    %v3821 = vadd.f32 %v3757, %v3216
    %v3822 = vadd.f32 %v3758, %v3217
    %v3823 = vadd.f32 %v3759, %v3218
    %v3824 = vadd.f32 %v3760, %v3219
    %v3825 = vadd.f32 %v3761, %v3220
    %v3826 = vadd.f32 %v3762, %v3221
    %v3827 = vadd.f32 %v3763, %v3222
    %v3828 = vadd.f32 %v3764, %v3223
    %v3829 = vadd.f32 %v3765, %v3224
    %v3830 = vadd.f32 %v3766, %v3225
    %v3831 = vadd.f32 %v3767, %v3226
    %v3832 = vadd.f32 %v3768, %v3227
    %v3833 = vadd.f32 %v3769, %v3228
    %v3834 = vadd.f32 %v3770, %v3229
    %v3835 = vadd.f32 %v3771, %v3230
    %v3836 = vadd.f32 %v3772, %v3231
    %v3837 = vadd.f32 %v3773, %v3232
    %v3838 = vadd.f32 %v3774, %v3233
    %v3839 = vadd.f32 %v3775, %v3234
    %v3840 = vadd.f32 %v3776, %v3235
    %v3841 = vadd.f32 %v3777, %v3236
    %v3842 = vadd.f32 %v3778, %v3237
    %v3843 = vadd.f32 %v3779, %v3238
    %v3844 = vadd.f32 %v3780, %v3239
    %v3845 = vadd.f32 %v3781, %v3240
    %v3846 = vadd.f32 %v3782, %v3241
    %v3847 = vadd.f32 %v3783, %v3242
    %v3848 = vadd.f32 %v3784, %v3243
    %v3849 = vadd.f32 %v3785, %v3244
    %v3850 = vadd.f32 %v3786, %v3245
    %v3851 = vadd.f32 %v3787, %v3246
    %v3852 = vadd.f32 %v3788, %v3247
    %v3853 = vadd.f32 %v3789, %v3248
    %v3854 = vadd.f32 %v3790, %v3249
    %v3855 = vadd.f32 %v3791, %v3250
    %v3856 = vadd.f32 %v3792, %v3251
    %v3857 = vadd.f32 %v3793, %v3252
    %v3858 = vadd.f32 %v3794, %v3253
    %v3859 = vadd.f32 %v3795, %v3254
    %v3860 = vadd.f32 %v3796, %v3255
    %v3861 = vadd.f32 %v3797, %v3256
    %v3862 = vadd.f32 %v3798, %v3257
    %v3863 = vsel %vm574, %v3799, -inf
    %3864 = vmax.xlane.f32.xlu0 %v3863
    %v3865 = vpop.xlane.xlu0 %3864
    %v3866 = vsel %vm574, %v3800, -inf
    %3867 = vmax.xlane.f32.xlu0 %v3866
    %v3868 = vpop.xlane.xlu0 %3867
    %v3869 = vsel %vm574, %v3801, -inf
    %3870 = vmax.xlane.f32.xlu0 %v3869
    %v3871 = vpop.xlane.xlu0 %3870
    %v3872 = vsel %vm574, %v3802, -inf
    %3873 = vmax.xlane.f32.xlu0 %v3872
    %v3874 = vpop.xlane.xlu0 %3873
    %v3875 = vsel %vm574, %v3803, -inf
    %3876 = vmax.xlane.f32.xlu0 %v3875
    %v3877 = vpop.xlane.xlu0 %3876
    %v3878 = vsel %vm574, %v3804, -inf
    %3879 = vmax.xlane.f32.xlu0 %v3878
    %v3880 = vpop.xlane.xlu0 %3879
    %v3881 = vsel %vm574, %v3805, -inf
    %3882 = vmax.xlane.f32.xlu0 %v3881
    %v3883 = vpop.xlane.xlu0 %3882
    %v3884 = vsel %vm574, %v3806, -inf
    %3885 = vmax.xlane.f32.xlu0 %v3884
    %v3886 = vpop.xlane.xlu0 %3885
    %v3887 = vsel %vm574, %v3807, -inf
    %3888 = vmax.xlane.f32.xlu0 %v3887
    %v3889 = vpop.xlane.xlu0 %3888
    %v3890 = vsel %vm574, %v3808, -inf
    %3891 = vmax.xlane.f32.xlu0 %v3890
    %v3892 = vpop.xlane.xlu0 %3891
    %v3893 = vsel %vm574, %v3809, -inf
    %3894 = vmax.xlane.f32.xlu0 %v3893
    %v3895 = vpop.xlane.xlu0 %3894
    %v3896 = vsel %vm574, %v3810, -inf
    %3897 = vmax.xlane.f32.xlu0 %v3896
    %v3898 = vpop.xlane.xlu0 %3897
    %v3899 = vsel %vm574, %v3811, -inf
    %3900 = vmax.xlane.f32.xlu0 %v3899
    %v3901 = vpop.xlane.xlu0 %3900
    %v3902 = vsel %vm574, %v3812, -inf
    %3903 = vmax.xlane.f32.xlu0 %v3902
    %v3904 = vpop.xlane.xlu0 %3903
    %v3905 = vsel %vm574, %v3813, -inf
    %3906 = vmax.xlane.f32.xlu0 %v3905
    %v3907 = vpop.xlane.xlu0 %3906
    %v3908 = vsel %vm574, %v3814, -inf
    %3909 = vmax.xlane.f32.xlu0 %v3908
    %v3910 = vpop.xlane.xlu0 %3909
    %v3911 = vsel %vm574, %v3815, -inf
    %3912 = vmax.xlane.f32.xlu0 %v3911
    %v3913 = vpop.xlane.xlu0 %3912
    %v3914 = vsel %vm574, %v3816, -inf
    %3915 = vmax.xlane.f32.xlu0 %v3914
    %v3916 = vpop.xlane.xlu0 %3915
    %v3917 = vsel %vm574, %v3817, -inf
    %3918 = vmax.xlane.f32.xlu0 %v3917
    %v3919 = vpop.xlane.xlu0 %3918
    %v3920 = vsel %vm574, %v3818, -inf
    %3921 = vmax.xlane.f32.xlu0 %v3920
    %v3922 = vpop.xlane.xlu0 %3921
    %v3923 = vsel %vm574, %v3819, -inf
    %3924 = vmax.xlane.f32.xlu0 %v3923
    %v3925 = vpop.xlane.xlu0 %3924
    %v3926 = vsel %vm574, %v3820, -inf
    %3927 = vmax.xlane.f32.xlu0 %v3926
    %v3928 = vpop.xlane.xlu0 %3927
    %v3929 = vsel %vm574, %v3821, -inf
    %3930 = vmax.xlane.f32.xlu0 %v3929
    %v3931 = vpop.xlane.xlu0 %3930
    %v3932 = vsel %vm574, %v3822, -inf
    %3933 = vmax.xlane.f32.xlu0 %v3932
    %v3934 = vpop.xlane.xlu0 %3933
    %v3935 = vsel %vm574, %v3823, -inf
    %3936 = vmax.xlane.f32.xlu0 %v3935
    %v3937 = vpop.xlane.xlu0 %3936
    %v3938 = vsel %vm574, %v3824, -inf
    %3939 = vmax.xlane.f32.xlu0 %v3938
    %v3940 = vpop.xlane.xlu0 %3939
    %v3941 = vsel %vm574, %v3825, -inf
    %3942 = vmax.xlane.f32.xlu0 %v3941
    %v3943 = vpop.xlane.xlu0 %3942
    %v3944 = vsel %vm574, %v3826, -inf
    %3945 = vmax.xlane.f32.xlu0 %v3944
    %v3946 = vpop.xlane.xlu0 %3945
    %v3947 = vsel %vm574, %v3827, -inf
    %3948 = vmax.xlane.f32.xlu0 %v3947
    %v3949 = vpop.xlane.xlu0 %3948
    %v3950 = vsel %vm574, %v3828, -inf
    %3951 = vmax.xlane.f32.xlu0 %v3950
    %v3952 = vpop.xlane.xlu0 %3951
    %v3953 = vsel %vm574, %v3829, -inf
    %3954 = vmax.xlane.f32.xlu0 %v3953
    %v3955 = vpop.xlane.xlu0 %3954
    %v3956 = vsel %vm574, %v3830, -inf
    %3957 = vmax.xlane.f32.xlu0 %v3956
    %v3958 = vpop.xlane.xlu0 %3957
    %v3959 = vsel %vm574, %v3831, -inf
    %3960 = vmax.xlane.f32.xlu0 %v3959
    %v3961 = vpop.xlane.xlu0 %3960
    %v3962 = vsel %vm574, %v3832, -inf
    %3963 = vmax.xlane.f32.xlu0 %v3962
    %v3964 = vpop.xlane.xlu0 %3963
    %v3965 = vsel %vm574, %v3833, -inf
    %3966 = vmax.xlane.f32.xlu0 %v3965
    %v3967 = vpop.xlane.xlu0 %3966
    %v3968 = vsel %vm574, %v3834, -inf
    %3969 = vmax.xlane.f32.xlu0 %v3968
    %v3970 = vpop.xlane.xlu0 %3969
    %v3971 = vsel %vm574, %v3835, -inf
    %3972 = vmax.xlane.f32.xlu0 %v3971
    %v3973 = vpop.xlane.xlu0 %3972
    %v3974 = vsel %vm574, %v3836, -inf
    %3975 = vmax.xlane.f32.xlu0 %v3974
    %v3976 = vpop.xlane.xlu0 %3975
    %v3977 = vsel %vm574, %v3837, -inf
    %3978 = vmax.xlane.f32.xlu0 %v3977
    %v3979 = vpop.xlane.xlu0 %3978
    %v3980 = vsel %vm574, %v3838, -inf
    %3981 = vmax.xlane.f32.xlu0 %v3980
    %v3982 = vpop.xlane.xlu0 %3981
    %v3983 = vsel %vm574, %v3839, -inf
    %3984 = vmax.xlane.f32.xlu0 %v3983
    %v3985 = vpop.xlane.xlu0 %3984
    %v3986 = vsel %vm574, %v3840, -inf
    %3987 = vmax.xlane.f32.xlu0 %v3986
    %v3988 = vpop.xlane.xlu0 %3987
    %v3989 = vsel %vm574, %v3841, -inf
    %3990 = vmax.xlane.f32.xlu0 %v3989
    %v3991 = vpop.xlane.xlu0 %3990
    %v3992 = vsel %vm574, %v3842, -inf
    %3993 = vmax.xlane.f32.xlu0 %v3992
    %v3994 = vpop.xlane.xlu0 %3993
    %v3995 = vsel %vm574, %v3843, -inf
    %3996 = vmax.xlane.f32.xlu0 %v3995
    %v3997 = vpop.xlane.xlu0 %3996
    %v3998 = vsel %vm574, %v3844, -inf
    %3999 = vmax.xlane.f32.xlu0 %v3998
    %v4000 = vpop.xlane.xlu0 %3999
    %v4001 = vsel %vm574, %v3845, -inf
    %4002 = vmax.xlane.f32.xlu0 %v4001
    %v4003 = vpop.xlane.xlu0 %4002
    %v4004 = vsel %vm574, %v3846, -inf
    %4005 = vmax.xlane.f32.xlu0 %v4004
    %v4006 = vpop.xlane.xlu0 %4005
    %v4007 = vsel %vm574, %v3847, -inf
    %4008 = vmax.xlane.f32.xlu0 %v4007
    %v4009 = vpop.xlane.xlu0 %4008
    %v4010 = vsel %vm574, %v3848, -inf
    %4011 = vmax.xlane.f32.xlu0 %v4010
    %v4012 = vpop.xlane.xlu0 %4011
    %v4013 = vsel %vm574, %v3849, -inf
    %4014 = vmax.xlane.f32.xlu0 %v4013
    %v4015 = vpop.xlane.xlu0 %4014
    %v4016 = vsel %vm574, %v3850, -inf
    %4017 = vmax.xlane.f32.xlu0 %v4016
    %v4018 = vpop.xlane.xlu0 %4017
    %v4019 = vsel %vm574, %v3851, -inf
    %4020 = vmax.xlane.f32.xlu0 %v4019
    %v4021 = vpop.xlane.xlu0 %4020
    %v4022 = vsel %vm574, %v3852, -inf
    %4023 = vmax.xlane.f32.xlu0 %v4022
    %v4024 = vpop.xlane.xlu0 %4023
    %v4025 = vsel %vm574, %v3853, -inf
    %4026 = vmax.xlane.f32.xlu0 %v4025
    %v4027 = vpop.xlane.xlu0 %4026
    %v4028 = vsel %vm574, %v3854, -inf
    %4029 = vmax.xlane.f32.xlu0 %v4028
    %v4030 = vpop.xlane.xlu0 %4029
    %v4031 = vsel %vm574, %v3855, -inf
    %4032 = vmax.xlane.f32.xlu0 %v4031
    %v4033 = vpop.xlane.xlu0 %4032
    %v4034 = vsel %vm574, %v3856, -inf
    %4035 = vmax.xlane.f32.xlu0 %v4034
    %v4036 = vpop.xlane.xlu0 %4035
    %v4037 = vsel %vm574, %v3857, -inf
    %4038 = vmax.xlane.f32.xlu0 %v4037
    %v4039 = vpop.xlane.xlu0 %4038
    %v4040 = vsel %vm574, %v3858, -inf
    %4041 = vmax.xlane.f32.xlu0 %v4040
    %v4042 = vpop.xlane.xlu0 %4041
    %v4043 = vsel %vm574, %v3859, -inf
    %4044 = vmax.xlane.f32.xlu0 %v4043
    %v4045 = vpop.xlane.xlu0 %4044
    %v4046 = vsel %vm574, %v3860, -inf
    %4047 = vmax.xlane.f32.xlu0 %v4046
    %v4048 = vpop.xlane.xlu0 %4047
    %v4049 = vsel %vm574, %v3861, -inf
    %4050 = vmax.xlane.f32.xlu0 %v4049
    %v4051 = vpop.xlane.xlu0 %4050
    %v4052 = vsel %vm574, %v3862, -inf
    %4053 = vmax.xlane.f32.xlu0 %v4052
    %v4054 = vpop.xlane.xlu0 %4053
    %v4055 = vsub.f32 %v3799, %v3865
    %v4056 = vsub.f32 %v3800, %v3868
    %v4057 = vsub.f32 %v3801, %v3871
    %v4058 = vsub.f32 %v3802, %v3874
    %v4059 = vsub.f32 %v3803, %v3877
    %v4060 = vsub.f32 %v3804, %v3880
    %v4061 = vsub.f32 %v3805, %v3883
    %v4062 = vsub.f32 %v3806, %v3886
    %v4063 = vsub.f32 %v3807, %v3889
    %v4064 = vsub.f32 %v3808, %v3892
    %v4065 = vsub.f32 %v3809, %v3895
    %v4066 = vsub.f32 %v3810, %v3898
    %v4067 = vsub.f32 %v3811, %v3901
    %v4068 = vsub.f32 %v3812, %v3904
    %v4069 = vsub.f32 %v3813, %v3907
    %v4070 = vsub.f32 %v3814, %v3910
    %v4071 = vsub.f32 %v3815, %v3913
    %v4072 = vsub.f32 %v3816, %v3916
    %v4073 = vsub.f32 %v3817, %v3919
    %v4074 = vsub.f32 %v3818, %v3922
    %v4075 = vsub.f32 %v3819, %v3925
    %v4076 = vsub.f32 %v3820, %v3928
    %v4077 = vsub.f32 %v3821, %v3931
    %v4078 = vsub.f32 %v3822, %v3934
    %v4079 = vsub.f32 %v3823, %v3937
    %v4080 = vsub.f32 %v3824, %v3940
    %v4081 = vsub.f32 %v3825, %v3943
    %v4082 = vsub.f32 %v3826, %v3946
    %v4083 = vsub.f32 %v3827, %v3949
    %v4084 = vsub.f32 %v3828, %v3952
    %v4085 = vsub.f32 %v3829, %v3955
    %v4086 = vsub.f32 %v3830, %v3958
    %v4087 = vsub.f32 %v3831, %v3961
    %v4088 = vsub.f32 %v3832, %v3964
    %v4089 = vsub.f32 %v3833, %v3967
    %v4090 = vsub.f32 %v3834, %v3970
    %v4091 = vsub.f32 %v3835, %v3973
    %v4092 = vsub.f32 %v3836, %v3976
    %v4093 = vsub.f32 %v3837, %v3979
    %v4094 = vsub.f32 %v3838, %v3982
    %v4095 = vsub.f32 %v3839, %v3985
    %v4096 = vsub.f32 %v3840, %v3988
    %v4097 = vsub.f32 %v3841, %v3991
    %v4098 = vsub.f32 %v3842, %v3994
    %v4099 = vsub.f32 %v3843, %v3997
    %v4100 = vsub.f32 %v3844, %v4000
    %v4101 = vsub.f32 %v3845, %v4003
    %v4102 = vsub.f32 %v3846, %v4006
    %v4103 = vsub.f32 %v3847, %v4009
    %v4104 = vsub.f32 %v3848, %v4012
    %v4105 = vsub.f32 %v3849, %v4015
    %v4106 = vsub.f32 %v3850, %v4018
    %v4107 = vsub.f32 %v3851, %v4021
    %v4108 = vsub.f32 %v3852, %v4024
    %v4109 = vsub.f32 %v3853, %v4027
    %v4110 = vsub.f32 %v3854, %v4030
    %v4111 = vsub.f32 %v3855, %v4033
    %v4112 = vsub.f32 %v3856, %v4036
    %v4113 = vsub.f32 %v3857, %v4039
    %v4114 = vsub.f32 %v3858, %v4042
    %v4115 = vsub.f32 %v3859, %v4045
    %v4116 = vsub.f32 %v3860, %v4048
    %v4117 = vsub.f32 %v3861, %v4051
    %v4118 = vsub.f32 %v3862, %v4054
    %v4119 = vmul.f32 %v4055, 1.442695
    %v4120 = vpow.pop %v4119
    %v4121 = vmul.f32 %v4056, 1.442695
    %v4122 = vpow.pop %v4121
    %v4123 = vmul.f32 %v4057, 1.442695
    %v4124 = vpow.pop %v4123
    %v4125 = vmul.f32 %v4058, 1.442695
    %v4126 = vpow.pop %v4125
    %v4127 = vmul.f32 %v4059, 1.442695
    %v4128 = vpow.pop %v4127
    %v4129 = vmul.f32 %v4060, 1.442695
    %v4130 = vpow.pop %v4129
    %v4131 = vmul.f32 %v4061, 1.442695
    %v4132 = vpow.pop %v4131
    %v4133 = vmul.f32 %v4062, 1.442695
    %v4134 = vpow.pop %v4133
    %v4135 = vmul.f32 %v4063, 1.442695
    %v4136 = vpow.pop %v4135
    %v4137 = vmul.f32 %v4064, 1.442695
    %v4138 = vpow.pop %v4137
    %v4139 = vmul.f32 %v4065, 1.442695
    %v4140 = vpow.pop %v4139
    %v4141 = vmul.f32 %v4066, 1.442695
    %v4142 = vpow.pop %v4141
    %v4143 = vmul.f32 %v4067, 1.442695
    %v4144 = vpow.pop %v4143
    %v4145 = vmul.f32 %v4068, 1.442695
    %v4146 = vpow.pop %v4145
    %v4147 = vmul.f32 %v4069, 1.442695
    %v4148 = vpow.pop %v4147
    %v4149 = vmul.f32 %v4070, 1.442695
    %v4150 = vpow.pop %v4149
    %v4151 = vmul.f32 %v4071, 1.442695
    %v4152 = vpow.pop %v4151
    %v4153 = vmul.f32 %v4072, 1.442695
    %v4154 = vpow.pop %v4153
    %v4155 = vmul.f32 %v4073, 1.442695
    %v4156 = vpow.pop %v4155
    %v4157 = vmul.f32 %v4074, 1.442695
    %v4158 = vpow.pop %v4157
    %v4159 = vmul.f32 %v4075, 1.442695
    %v4160 = vpow.pop %v4159
    %v4161 = vmul.f32 %v4076, 1.442695
    %v4162 = vpow.pop %v4161
    %v4163 = vmul.f32 %v4077, 1.442695
    %v4164 = vpow.pop %v4163
    %v4165 = vmul.f32 %v4078, 1.442695
    %v4166 = vpow.pop %v4165
    %v4167 = vmul.f32 %v4079, 1.442695
    %v4168 = vpow.pop %v4167
    %v4169 = vmul.f32 %v4080, 1.442695
    %v4170 = vpow.pop %v4169
    %v4171 = vmul.f32 %v4081, 1.442695
    %v4172 = vpow.pop %v4171
    %v4173 = vmul.f32 %v4082, 1.442695
    %v4174 = vpow.pop %v4173
    %v4175 = vmul.f32 %v4083, 1.442695
    %v4176 = vpow.pop %v4175
    %v4177 = vmul.f32 %v4084, 1.442695
    %v4178 = vpow.pop %v4177
    %v4179 = vmul.f32 %v4085, 1.442695
    %v4180 = vpow.pop %v4179
    %v4181 = vmul.f32 %v4086, 1.442695
    %v4182 = vpow.pop %v4181
    %v4183 = vmul.f32 %v4087, 1.442695
    %v4184 = vpow.pop %v4183
    %v4185 = vmul.f32 %v4088, 1.442695
    %v4186 = vpow.pop %v4185
    %v4187 = vmul.f32 %v4089, 1.442695
    %v4188 = vpow.pop %v4187
    %v4189 = vmul.f32 %v4090, 1.442695
    %v4190 = vpow.pop %v4189
    %v4191 = vmul.f32 %v4091, 1.442695
    %v4192 = vpow.pop %v4191
    %v4193 = vmul.f32 %v4092, 1.442695
    %v4194 = vpow.pop %v4193
    %v4195 = vmul.f32 %v4093, 1.442695
    %v4196 = vpow.pop %v4195
    %v4197 = vmul.f32 %v4094, 1.442695
    %v4198 = vpow.pop %v4197
    %v4199 = vmul.f32 %v4095, 1.442695
    %v4200 = vpow.pop %v4199
    %v4201 = vmul.f32 %v4096, 1.442695
    %v4202 = vpow.pop %v4201
    %v4203 = vmul.f32 %v4097, 1.442695
    %v4204 = vpow.pop %v4203
    %v4205 = vmul.f32 %v4098, 1.442695
    %v4206 = vpow.pop %v4205
    %v4207 = vmul.f32 %v4099, 1.442695
    %v4208 = vpow.pop %v4207
    %v4209 = vmul.f32 %v4100, 1.442695
    %v4210 = vpow.pop %v4209
    %v4211 = vmul.f32 %v4101, 1.442695
    %v4212 = vpow.pop %v4211
    %v4213 = vmul.f32 %v4102, 1.442695
    %v4214 = vpow.pop %v4213
    %v4215 = vmul.f32 %v4103, 1.442695
    %v4216 = vpow.pop %v4215
    %v4217 = vmul.f32 %v4104, 1.442695
    %v4218 = vpow.pop %v4217
    %v4219 = vmul.f32 %v4105, 1.442695
    %v4220 = vpow.pop %v4219
    %v4221 = vmul.f32 %v4106, 1.442695
    %v4222 = vpow.pop %v4221
    %v4223 = vmul.f32 %v4107, 1.442695
    %v4224 = vpow.pop %v4223
    %v4225 = vmul.f32 %v4108, 1.442695
    %v4226 = vpow.pop %v4225
    %v4227 = vmul.f32 %v4109, 1.442695
    %v4228 = vpow.pop %v4227
    %v4229 = vmul.f32 %v4110, 1.442695
    %v4230 = vpow.pop %v4229
    %v4231 = vmul.f32 %v4111, 1.442695
    %v4232 = vpow.pop %v4231
    %v4233 = vmul.f32 %v4112, 1.442695
    %v4234 = vpow.pop %v4233
    %v4235 = vmul.f32 %v4113, 1.442695
    %v4236 = vpow.pop %v4235
    %v4237 = vmul.f32 %v4114, 1.442695
    %v4238 = vpow.pop %v4237
    %v4239 = vmul.f32 %v4115, 1.442695
    %v4240 = vpow.pop %v4239
    %v4241 = vmul.f32 %v4116, 1.442695
    %v4242 = vpow.pop %v4241
    %v4243 = vmul.f32 %v4117, 1.442695
    %v4244 = vpow.pop %v4243
    %v4245 = vmul.f32 %v4118, 1.442695
    %v4246 = vpow.pop %v4245
    %v4247 = vsel %vm574, %v4120, 0.0
    %4248 = vadd.xlane.f32.xlu0 %v4247
    %v4249 = vpop.xlane.xlu0 %4248
    %v4250 = vsel %vm574, %v4122, 0.0
    %4251 = vadd.xlane.f32.xlu0 %v4250
    %v4252 = vpop.xlane.xlu0 %4251
    %v4253 = vsel %vm574, %v4124, 0.0
    %4254 = vadd.xlane.f32.xlu0 %v4253
    %v4255 = vpop.xlane.xlu0 %4254
    %v4256 = vsel %vm574, %v4126, 0.0
    %4257 = vadd.xlane.f32.xlu0 %v4256
    %v4258 = vpop.xlane.xlu0 %4257
    %v4259 = vsel %vm574, %v4128, 0.0
    %4260 = vadd.xlane.f32.xlu0 %v4259
    %v4261 = vpop.xlane.xlu0 %4260
    %v4262 = vsel %vm574, %v4130, 0.0
    %4263 = vadd.xlane.f32.xlu0 %v4262
    %v4264 = vpop.xlane.xlu0 %4263
    %v4265 = vsel %vm574, %v4132, 0.0
    %4266 = vadd.xlane.f32.xlu0 %v4265
    %v4267 = vpop.xlane.xlu0 %4266
    %v4268 = vsel %vm574, %v4134, 0.0
    %4269 = vadd.xlane.f32.xlu0 %v4268
    %v4270 = vpop.xlane.xlu0 %4269
    %v4271 = vsel %vm574, %v4136, 0.0
    %4272 = vadd.xlane.f32.xlu0 %v4271
    %v4273 = vpop.xlane.xlu0 %4272
    %v4274 = vsel %vm574, %v4138, 0.0
    %4275 = vadd.xlane.f32.xlu0 %v4274
    %v4276 = vpop.xlane.xlu0 %4275
    %v4277 = vsel %vm574, %v4140, 0.0
    %4278 = vadd.xlane.f32.xlu0 %v4277
    %v4279 = vpop.xlane.xlu0 %4278
    %v4280 = vsel %vm574, %v4142, 0.0
    %4281 = vadd.xlane.f32.xlu0 %v4280
    %v4282 = vpop.xlane.xlu0 %4281
    %v4283 = vsel %vm574, %v4144, 0.0
    %4284 = vadd.xlane.f32.xlu0 %v4283
    %v4285 = vpop.xlane.xlu0 %4284
    %v4286 = vsel %vm574, %v4146, 0.0
    %4287 = vadd.xlane.f32.xlu0 %v4286
    %v4288 = vpop.xlane.xlu0 %4287
    %v4289 = vsel %vm574, %v4148, 0.0
    %4290 = vadd.xlane.f32.xlu0 %v4289
    %v4291 = vpop.xlane.xlu0 %4290
    %v4292 = vsel %vm574, %v4150, 0.0
    %4293 = vadd.xlane.f32.xlu0 %v4292
    %v4294 = vpop.xlane.xlu0 %4293
    %v4295 = vsel %vm574, %v4152, 0.0
    %4296 = vadd.xlane.f32.xlu0 %v4295
    %v4297 = vpop.xlane.xlu0 %4296
    %v4298 = vsel %vm574, %v4154, 0.0
    %4299 = vadd.xlane.f32.xlu0 %v4298
    %v4300 = vpop.xlane.xlu0 %4299
    %v4301 = vsel %vm574, %v4156, 0.0
    %4302 = vadd.xlane.f32.xlu0 %v4301
    %v4303 = vpop.xlane.xlu0 %4302
    %v4304 = vsel %vm574, %v4158, 0.0
    %4305 = vadd.xlane.f32.xlu0 %v4304
    %v4306 = vpop.xlane.xlu0 %4305
    %v4307 = vsel %vm574, %v4160, 0.0
    %4308 = vadd.xlane.f32.xlu0 %v4307
    %v4309 = vpop.xlane.xlu0 %4308
    %v4310 = vsel %vm574, %v4162, 0.0
    %4311 = vadd.xlane.f32.xlu0 %v4310
    %v4312 = vpop.xlane.xlu0 %4311
    %v4313 = vsel %vm574, %v4164, 0.0
    %4314 = vadd.xlane.f32.xlu0 %v4313
    %v4315 = vpop.xlane.xlu0 %4314
    %v4316 = vsel %vm574, %v4166, 0.0
    %4317 = vadd.xlane.f32.xlu0 %v4316
    %v4318 = vpop.xlane.xlu0 %4317
    %v4319 = vsel %vm574, %v4168, 0.0
    %4320 = vadd.xlane.f32.xlu0 %v4319
    %v4321 = vpop.xlane.xlu0 %4320
    %v4322 = vsel %vm574, %v4170, 0.0
    %4323 = vadd.xlane.f32.xlu0 %v4322
    %v4324 = vpop.xlane.xlu0 %4323
    %v4325 = vsel %vm574, %v4172, 0.0
    %4326 = vadd.xlane.f32.xlu0 %v4325
    %v4327 = vpop.xlane.xlu0 %4326
    %v4328 = vsel %vm574, %v4174, 0.0
    %4329 = vadd.xlane.f32.xlu0 %v4328
    %v4330 = vpop.xlane.xlu0 %4329
    %v4331 = vsel %vm574, %v4176, 0.0
    %4332 = vadd.xlane.f32.xlu0 %v4331
    %v4333 = vpop.xlane.xlu0 %4332
    %v4334 = vsel %vm574, %v4178, 0.0
    %4335 = vadd.xlane.f32.xlu0 %v4334
    %v4336 = vpop.xlane.xlu0 %4335
    %v4337 = vsel %vm574, %v4180, 0.0
    %4338 = vadd.xlane.f32.xlu0 %v4337
    %v4339 = vpop.xlane.xlu0 %4338
    %v4340 = vsel %vm574, %v4182, 0.0
    %4341 = vadd.xlane.f32.xlu0 %v4340
    %v4342 = vpop.xlane.xlu0 %4341
    %v4343 = vsel %vm574, %v4184, 0.0
    %4344 = vadd.xlane.f32.xlu0 %v4343
    %v4345 = vpop.xlane.xlu0 %4344
    %v4346 = vsel %vm574, %v4186, 0.0
    %4347 = vadd.xlane.f32.xlu0 %v4346
    %v4348 = vpop.xlane.xlu0 %4347
    %v4349 = vsel %vm574, %v4188, 0.0
    %4350 = vadd.xlane.f32.xlu0 %v4349
    %v4351 = vpop.xlane.xlu0 %4350
    %v4352 = vsel %vm574, %v4190, 0.0
    %4353 = vadd.xlane.f32.xlu0 %v4352
    %v4354 = vpop.xlane.xlu0 %4353
    %v4355 = vsel %vm574, %v4192, 0.0
    %4356 = vadd.xlane.f32.xlu0 %v4355
    %v4357 = vpop.xlane.xlu0 %4356
    %v4358 = vsel %vm574, %v4194, 0.0
    %4359 = vadd.xlane.f32.xlu0 %v4358
    %v4360 = vpop.xlane.xlu0 %4359
    %v4361 = vsel %vm574, %v4196, 0.0
    %4362 = vadd.xlane.f32.xlu0 %v4361
    %v4363 = vpop.xlane.xlu0 %4362
    %v4364 = vsel %vm574, %v4198, 0.0
    %4365 = vadd.xlane.f32.xlu0 %v4364
    %v4366 = vpop.xlane.xlu0 %4365
    %v4367 = vsel %vm574, %v4200, 0.0
    %4368 = vadd.xlane.f32.xlu0 %v4367
    %v4369 = vpop.xlane.xlu0 %4368
    %v4370 = vsel %vm574, %v4202, 0.0
    %4371 = vadd.xlane.f32.xlu0 %v4370
    %v4372 = vpop.xlane.xlu0 %4371
    %v4373 = vsel %vm574, %v4204, 0.0
    %4374 = vadd.xlane.f32.xlu0 %v4373
    %v4375 = vpop.xlane.xlu0 %4374
    %v4376 = vsel %vm574, %v4206, 0.0
    %4377 = vadd.xlane.f32.xlu0 %v4376
    %v4378 = vpop.xlane.xlu0 %4377
    %v4379 = vsel %vm574, %v4208, 0.0
    %4380 = vadd.xlane.f32.xlu0 %v4379
    %v4381 = vpop.xlane.xlu0 %4380
    %v4382 = vsel %vm574, %v4210, 0.0
    %4383 = vadd.xlane.f32.xlu0 %v4382
    %v4384 = vpop.xlane.xlu0 %4383
    %v4385 = vsel %vm574, %v4212, 0.0
    %4386 = vadd.xlane.f32.xlu0 %v4385
    %v4387 = vpop.xlane.xlu0 %4386
    %v4388 = vsel %vm574, %v4214, 0.0
    %4389 = vadd.xlane.f32.xlu0 %v4388
    %v4390 = vpop.xlane.xlu0 %4389
    %v4391 = vsel %vm574, %v4216, 0.0
    %4392 = vadd.xlane.f32.xlu0 %v4391
    %v4393 = vpop.xlane.xlu0 %4392
    %v4394 = vsel %vm574, %v4218, 0.0
    %4395 = vadd.xlane.f32.xlu0 %v4394
    %v4396 = vpop.xlane.xlu0 %4395
    %v4397 = vsel %vm574, %v4220, 0.0
    %4398 = vadd.xlane.f32.xlu0 %v4397
    %v4399 = vpop.xlane.xlu0 %4398
    %v4400 = vsel %vm574, %v4222, 0.0
    %4401 = vadd.xlane.f32.xlu0 %v4400
    %v4402 = vpop.xlane.xlu0 %4401
    %v4403 = vsel %vm574, %v4224, 0.0
    %4404 = vadd.xlane.f32.xlu0 %v4403
    %v4405 = vpop.xlane.xlu0 %4404
    %v4406 = vsel %vm574, %v4226, 0.0
    %4407 = vadd.xlane.f32.xlu0 %v4406
    %v4408 = vpop.xlane.xlu0 %4407
    %v4409 = vsel %vm574, %v4228, 0.0
    %4410 = vadd.xlane.f32.xlu0 %v4409
    %v4411 = vpop.xlane.xlu0 %4410
    %v4412 = vsel %vm574, %v4230, 0.0
    %4413 = vadd.xlane.f32.xlu0 %v4412
    %v4414 = vpop.xlane.xlu0 %4413
    %v4415 = vsel %vm574, %v4232, 0.0
    %4416 = vadd.xlane.f32.xlu0 %v4415
    %v4417 = vpop.xlane.xlu0 %4416
    %v4418 = vsel %vm574, %v4234, 0.0
    %4419 = vadd.xlane.f32.xlu0 %v4418
    %v4420 = vpop.xlane.xlu0 %4419
    %v4421 = vsel %vm574, %v4236, 0.0
    %4422 = vadd.xlane.f32.xlu0 %v4421
    %v4423 = vpop.xlane.xlu0 %4422
    %v4424 = vsel %vm574, %v4238, 0.0
    %4425 = vadd.xlane.f32.xlu0 %v4424
    %v4426 = vpop.xlane.xlu0 %4425
    %v4427 = vsel %vm574, %v4240, 0.0
    %4428 = vadd.xlane.f32.xlu0 %v4427
    %v4429 = vpop.xlane.xlu0 %4428
    %v4430 = vsel %vm574, %v4242, 0.0
    %4431 = vadd.xlane.f32.xlu0 %v4430
    %v4432 = vpop.xlane.xlu0 %4431
    %v4433 = vsel %vm574, %v4244, 0.0
    %4434 = vadd.xlane.f32.xlu0 %v4433
    %v4435 = vpop.xlane.xlu0 %4434
    %v4436 = vsel %vm574, %v4246, 0.0
    %4437 = vadd.xlane.f32.xlu0 %v4436
    %v4438 = vpop.xlane.xlu0 %4437
    %v4439 = vrcp.pop %v4249
    %v4440 = vmul.f32 %v4249, %v4439
    %v4441 = vsub.f32 1.0, %v4440
    %v4442 = vmul.f32 %v4439, %v4441
    %v4443 = vadd.f32 %v4439, %v4442
    %vm4444 = vweird.f32 %v4249
    %vm4445 = vweird.f32 %v4439
    %vm4446 = vmor %vm4444, %vm4445
    %v4447 = vsel %vm4446, %v4439, %v4443
    %v4448 = vand.u32 2147483647, %v4249
    %vm4449 = vcmp.eq.f32.partialorder %v4448, 8.507059e+37
    %v4450 = vand.u32 %v4249, 2147483648
    %v4451 = vor.u32 1.1754944e-38, %v4450
    %v4452 = vsel %vm4449, %v4451, %v4447
    %v4453 = vmul.f32 %v4120, %v4452
    %v4454 = vrcp.pop %v4252
    %v4455 = vmul.f32 %v4252, %v4454
    %v4456 = vsub.f32 1.0, %v4455
    %v4457 = vmul.f32 %v4454, %v4456
    %v4458 = vadd.f32 %v4454, %v4457
    %vm4459 = vweird.f32 %v4252
    %vm4460 = vweird.f32 %v4454
    %vm4461 = vmor %vm4459, %vm4460
    %v4462 = vsel %vm4461, %v4454, %v4458
    %v4463 = vand.u32 2147483647, %v4252
    %vm4464 = vcmp.eq.f32.partialorder %v4463, 8.507059e+37
    %v4465 = vand.u32 %v4252, 2147483648
    %v4466 = vor.u32 1.1754944e-38, %v4465
    %v4467 = vsel %vm4464, %v4466, %v4462
    %v4468 = vmul.f32 %v4122, %v4467
    %v4469 = vrcp.pop %v4255
    %v4470 = vmul.f32 %v4255, %v4469
    %v4471 = vsub.f32 1.0, %v4470
    %v4472 = vmul.f32 %v4469, %v4471
    %v4473 = vadd.f32 %v4469, %v4472
    %vm4474 = vweird.f32 %v4255
    %vm4475 = vweird.f32 %v4469
    %vm4476 = vmor %vm4474, %vm4475
    %v4477 = vsel %vm4476, %v4469, %v4473
    %v4478 = vand.u32 2147483647, %v4255
    %vm4479 = vcmp.eq.f32.partialorder %v4478, 8.507059e+37
    %v4480 = vand.u32 %v4255, 2147483648
    %v4481 = vor.u32 1.1754944e-38, %v4480
    %v4482 = vsel %vm4479, %v4481, %v4477
    %v4483 = vmul.f32 %v4124, %v4482
    %v4484 = vrcp.pop %v4258
    %v4485 = vmul.f32 %v4258, %v4484
    %v4486 = vsub.f32 1.0, %v4485
    %v4487 = vmul.f32 %v4484, %v4486
    %v4488 = vadd.f32 %v4484, %v4487
    %vm4489 = vweird.f32 %v4258
    %vm4490 = vweird.f32 %v4484
    %vm4491 = vmor %vm4489, %vm4490
    %v4492 = vsel %vm4491, %v4484, %v4488
    %v4493 = vand.u32 2147483647, %v4258
    %vm4494 = vcmp.eq.f32.partialorder %v4493, 8.507059e+37
    %v4495 = vand.u32 %v4258, 2147483648
    %v4496 = vor.u32 1.1754944e-38, %v4495
    %v4497 = vsel %vm4494, %v4496, %v4492
    %v4498 = vmul.f32 %v4126, %v4497
    %v4499 = vrcp.pop %v4261
    %v4500 = vmul.f32 %v4261, %v4499
    %v4501 = vsub.f32 1.0, %v4500
    %v4502 = vmul.f32 %v4499, %v4501
    %v4503 = vadd.f32 %v4499, %v4502
    %vm4504 = vweird.f32 %v4261
    %vm4505 = vweird.f32 %v4499
    %vm4506 = vmor %vm4504, %vm4505
    %v4507 = vsel %vm4506, %v4499, %v4503
    %v4508 = vand.u32 2147483647, %v4261
    %vm4509 = vcmp.eq.f32.partialorder %v4508, 8.507059e+37
    %v4510 = vand.u32 %v4261, 2147483648
    %v4511 = vor.u32 1.1754944e-38, %v4510
    %v4512 = vsel %vm4509, %v4511, %v4507
    %v4513 = vmul.f32 %v4128, %v4512
    %v4514 = vrcp.pop %v4264
    %v4515 = vmul.f32 %v4264, %v4514
    %v4516 = vsub.f32 1.0, %v4515
    %v4517 = vmul.f32 %v4514, %v4516
    %v4518 = vadd.f32 %v4514, %v4517
    %vm4519 = vweird.f32 %v4264
    %vm4520 = vweird.f32 %v4514
    %vm4521 = vmor %vm4519, %vm4520
    %v4522 = vsel %vm4521, %v4514, %v4518
    %v4523 = vand.u32 2147483647, %v4264
    %vm4524 = vcmp.eq.f32.partialorder %v4523, 8.507059e+37
    %v4525 = vand.u32 %v4264, 2147483648
    %v4526 = vor.u32 1.1754944e-38, %v4525
    %v4527 = vsel %vm4524, %v4526, %v4522
    %v4528 = vmul.f32 %v4130, %v4527
    %v4529 = vrcp.pop %v4267
    %v4530 = vmul.f32 %v4267, %v4529
    %v4531 = vsub.f32 1.0, %v4530
    %v4532 = vmul.f32 %v4529, %v4531
    %v4533 = vadd.f32 %v4529, %v4532
    %vm4534 = vweird.f32 %v4267
    %vm4535 = vweird.f32 %v4529
    %vm4536 = vmor %vm4534, %vm4535
    %v4537 = vsel %vm4536, %v4529, %v4533
    %v4538 = vand.u32 2147483647, %v4267
    %vm4539 = vcmp.eq.f32.partialorder %v4538, 8.507059e+37
    %v4540 = vand.u32 %v4267, 2147483648
    %v4541 = vor.u32 1.1754944e-38, %v4540
    %v4542 = vsel %vm4539, %v4541, %v4537
    %v4543 = vmul.f32 %v4132, %v4542
    %v4544 = vrcp.pop %v4270
    %v4545 = vmul.f32 %v4270, %v4544
    %v4546 = vsub.f32 1.0, %v4545
    %v4547 = vmul.f32 %v4544, %v4546
    %v4548 = vadd.f32 %v4544, %v4547
    %vm4549 = vweird.f32 %v4270
    %vm4550 = vweird.f32 %v4544
    %vm4551 = vmor %vm4549, %vm4550
    %v4552 = vsel %vm4551, %v4544, %v4548
    %v4553 = vand.u32 2147483647, %v4270
    %vm4554 = vcmp.eq.f32.partialorder %v4553, 8.507059e+37
    %v4555 = vand.u32 %v4270, 2147483648
    %v4556 = vor.u32 1.1754944e-38, %v4555
    %v4557 = vsel %vm4554, %v4556, %v4552
    %v4558 = vmul.f32 %v4134, %v4557
    %v4559 = vrcp.pop %v4273
    %v4560 = vmul.f32 %v4273, %v4559
    %v4561 = vsub.f32 1.0, %v4560
    %v4562 = vmul.f32 %v4559, %v4561
    %v4563 = vadd.f32 %v4559, %v4562
    %vm4564 = vweird.f32 %v4273
    %vm4565 = vweird.f32 %v4559
    %vm4566 = vmor %vm4564, %vm4565
    %v4567 = vsel %vm4566, %v4559, %v4563
    %v4568 = vand.u32 2147483647, %v4273
    %vm4569 = vcmp.eq.f32.partialorder %v4568, 8.507059e+37
    %v4570 = vand.u32 %v4273, 2147483648
    %v4571 = vor.u32 1.1754944e-38, %v4570
    %v4572 = vsel %vm4569, %v4571, %v4567
    %v4573 = vmul.f32 %v4136, %v4572
    %v4574 = vrcp.pop %v4276
    %v4575 = vmul.f32 %v4276, %v4574
    %v4576 = vsub.f32 1.0, %v4575
    %v4577 = vmul.f32 %v4574, %v4576
    %v4578 = vadd.f32 %v4574, %v4577
    %vm4579 = vweird.f32 %v4276
    %vm4580 = vweird.f32 %v4574
    %vm4581 = vmor %vm4579, %vm4580
    %v4582 = vsel %vm4581, %v4574, %v4578
    %v4583 = vand.u32 2147483647, %v4276
    %vm4584 = vcmp.eq.f32.partialorder %v4583, 8.507059e+37
    %v4585 = vand.u32 %v4276, 2147483648
    %v4586 = vor.u32 1.1754944e-38, %v4585
    %v4587 = vsel %vm4584, %v4586, %v4582
    %v4588 = vmul.f32 %v4138, %v4587
    %v4589 = vrcp.pop %v4279
    %v4590 = vmul.f32 %v4279, %v4589
    %v4591 = vsub.f32 1.0, %v4590
    %v4592 = vmul.f32 %v4589, %v4591
    %v4593 = vadd.f32 %v4589, %v4592
    %vm4594 = vweird.f32 %v4279
    %vm4595 = vweird.f32 %v4589
    %vm4596 = vmor %vm4594, %vm4595
    %v4597 = vsel %vm4596, %v4589, %v4593
    %v4598 = vand.u32 2147483647, %v4279
    %vm4599 = vcmp.eq.f32.partialorder %v4598, 8.507059e+37
    %v4600 = vand.u32 %v4279, 2147483648
    %v4601 = vor.u32 1.1754944e-38, %v4600
    %v4602 = vsel %vm4599, %v4601, %v4597
    %v4603 = vmul.f32 %v4140, %v4602
    %v4604 = vrcp.pop %v4282
    %v4605 = vmul.f32 %v4282, %v4604
    %v4606 = vsub.f32 1.0, %v4605
    %v4607 = vmul.f32 %v4604, %v4606
    %v4608 = vadd.f32 %v4604, %v4607
    %vm4609 = vweird.f32 %v4282
    %vm4610 = vweird.f32 %v4604
    %vm4611 = vmor %vm4609, %vm4610
    %v4612 = vsel %vm4611, %v4604, %v4608
    %v4613 = vand.u32 2147483647, %v4282
    %vm4614 = vcmp.eq.f32.partialorder %v4613, 8.507059e+37
    %v4615 = vand.u32 %v4282, 2147483648
    %v4616 = vor.u32 1.1754944e-38, %v4615
    %v4617 = vsel %vm4614, %v4616, %v4612
    %v4618 = vmul.f32 %v4142, %v4617
    %v4619 = vrcp.pop %v4285
    %v4620 = vmul.f32 %v4285, %v4619
    %v4621 = vsub.f32 1.0, %v4620
    %v4622 = vmul.f32 %v4619, %v4621
    %v4623 = vadd.f32 %v4619, %v4622
    %vm4624 = vweird.f32 %v4285
    %vm4625 = vweird.f32 %v4619
    %vm4626 = vmor %vm4624, %vm4625
    %v4627 = vsel %vm4626, %v4619, %v4623
    %v4628 = vand.u32 2147483647, %v4285
    %vm4629 = vcmp.eq.f32.partialorder %v4628, 8.507059e+37
    %v4630 = vand.u32 %v4285, 2147483648
    %v4631 = vor.u32 1.1754944e-38, %v4630
    %v4632 = vsel %vm4629, %v4631, %v4627
    %v4633 = vmul.f32 %v4144, %v4632
    %v4634 = vrcp.pop %v4288
    %v4635 = vmul.f32 %v4288, %v4634
    %v4636 = vsub.f32 1.0, %v4635
    %v4637 = vmul.f32 %v4634, %v4636
    %v4638 = vadd.f32 %v4634, %v4637
    %vm4639 = vweird.f32 %v4288
    %vm4640 = vweird.f32 %v4634
    %vm4641 = vmor %vm4639, %vm4640
    %v4642 = vsel %vm4641, %v4634, %v4638
    %v4643 = vand.u32 2147483647, %v4288
    %vm4644 = vcmp.eq.f32.partialorder %v4643, 8.507059e+37
    %v4645 = vand.u32 %v4288, 2147483648
    %v4646 = vor.u32 1.1754944e-38, %v4645
    %v4647 = vsel %vm4644, %v4646, %v4642
    %v4648 = vmul.f32 %v4146, %v4647
    %v4649 = vrcp.pop %v4291
    %v4650 = vmul.f32 %v4291, %v4649
    %v4651 = vsub.f32 1.0, %v4650
    %v4652 = vmul.f32 %v4649, %v4651
    %v4653 = vadd.f32 %v4649, %v4652
    %vm4654 = vweird.f32 %v4291
    %vm4655 = vweird.f32 %v4649
    %vm4656 = vmor %vm4654, %vm4655
    %v4657 = vsel %vm4656, %v4649, %v4653
    %v4658 = vand.u32 2147483647, %v4291
    %vm4659 = vcmp.eq.f32.partialorder %v4658, 8.507059e+37
    %v4660 = vand.u32 %v4291, 2147483648
    %v4661 = vor.u32 1.1754944e-38, %v4660
    %v4662 = vsel %vm4659, %v4661, %v4657
    %v4663 = vmul.f32 %v4148, %v4662
    %v4664 = vrcp.pop %v4294
    %v4665 = vmul.f32 %v4294, %v4664
    %v4666 = vsub.f32 1.0, %v4665
    %v4667 = vmul.f32 %v4664, %v4666
    %v4668 = vadd.f32 %v4664, %v4667
    %vm4669 = vweird.f32 %v4294
    %vm4670 = vweird.f32 %v4664
    %vm4671 = vmor %vm4669, %vm4670
    %v4672 = vsel %vm4671, %v4664, %v4668
    %v4673 = vand.u32 2147483647, %v4294
    %vm4674 = vcmp.eq.f32.partialorder %v4673, 8.507059e+37
    %v4675 = vand.u32 %v4294, 2147483648
    %v4676 = vor.u32 1.1754944e-38, %v4675
    %v4677 = vsel %vm4674, %v4676, %v4672
    %v4678 = vmul.f32 %v4150, %v4677
    %v4679 = vrcp.pop %v4297
    %v4680 = vmul.f32 %v4297, %v4679
    %v4681 = vsub.f32 1.0, %v4680
    %v4682 = vmul.f32 %v4679, %v4681
    %v4683 = vadd.f32 %v4679, %v4682
    %vm4684 = vweird.f32 %v4297
    %vm4685 = vweird.f32 %v4679
    %vm4686 = vmor %vm4684, %vm4685
    %v4687 = vsel %vm4686, %v4679, %v4683
    %v4688 = vand.u32 2147483647, %v4297
    %vm4689 = vcmp.eq.f32.partialorder %v4688, 8.507059e+37
    %v4690 = vand.u32 %v4297, 2147483648
    %v4691 = vor.u32 1.1754944e-38, %v4690
    %v4692 = vsel %vm4689, %v4691, %v4687
    %v4693 = vmul.f32 %v4152, %v4692
    %v4694 = vrcp.pop %v4300
    %v4695 = vmul.f32 %v4300, %v4694
    %v4696 = vsub.f32 1.0, %v4695
    %v4697 = vmul.f32 %v4694, %v4696
    %v4698 = vadd.f32 %v4694, %v4697
    %vm4699 = vweird.f32 %v4300
    %vm4700 = vweird.f32 %v4694
    %vm4701 = vmor %vm4699, %vm4700
    %v4702 = vsel %vm4701, %v4694, %v4698
    %v4703 = vand.u32 2147483647, %v4300
    %vm4704 = vcmp.eq.f32.partialorder %v4703, 8.507059e+37
    %v4705 = vand.u32 %v4300, 2147483648
    %v4706 = vor.u32 1.1754944e-38, %v4705
    %v4707 = vsel %vm4704, %v4706, %v4702
    %v4708 = vmul.f32 %v4154, %v4707
    %v4709 = vrcp.pop %v4303
    %v4710 = vmul.f32 %v4303, %v4709
    %v4711 = vsub.f32 1.0, %v4710
    %v4712 = vmul.f32 %v4709, %v4711
    %v4713 = vadd.f32 %v4709, %v4712
    %vm4714 = vweird.f32 %v4303
    %vm4715 = vweird.f32 %v4709
    %vm4716 = vmor %vm4714, %vm4715
    %v4717 = vsel %vm4716, %v4709, %v4713
    %v4718 = vand.u32 2147483647, %v4303
    %vm4719 = vcmp.eq.f32.partialorder %v4718, 8.507059e+37
    %v4720 = vand.u32 %v4303, 2147483648
    %v4721 = vor.u32 1.1754944e-38, %v4720
    %v4722 = vsel %vm4719, %v4721, %v4717
    %v4723 = vmul.f32 %v4156, %v4722
    %v4724 = vrcp.pop %v4306
    %v4725 = vmul.f32 %v4306, %v4724
    %v4726 = vsub.f32 1.0, %v4725
    %v4727 = vmul.f32 %v4724, %v4726
    %v4728 = vadd.f32 %v4724, %v4727
    %vm4729 = vweird.f32 %v4306
    %vm4730 = vweird.f32 %v4724
    %vm4731 = vmor %vm4729, %vm4730
    %v4732 = vsel %vm4731, %v4724, %v4728
    %v4733 = vand.u32 2147483647, %v4306
    %vm4734 = vcmp.eq.f32.partialorder %v4733, 8.507059e+37
    %v4735 = vand.u32 %v4306, 2147483648
    %v4736 = vor.u32 1.1754944e-38, %v4735
    %v4737 = vsel %vm4734, %v4736, %v4732
    %v4738 = vmul.f32 %v4158, %v4737
    %v4739 = vrcp.pop %v4309
    %v4740 = vmul.f32 %v4309, %v4739
    %v4741 = vsub.f32 1.0, %v4740
    %v4742 = vmul.f32 %v4739, %v4741
    %v4743 = vadd.f32 %v4739, %v4742
    %vm4744 = vweird.f32 %v4309
    %vm4745 = vweird.f32 %v4739
    %vm4746 = vmor %vm4744, %vm4745
    %v4747 = vsel %vm4746, %v4739, %v4743
    %v4748 = vand.u32 2147483647, %v4309
    %vm4749 = vcmp.eq.f32.partialorder %v4748, 8.507059e+37
    %v4750 = vand.u32 %v4309, 2147483648
    %v4751 = vor.u32 1.1754944e-38, %v4750
    %v4752 = vsel %vm4749, %v4751, %v4747
    %v4753 = vmul.f32 %v4160, %v4752
    %v4754 = vrcp.pop %v4312
    %v4755 = vmul.f32 %v4312, %v4754
    %v4756 = vsub.f32 1.0, %v4755
    %v4757 = vmul.f32 %v4754, %v4756
    %v4758 = vadd.f32 %v4754, %v4757
    %vm4759 = vweird.f32 %v4312
    %vm4760 = vweird.f32 %v4754
    %vm4761 = vmor %vm4759, %vm4760
    %v4762 = vsel %vm4761, %v4754, %v4758
    %v4763 = vand.u32 2147483647, %v4312
    %vm4764 = vcmp.eq.f32.partialorder %v4763, 8.507059e+37
    %v4765 = vand.u32 %v4312, 2147483648
    %v4766 = vor.u32 1.1754944e-38, %v4765
    %v4767 = vsel %vm4764, %v4766, %v4762
    %v4768 = vmul.f32 %v4162, %v4767
    %v4769 = vrcp.pop %v4315
    %v4770 = vmul.f32 %v4315, %v4769
    %v4771 = vsub.f32 1.0, %v4770
    %v4772 = vmul.f32 %v4769, %v4771
    %v4773 = vadd.f32 %v4769, %v4772
    %vm4774 = vweird.f32 %v4315
    %vm4775 = vweird.f32 %v4769
    %vm4776 = vmor %vm4774, %vm4775
    %v4777 = vsel %vm4776, %v4769, %v4773
    %v4778 = vand.u32 2147483647, %v4315
    %vm4779 = vcmp.eq.f32.partialorder %v4778, 8.507059e+37
    %v4780 = vand.u32 %v4315, 2147483648
    %v4781 = vor.u32 1.1754944e-38, %v4780
    %v4782 = vsel %vm4779, %v4781, %v4777
    %v4783 = vmul.f32 %v4164, %v4782
    %v4784 = vrcp.pop %v4318
    %v4785 = vmul.f32 %v4318, %v4784
    %v4786 = vsub.f32 1.0, %v4785
    %v4787 = vmul.f32 %v4784, %v4786
    %v4788 = vadd.f32 %v4784, %v4787
    %vm4789 = vweird.f32 %v4318
    %vm4790 = vweird.f32 %v4784
    %vm4791 = vmor %vm4789, %vm4790
    %v4792 = vsel %vm4791, %v4784, %v4788
    %v4793 = vand.u32 2147483647, %v4318
    %vm4794 = vcmp.eq.f32.partialorder %v4793, 8.507059e+37
    %v4795 = vand.u32 %v4318, 2147483648
    %v4796 = vor.u32 1.1754944e-38, %v4795
    %v4797 = vsel %vm4794, %v4796, %v4792
    %v4798 = vmul.f32 %v4166, %v4797
    %v4799 = vrcp.pop %v4321
    %v4800 = vmul.f32 %v4321, %v4799
    %v4801 = vsub.f32 1.0, %v4800
    %v4802 = vmul.f32 %v4799, %v4801
    %v4803 = vadd.f32 %v4799, %v4802
    %vm4804 = vweird.f32 %v4321
    %vm4805 = vweird.f32 %v4799
    %vm4806 = vmor %vm4804, %vm4805
    %v4807 = vsel %vm4806, %v4799, %v4803
    %v4808 = vand.u32 2147483647, %v4321
    %vm4809 = vcmp.eq.f32.partialorder %v4808, 8.507059e+37
    %v4810 = vand.u32 %v4321, 2147483648
    %v4811 = vor.u32 1.1754944e-38, %v4810
    %v4812 = vsel %vm4809, %v4811, %v4807
    %v4813 = vmul.f32 %v4168, %v4812
    %v4814 = vrcp.pop %v4324
    %v4815 = vmul.f32 %v4324, %v4814
    %v4816 = vsub.f32 1.0, %v4815
    %v4817 = vmul.f32 %v4814, %v4816
    %v4818 = vadd.f32 %v4814, %v4817
    %vm4819 = vweird.f32 %v4324
    %vm4820 = vweird.f32 %v4814
    %vm4821 = vmor %vm4819, %vm4820
    %v4822 = vsel %vm4821, %v4814, %v4818
    %v4823 = vand.u32 2147483647, %v4324
    %vm4824 = vcmp.eq.f32.partialorder %v4823, 8.507059e+37
    %v4825 = vand.u32 %v4324, 2147483648
    %v4826 = vor.u32 1.1754944e-38, %v4825
    %v4827 = vsel %vm4824, %v4826, %v4822
    %v4828 = vmul.f32 %v4170, %v4827
    %v4829 = vrcp.pop %v4327
    %v4830 = vmul.f32 %v4327, %v4829
    %v4831 = vsub.f32 1.0, %v4830
    %v4832 = vmul.f32 %v4829, %v4831
    %v4833 = vadd.f32 %v4829, %v4832
    %vm4834 = vweird.f32 %v4327
    %vm4835 = vweird.f32 %v4829
    %vm4836 = vmor %vm4834, %vm4835
    %v4837 = vsel %vm4836, %v4829, %v4833
    %v4838 = vand.u32 2147483647, %v4327
    %vm4839 = vcmp.eq.f32.partialorder %v4838, 8.507059e+37
    %v4840 = vand.u32 %v4327, 2147483648
    %v4841 = vor.u32 1.1754944e-38, %v4840
    %v4842 = vsel %vm4839, %v4841, %v4837
    %v4843 = vmul.f32 %v4172, %v4842
    %v4844 = vrcp.pop %v4330
    %v4845 = vmul.f32 %v4330, %v4844
    %v4846 = vsub.f32 1.0, %v4845
    %v4847 = vmul.f32 %v4844, %v4846
    %v4848 = vadd.f32 %v4844, %v4847
    %vm4849 = vweird.f32 %v4330
    %vm4850 = vweird.f32 %v4844
    %vm4851 = vmor %vm4849, %vm4850
    %v4852 = vsel %vm4851, %v4844, %v4848
    %v4853 = vand.u32 2147483647, %v4330
    %vm4854 = vcmp.eq.f32.partialorder %v4853, 8.507059e+37
    %v4855 = vand.u32 %v4330, 2147483648
    %v4856 = vor.u32 1.1754944e-38, %v4855
    %v4857 = vsel %vm4854, %v4856, %v4852
    %v4858 = vmul.f32 %v4174, %v4857
    %v4859 = vrcp.pop %v4333
    %v4860 = vmul.f32 %v4333, %v4859
    %v4861 = vsub.f32 1.0, %v4860
    %v4862 = vmul.f32 %v4859, %v4861
    %v4863 = vadd.f32 %v4859, %v4862
    %vm4864 = vweird.f32 %v4333
    %vm4865 = vweird.f32 %v4859
    %vm4866 = vmor %vm4864, %vm4865
    %v4867 = vsel %vm4866, %v4859, %v4863
    %v4868 = vand.u32 2147483647, %v4333
    %vm4869 = vcmp.eq.f32.partialorder %v4868, 8.507059e+37
    %v4870 = vand.u32 %v4333, 2147483648
    %v4871 = vor.u32 1.1754944e-38, %v4870
    %v4872 = vsel %vm4869, %v4871, %v4867
    %v4873 = vmul.f32 %v4176, %v4872
    %v4874 = vrcp.pop %v4336
    %v4875 = vmul.f32 %v4336, %v4874
    %v4876 = vsub.f32 1.0, %v4875
    %v4877 = vmul.f32 %v4874, %v4876
    %v4878 = vadd.f32 %v4874, %v4877
    %vm4879 = vweird.f32 %v4336
    %vm4880 = vweird.f32 %v4874
    %vm4881 = vmor %vm4879, %vm4880
    %v4882 = vsel %vm4881, %v4874, %v4878
    %v4883 = vand.u32 2147483647, %v4336
    %vm4884 = vcmp.eq.f32.partialorder %v4883, 8.507059e+37
    %v4885 = vand.u32 %v4336, 2147483648
    %v4886 = vor.u32 1.1754944e-38, %v4885
    %v4887 = vsel %vm4884, %v4886, %v4882
    %v4888 = vmul.f32 %v4178, %v4887
    %v4889 = vrcp.pop %v4339
    %v4890 = vmul.f32 %v4339, %v4889
    %v4891 = vsub.f32 1.0, %v4890
    %v4892 = vmul.f32 %v4889, %v4891
    %v4893 = vadd.f32 %v4889, %v4892
    %vm4894 = vweird.f32 %v4339
    %vm4895 = vweird.f32 %v4889
    %vm4896 = vmor %vm4894, %vm4895
    %v4897 = vsel %vm4896, %v4889, %v4893
    %v4898 = vand.u32 2147483647, %v4339
    %vm4899 = vcmp.eq.f32.partialorder %v4898, 8.507059e+37
    %v4900 = vand.u32 %v4339, 2147483648
    %v4901 = vor.u32 1.1754944e-38, %v4900
    %v4902 = vsel %vm4899, %v4901, %v4897
    %v4903 = vmul.f32 %v4180, %v4902
    %v4904 = vrcp.pop %v4342
    %v4905 = vmul.f32 %v4342, %v4904
    %v4906 = vsub.f32 1.0, %v4905
    %v4907 = vmul.f32 %v4904, %v4906
    %v4908 = vadd.f32 %v4904, %v4907
    %vm4909 = vweird.f32 %v4342
    %vm4910 = vweird.f32 %v4904
    %vm4911 = vmor %vm4909, %vm4910
    %v4912 = vsel %vm4911, %v4904, %v4908
    %v4913 = vand.u32 2147483647, %v4342
    %vm4914 = vcmp.eq.f32.partialorder %v4913, 8.507059e+37
    %v4915 = vand.u32 %v4342, 2147483648
    %v4916 = vor.u32 1.1754944e-38, %v4915
    %v4917 = vsel %vm4914, %v4916, %v4912
    %v4918 = vmul.f32 %v4182, %v4917
    %v4919 = vrcp.pop %v4345
    %v4920 = vmul.f32 %v4345, %v4919
    %v4921 = vsub.f32 1.0, %v4920
    %v4922 = vmul.f32 %v4919, %v4921
    %v4923 = vadd.f32 %v4919, %v4922
    %vm4924 = vweird.f32 %v4345
    %vm4925 = vweird.f32 %v4919
    %vm4926 = vmor %vm4924, %vm4925
    %v4927 = vsel %vm4926, %v4919, %v4923
    %v4928 = vand.u32 2147483647, %v4345
    %vm4929 = vcmp.eq.f32.partialorder %v4928, 8.507059e+37
    %v4930 = vand.u32 %v4345, 2147483648
    %v4931 = vor.u32 1.1754944e-38, %v4930
    %v4932 = vsel %vm4929, %v4931, %v4927
    %v4933 = vmul.f32 %v4184, %v4932
    %v4934 = vrcp.pop %v4348
    %v4935 = vmul.f32 %v4348, %v4934
    %v4936 = vsub.f32 1.0, %v4935
    %v4937 = vmul.f32 %v4934, %v4936
    %v4938 = vadd.f32 %v4934, %v4937
    %vm4939 = vweird.f32 %v4348
    %vm4940 = vweird.f32 %v4934
    %vm4941 = vmor %vm4939, %vm4940
    %v4942 = vsel %vm4941, %v4934, %v4938
    %v4943 = vand.u32 2147483647, %v4348
    %vm4944 = vcmp.eq.f32.partialorder %v4943, 8.507059e+37
    %v4945 = vand.u32 %v4348, 2147483648
    %v4946 = vor.u32 1.1754944e-38, %v4945
    %v4947 = vsel %vm4944, %v4946, %v4942
    %v4948 = vmul.f32 %v4186, %v4947
    %v4949 = vrcp.pop %v4351
    %v4950 = vmul.f32 %v4351, %v4949
    %v4951 = vsub.f32 1.0, %v4950
    %v4952 = vmul.f32 %v4949, %v4951
    %v4953 = vadd.f32 %v4949, %v4952
    %vm4954 = vweird.f32 %v4351
    %vm4955 = vweird.f32 %v4949
    %vm4956 = vmor %vm4954, %vm4955
    %v4957 = vsel %vm4956, %v4949, %v4953
    %v4958 = vand.u32 2147483647, %v4351
    %vm4959 = vcmp.eq.f32.partialorder %v4958, 8.507059e+37
    %v4960 = vand.u32 %v4351, 2147483648
    %v4961 = vor.u32 1.1754944e-38, %v4960
    %v4962 = vsel %vm4959, %v4961, %v4957
    %v4963 = vmul.f32 %v4188, %v4962
    %v4964 = vrcp.pop %v4354
    %v4965 = vmul.f32 %v4354, %v4964
    %v4966 = vsub.f32 1.0, %v4965
    %v4967 = vmul.f32 %v4964, %v4966
    %v4968 = vadd.f32 %v4964, %v4967
    %vm4969 = vweird.f32 %v4354
    %vm4970 = vweird.f32 %v4964
    %vm4971 = vmor %vm4969, %vm4970
    %v4972 = vsel %vm4971, %v4964, %v4968
    %v4973 = vand.u32 2147483647, %v4354
    %vm4974 = vcmp.eq.f32.partialorder %v4973, 8.507059e+37
    %v4975 = vand.u32 %v4354, 2147483648
    %v4976 = vor.u32 1.1754944e-38, %v4975
    %v4977 = vsel %vm4974, %v4976, %v4972
    %v4978 = vmul.f32 %v4190, %v4977
    %v4979 = vrcp.pop %v4357
    %v4980 = vmul.f32 %v4357, %v4979
    %v4981 = vsub.f32 1.0, %v4980
    %v4982 = vmul.f32 %v4979, %v4981
    %v4983 = vadd.f32 %v4979, %v4982
    %vm4984 = vweird.f32 %v4357
    %vm4985 = vweird.f32 %v4979
    %vm4986 = vmor %vm4984, %vm4985
    %v4987 = vsel %vm4986, %v4979, %v4983
    %v4988 = vand.u32 2147483647, %v4357
    %vm4989 = vcmp.eq.f32.partialorder %v4988, 8.507059e+37
    %v4990 = vand.u32 %v4357, 2147483648
    %v4991 = vor.u32 1.1754944e-38, %v4990
    %v4992 = vsel %vm4989, %v4991, %v4987
    %v4993 = vmul.f32 %v4192, %v4992
    %v4994 = vrcp.pop %v4360
    %v4995 = vmul.f32 %v4360, %v4994
    %v4996 = vsub.f32 1.0, %v4995
    %v4997 = vmul.f32 %v4994, %v4996
    %v4998 = vadd.f32 %v4994, %v4997
    %vm4999 = vweird.f32 %v4360
    %vm5000 = vweird.f32 %v4994
    %vm5001 = vmor %vm4999, %vm5000
    %v5002 = vsel %vm5001, %v4994, %v4998
    %v5003 = vand.u32 2147483647, %v4360
    %vm5004 = vcmp.eq.f32.partialorder %v5003, 8.507059e+37
    %v5005 = vand.u32 %v4360, 2147483648
    %v5006 = vor.u32 1.1754944e-38, %v5005
    %v5007 = vsel %vm5004, %v5006, %v5002
    %v5008 = vmul.f32 %v4194, %v5007
    %v5009 = vrcp.pop %v4363
    %v5010 = vmul.f32 %v4363, %v5009
    %v5011 = vsub.f32 1.0, %v5010
    %v5012 = vmul.f32 %v5009, %v5011
    %v5013 = vadd.f32 %v5009, %v5012
    %vm5014 = vweird.f32 %v4363
    %vm5015 = vweird.f32 %v5009
    %vm5016 = vmor %vm5014, %vm5015
    %v5017 = vsel %vm5016, %v5009, %v5013
    %v5018 = vand.u32 2147483647, %v4363
    %vm5019 = vcmp.eq.f32.partialorder %v5018, 8.507059e+37
    %v5020 = vand.u32 %v4363, 2147483648
    %v5021 = vor.u32 1.1754944e-38, %v5020
    %v5022 = vsel %vm5019, %v5021, %v5017
    %v5023 = vmul.f32 %v4196, %v5022
    %v5024 = vrcp.pop %v4366
    %v5025 = vmul.f32 %v4366, %v5024
    %v5026 = vsub.f32 1.0, %v5025
    %v5027 = vmul.f32 %v5024, %v5026
    %v5028 = vadd.f32 %v5024, %v5027
    %vm5029 = vweird.f32 %v4366
    %vm5030 = vweird.f32 %v5024
    %vm5031 = vmor %vm5029, %vm5030
    %v5032 = vsel %vm5031, %v5024, %v5028
    %v5033 = vand.u32 2147483647, %v4366
    %vm5034 = vcmp.eq.f32.partialorder %v5033, 8.507059e+37
    %v5035 = vand.u32 %v4366, 2147483648
    %v5036 = vor.u32 1.1754944e-38, %v5035
    %v5037 = vsel %vm5034, %v5036, %v5032
    %v5038 = vmul.f32 %v4198, %v5037
    %v5039 = vrcp.pop %v4369
    %v5040 = vmul.f32 %v4369, %v5039
    %v5041 = vsub.f32 1.0, %v5040
    %v5042 = vmul.f32 %v5039, %v5041
    %v5043 = vadd.f32 %v5039, %v5042
    %vm5044 = vweird.f32 %v4369
    %vm5045 = vweird.f32 %v5039
    %vm5046 = vmor %vm5044, %vm5045
    %v5047 = vsel %vm5046, %v5039, %v5043
    %v5048 = vand.u32 2147483647, %v4369
    %vm5049 = vcmp.eq.f32.partialorder %v5048, 8.507059e+37
    %v5050 = vand.u32 %v4369, 2147483648
    %v5051 = vor.u32 1.1754944e-38, %v5050
    %v5052 = vsel %vm5049, %v5051, %v5047
    %v5053 = vmul.f32 %v4200, %v5052
    %v5054 = vrcp.pop %v4372
    %v5055 = vmul.f32 %v4372, %v5054
    %v5056 = vsub.f32 1.0, %v5055
    %v5057 = vmul.f32 %v5054, %v5056
    %v5058 = vadd.f32 %v5054, %v5057
    %vm5059 = vweird.f32 %v4372
    %vm5060 = vweird.f32 %v5054
    %vm5061 = vmor %vm5059, %vm5060
    %v5062 = vsel %vm5061, %v5054, %v5058
    %v5063 = vand.u32 2147483647, %v4372
    %vm5064 = vcmp.eq.f32.partialorder %v5063, 8.507059e+37
    %v5065 = vand.u32 %v4372, 2147483648
    %v5066 = vor.u32 1.1754944e-38, %v5065
    %v5067 = vsel %vm5064, %v5066, %v5062
    %v5068 = vmul.f32 %v4202, %v5067
    %v5069 = vrcp.pop %v4375
    %v5070 = vmul.f32 %v4375, %v5069
    %v5071 = vsub.f32 1.0, %v5070
    %v5072 = vmul.f32 %v5069, %v5071
    %v5073 = vadd.f32 %v5069, %v5072
    %vm5074 = vweird.f32 %v4375
    %vm5075 = vweird.f32 %v5069
    %vm5076 = vmor %vm5074, %vm5075
    %v5077 = vsel %vm5076, %v5069, %v5073
    %v5078 = vand.u32 2147483647, %v4375
    %vm5079 = vcmp.eq.f32.partialorder %v5078, 8.507059e+37
    %v5080 = vand.u32 %v4375, 2147483648
    %v5081 = vor.u32 1.1754944e-38, %v5080
    %v5082 = vsel %vm5079, %v5081, %v5077
    %v5083 = vmul.f32 %v4204, %v5082
    %v5084 = vrcp.pop %v4378
    %v5085 = vmul.f32 %v4378, %v5084
    %v5086 = vsub.f32 1.0, %v5085
    %v5087 = vmul.f32 %v5084, %v5086
    %v5088 = vadd.f32 %v5084, %v5087
    %vm5089 = vweird.f32 %v4378
    %vm5090 = vweird.f32 %v5084
    %vm5091 = vmor %vm5089, %vm5090
    %v5092 = vsel %vm5091, %v5084, %v5088
    %v5093 = vand.u32 2147483647, %v4378
    %vm5094 = vcmp.eq.f32.partialorder %v5093, 8.507059e+37
    %v5095 = vand.u32 %v4378, 2147483648
    %v5096 = vor.u32 1.1754944e-38, %v5095
    %v5097 = vsel %vm5094, %v5096, %v5092
    %v5098 = vmul.f32 %v4206, %v5097
    %v5099 = vrcp.pop %v4381
    %v5100 = vmul.f32 %v4381, %v5099
    %v5101 = vsub.f32 1.0, %v5100
    %v5102 = vmul.f32 %v5099, %v5101
    %v5103 = vadd.f32 %v5099, %v5102
    %vm5104 = vweird.f32 %v4381
    %vm5105 = vweird.f32 %v5099
    %vm5106 = vmor %vm5104, %vm5105
    %v5107 = vsel %vm5106, %v5099, %v5103
    %v5108 = vand.u32 2147483647, %v4381
    %vm5109 = vcmp.eq.f32.partialorder %v5108, 8.507059e+37
    %v5110 = vand.u32 %v4381, 2147483648
    %v5111 = vor.u32 1.1754944e-38, %v5110
    %v5112 = vsel %vm5109, %v5111, %v5107
    %v5113 = vmul.f32 %v4208, %v5112
    %v5114 = vrcp.pop %v4384
    %v5115 = vmul.f32 %v4384, %v5114
    %v5116 = vsub.f32 1.0, %v5115
    %v5117 = vmul.f32 %v5114, %v5116
    %v5118 = vadd.f32 %v5114, %v5117
    %vm5119 = vweird.f32 %v4384
    %vm5120 = vweird.f32 %v5114
    %vm5121 = vmor %vm5119, %vm5120
    %v5122 = vsel %vm5121, %v5114, %v5118
    %v5123 = vand.u32 2147483647, %v4384
    %vm5124 = vcmp.eq.f32.partialorder %v5123, 8.507059e+37
    %v5125 = vand.u32 %v4384, 2147483648
    %v5126 = vor.u32 1.1754944e-38, %v5125
    %v5127 = vsel %vm5124, %v5126, %v5122
    %v5128 = vmul.f32 %v4210, %v5127
    %v5129 = vrcp.pop %v4387
    %v5130 = vmul.f32 %v4387, %v5129
    %v5131 = vsub.f32 1.0, %v5130
    %v5132 = vmul.f32 %v5129, %v5131
    %v5133 = vadd.f32 %v5129, %v5132
    %vm5134 = vweird.f32 %v4387
    %vm5135 = vweird.f32 %v5129
    %vm5136 = vmor %vm5134, %vm5135
    %v5137 = vsel %vm5136, %v5129, %v5133
    %v5138 = vand.u32 2147483647, %v4387
    %vm5139 = vcmp.eq.f32.partialorder %v5138, 8.507059e+37
    %v5140 = vand.u32 %v4387, 2147483648
    %v5141 = vor.u32 1.1754944e-38, %v5140
    %v5142 = vsel %vm5139, %v5141, %v5137
    %v5143 = vmul.f32 %v4212, %v5142
    %v5144 = vrcp.pop %v4390
    %v5145 = vmul.f32 %v4390, %v5144
    %v5146 = vsub.f32 1.0, %v5145
    %v5147 = vmul.f32 %v5144, %v5146
    %v5148 = vadd.f32 %v5144, %v5147
    %vm5149 = vweird.f32 %v4390
    %vm5150 = vweird.f32 %v5144
    %vm5151 = vmor %vm5149, %vm5150
    %v5152 = vsel %vm5151, %v5144, %v5148
    %v5153 = vand.u32 2147483647, %v4390
    %vm5154 = vcmp.eq.f32.partialorder %v5153, 8.507059e+37
    %v5155 = vand.u32 %v4390, 2147483648
    %v5156 = vor.u32 1.1754944e-38, %v5155
    %v5157 = vsel %vm5154, %v5156, %v5152
    %v5158 = vmul.f32 %v4214, %v5157
    %v5159 = vrcp.pop %v4393
    %v5160 = vmul.f32 %v4393, %v5159
    %v5161 = vsub.f32 1.0, %v5160
    %v5162 = vmul.f32 %v5159, %v5161
    %v5163 = vadd.f32 %v5159, %v5162
    %vm5164 = vweird.f32 %v4393
    %vm5165 = vweird.f32 %v5159
    %vm5166 = vmor %vm5164, %vm5165
    %v5167 = vsel %vm5166, %v5159, %v5163
    %v5168 = vand.u32 2147483647, %v4393
    %vm5169 = vcmp.eq.f32.partialorder %v5168, 8.507059e+37
    %v5170 = vand.u32 %v4393, 2147483648
    %v5171 = vor.u32 1.1754944e-38, %v5170
    %v5172 = vsel %vm5169, %v5171, %v5167
    %v5173 = vmul.f32 %v4216, %v5172
    %v5174 = vrcp.pop %v4396
    %v5175 = vmul.f32 %v4396, %v5174
    %v5176 = vsub.f32 1.0, %v5175
    %v5177 = vmul.f32 %v5174, %v5176
    %v5178 = vadd.f32 %v5174, %v5177
    %vm5179 = vweird.f32 %v4396
    %vm5180 = vweird.f32 %v5174
    %vm5181 = vmor %vm5179, %vm5180
    %v5182 = vsel %vm5181, %v5174, %v5178
    %v5183 = vand.u32 2147483647, %v4396
    %vm5184 = vcmp.eq.f32.partialorder %v5183, 8.507059e+37
    %v5185 = vand.u32 %v4396, 2147483648
    %v5186 = vor.u32 1.1754944e-38, %v5185
    %v5187 = vsel %vm5184, %v5186, %v5182
    %v5188 = vmul.f32 %v4218, %v5187
    %v5189 = vrcp.pop %v4399
    %v5190 = vmul.f32 %v4399, %v5189
    %v5191 = vsub.f32 1.0, %v5190
    %v5192 = vmul.f32 %v5189, %v5191
    %v5193 = vadd.f32 %v5189, %v5192
    %vm5194 = vweird.f32 %v4399
    %vm5195 = vweird.f32 %v5189
    %vm5196 = vmor %vm5194, %vm5195
    %v5197 = vsel %vm5196, %v5189, %v5193
    %v5198 = vand.u32 2147483647, %v4399
    %vm5199 = vcmp.eq.f32.partialorder %v5198, 8.507059e+37
    %v5200 = vand.u32 %v4399, 2147483648
    %v5201 = vor.u32 1.1754944e-38, %v5200
    %v5202 = vsel %vm5199, %v5201, %v5197
    %v5203 = vmul.f32 %v4220, %v5202
    %v5204 = vrcp.pop %v4402
    %v5205 = vmul.f32 %v4402, %v5204
    %v5206 = vsub.f32 1.0, %v5205
    %v5207 = vmul.f32 %v5204, %v5206
    %v5208 = vadd.f32 %v5204, %v5207
    %vm5209 = vweird.f32 %v4402
    %vm5210 = vweird.f32 %v5204
    %vm5211 = vmor %vm5209, %vm5210
    %v5212 = vsel %vm5211, %v5204, %v5208
    %v5213 = vand.u32 2147483647, %v4402
    %vm5214 = vcmp.eq.f32.partialorder %v5213, 8.507059e+37
    %v5215 = vand.u32 %v4402, 2147483648
    %v5216 = vor.u32 1.1754944e-38, %v5215
    %v5217 = vsel %vm5214, %v5216, %v5212
    %v5218 = vmul.f32 %v4222, %v5217
    %v5219 = vrcp.pop %v4405
    %v5220 = vmul.f32 %v4405, %v5219
    %v5221 = vsub.f32 1.0, %v5220
    %v5222 = vmul.f32 %v5219, %v5221
    %v5223 = vadd.f32 %v5219, %v5222
    %vm5224 = vweird.f32 %v4405
    %vm5225 = vweird.f32 %v5219
    %vm5226 = vmor %vm5224, %vm5225
    %v5227 = vsel %vm5226, %v5219, %v5223
    %v5228 = vand.u32 2147483647, %v4405
    %vm5229 = vcmp.eq.f32.partialorder %v5228, 8.507059e+37
    %v5230 = vand.u32 %v4405, 2147483648
    %v5231 = vor.u32 1.1754944e-38, %v5230
    %v5232 = vsel %vm5229, %v5231, %v5227
    %v5233 = vmul.f32 %v4224, %v5232
    %v5234 = vrcp.pop %v4408
    %v5235 = vmul.f32 %v4408, %v5234
    %v5236 = vsub.f32 1.0, %v5235
    %v5237 = vmul.f32 %v5234, %v5236
    %v5238 = vadd.f32 %v5234, %v5237
    %vm5239 = vweird.f32 %v4408
    %vm5240 = vweird.f32 %v5234
    %vm5241 = vmor %vm5239, %vm5240
    %v5242 = vsel %vm5241, %v5234, %v5238
    %v5243 = vand.u32 2147483647, %v4408
    %vm5244 = vcmp.eq.f32.partialorder %v5243, 8.507059e+37
    %v5245 = vand.u32 %v4408, 2147483648
    %v5246 = vor.u32 1.1754944e-38, %v5245
    %v5247 = vsel %vm5244, %v5246, %v5242
    %v5248 = vmul.f32 %v4226, %v5247
    %v5249 = vrcp.pop %v4411
    %v5250 = vmul.f32 %v4411, %v5249
    %v5251 = vsub.f32 1.0, %v5250
    %v5252 = vmul.f32 %v5249, %v5251
    %v5253 = vadd.f32 %v5249, %v5252
    %vm5254 = vweird.f32 %v4411
    %vm5255 = vweird.f32 %v5249
    %vm5256 = vmor %vm5254, %vm5255
    %v5257 = vsel %vm5256, %v5249, %v5253
    %v5258 = vand.u32 2147483647, %v4411
    %vm5259 = vcmp.eq.f32.partialorder %v5258, 8.507059e+37
    %v5260 = vand.u32 %v4411, 2147483648
    %v5261 = vor.u32 1.1754944e-38, %v5260
    %v5262 = vsel %vm5259, %v5261, %v5257
    %v5263 = vmul.f32 %v4228, %v5262
    %v5264 = vrcp.pop %v4414
    %v5265 = vmul.f32 %v4414, %v5264
    %v5266 = vsub.f32 1.0, %v5265
    %v5267 = vmul.f32 %v5264, %v5266
    %v5268 = vadd.f32 %v5264, %v5267
    %vm5269 = vweird.f32 %v4414
    %vm5270 = vweird.f32 %v5264
    %vm5271 = vmor %vm5269, %vm5270
    %v5272 = vsel %vm5271, %v5264, %v5268
    %v5273 = vand.u32 2147483647, %v4414
    %vm5274 = vcmp.eq.f32.partialorder %v5273, 8.507059e+37
    %v5275 = vand.u32 %v4414, 2147483648
    %v5276 = vor.u32 1.1754944e-38, %v5275
    %v5277 = vsel %vm5274, %v5276, %v5272
    %v5278 = vmul.f32 %v4230, %v5277
    %v5279 = vrcp.pop %v4417
    %v5280 = vmul.f32 %v4417, %v5279
    %v5281 = vsub.f32 1.0, %v5280
    %v5282 = vmul.f32 %v5279, %v5281
    %v5283 = vadd.f32 %v5279, %v5282
    %vm5284 = vweird.f32 %v4417
    %vm5285 = vweird.f32 %v5279
    %vm5286 = vmor %vm5284, %vm5285
    %v5287 = vsel %vm5286, %v5279, %v5283
    %v5288 = vand.u32 2147483647, %v4417
    %vm5289 = vcmp.eq.f32.partialorder %v5288, 8.507059e+37
    %v5290 = vand.u32 %v4417, 2147483648
    %v5291 = vor.u32 1.1754944e-38, %v5290
    %v5292 = vsel %vm5289, %v5291, %v5287
    %v5293 = vmul.f32 %v4232, %v5292
    %v5294 = vrcp.pop %v4420
    %v5295 = vmul.f32 %v4420, %v5294
    %v5296 = vsub.f32 1.0, %v5295
    %v5297 = vmul.f32 %v5294, %v5296
    %v5298 = vadd.f32 %v5294, %v5297
    %vm5299 = vweird.f32 %v4420
    %vm5300 = vweird.f32 %v5294
    %vm5301 = vmor %vm5299, %vm5300
    %v5302 = vsel %vm5301, %v5294, %v5298
    %v5303 = vand.u32 2147483647, %v4420
    %vm5304 = vcmp.eq.f32.partialorder %v5303, 8.507059e+37
    %v5305 = vand.u32 %v4420, 2147483648
    %v5306 = vor.u32 1.1754944e-38, %v5305
    %v5307 = vsel %vm5304, %v5306, %v5302
    %v5308 = vmul.f32 %v4234, %v5307
    %v5309 = vrcp.pop %v4423
    %v5310 = vmul.f32 %v4423, %v5309
    %v5311 = vsub.f32 1.0, %v5310
    %v5312 = vmul.f32 %v5309, %v5311
    %v5313 = vadd.f32 %v5309, %v5312
    %vm5314 = vweird.f32 %v4423
    %vm5315 = vweird.f32 %v5309
    %vm5316 = vmor %vm5314, %vm5315
    %v5317 = vsel %vm5316, %v5309, %v5313
    %v5318 = vand.u32 2147483647, %v4423
    %vm5319 = vcmp.eq.f32.partialorder %v5318, 8.507059e+37
    %v5320 = vand.u32 %v4423, 2147483648
    %v5321 = vor.u32 1.1754944e-38, %v5320
    %v5322 = vsel %vm5319, %v5321, %v5317
    %v5323 = vmul.f32 %v4236, %v5322
    %v5324 = vrcp.pop %v4426
    %v5325 = vmul.f32 %v4426, %v5324
    %v5326 = vsub.f32 1.0, %v5325
    %v5327 = vmul.f32 %v5324, %v5326
    %v5328 = vadd.f32 %v5324, %v5327
    %vm5329 = vweird.f32 %v4426
    %vm5330 = vweird.f32 %v5324
    %vm5331 = vmor %vm5329, %vm5330
    %v5332 = vsel %vm5331, %v5324, %v5328
    %v5333 = vand.u32 2147483647, %v4426
    %vm5334 = vcmp.eq.f32.partialorder %v5333, 8.507059e+37
    %v5335 = vand.u32 %v4426, 2147483648
    %v5336 = vor.u32 1.1754944e-38, %v5335
    %v5337 = vsel %vm5334, %v5336, %v5332
    %v5338 = vmul.f32 %v4238, %v5337
    %v5339 = vrcp.pop %v4429
    %v5340 = vmul.f32 %v4429, %v5339
    %v5341 = vsub.f32 1.0, %v5340
    %v5342 = vmul.f32 %v5339, %v5341
    %v5343 = vadd.f32 %v5339, %v5342
    %vm5344 = vweird.f32 %v4429
    %vm5345 = vweird.f32 %v5339
    %vm5346 = vmor %vm5344, %vm5345
    %v5347 = vsel %vm5346, %v5339, %v5343
    %v5348 = vand.u32 2147483647, %v4429
    %vm5349 = vcmp.eq.f32.partialorder %v5348, 8.507059e+37
    %v5350 = vand.u32 %v4429, 2147483648
    %v5351 = vor.u32 1.1754944e-38, %v5350
    %v5352 = vsel %vm5349, %v5351, %v5347
    %v5353 = vmul.f32 %v4240, %v5352
    %v5354 = vrcp.pop %v4432
    %v5355 = vmul.f32 %v4432, %v5354
    %v5356 = vsub.f32 1.0, %v5355
    %v5357 = vmul.f32 %v5354, %v5356
    %v5358 = vadd.f32 %v5354, %v5357
    %vm5359 = vweird.f32 %v4432
    %vm5360 = vweird.f32 %v5354
    %vm5361 = vmor %vm5359, %vm5360
    %v5362 = vsel %vm5361, %v5354, %v5358
    %v5363 = vand.u32 2147483647, %v4432
    %vm5364 = vcmp.eq.f32.partialorder %v5363, 8.507059e+37
    %v5365 = vand.u32 %v4432, 2147483648
    %v5366 = vor.u32 1.1754944e-38, %v5365
    %v5367 = vsel %vm5364, %v5366, %v5362
    %v5368 = vmul.f32 %v4242, %v5367
    %v5369 = vrcp.pop %v4435
    %v5370 = vmul.f32 %v4435, %v5369
    %v5371 = vsub.f32 1.0, %v5370
    %v5372 = vmul.f32 %v5369, %v5371
    %v5373 = vadd.f32 %v5369, %v5372
    %vm5374 = vweird.f32 %v4435
    %vm5375 = vweird.f32 %v5369
    %vm5376 = vmor %vm5374, %vm5375
    %v5377 = vsel %vm5376, %v5369, %v5373
    %v5378 = vand.u32 2147483647, %v4435
    %vm5379 = vcmp.eq.f32.partialorder %v5378, 8.507059e+37
    %v5380 = vand.u32 %v4435, 2147483648
    %v5381 = vor.u32 1.1754944e-38, %v5380
    %v5382 = vsel %vm5379, %v5381, %v5377
    %v5383 = vmul.f32 %v4244, %v5382
    %v5384 = vrcp.pop %v4438
    %v5385 = vmul.f32 %v4438, %v5384
    %v5386 = vsub.f32 1.0, %v5385
    %v5387 = vmul.f32 %v5384, %v5386
    %v5388 = vadd.f32 %v5384, %v5387
    %vm5389 = vweird.f32 %v4438
    %vm5390 = vweird.f32 %v5384
    %vm5391 = vmor %vm5389, %vm5390
    %v5392 = vsel %vm5391, %v5384, %v5388
    %v5393 = vand.u32 2147483647, %v4438
    %vm5394 = vcmp.eq.f32.partialorder %v5393, 8.507059e+37
    %v5395 = vand.u32 %v4438, 2147483648
    %v5396 = vor.u32 1.1754944e-38, %v5395
    %v5397 = vsel %vm5394, %v5396, %v5392
    %v5398 = vmul.f32 %v4246, %v5397
    %v5400 = vsel %vm574, %v4453, 0
    %v5403 = vsel %vm574, %v4468, 0
    %v5406 = vsel %vm574, %v4483, 0
    %v5409 = vsel %vm574, %v4498, 0
    %v5412 = vsel %vm574, %v4513, 0
    %v5415 = vsel %vm574, %v4528, 0
    %v5418 = vsel %vm574, %v4543, 0
    %v5421 = vsel %vm574, %v4558, 0
    %v5424 = vsel %vm574, %v4573, 0
    %v5427 = vsel %vm574, %v4588, 0
    %v5430 = vsel %vm574, %v4603, 0
    %v5433 = vsel %vm574, %v4618, 0
    %v5436 = vsel %vm574, %v4633, 0
    %v5439 = vsel %vm574, %v4648, 0
    %v5442 = vsel %vm574, %v4663, 0
    %v5445 = vsel %vm574, %v4678, 0
    %v5448 = vsel %vm574, %v4693, 0
    %v5451 = vsel %vm574, %v4708, 0
    %v5454 = vsel %vm574, %v4723, 0
    %v5457 = vsel %vm574, %v4738, 0
    %v5460 = vsel %vm574, %v4753, 0
    %v5463 = vsel %vm574, %v4768, 0
    %v5466 = vsel %vm574, %v4783, 0
    %v5469 = vsel %vm574, %v4798, 0
    %v5472 = vsel %vm574, %v4813, 0
    %v5475 = vsel %vm574, %v4828, 0
    %v5478 = vsel %vm574, %v4843, 0
    %v5481 = vsel %vm574, %v4858, 0
    %v5484 = vsel %vm574, %v4873, 0
    %v5487 = vsel %vm574, %v4888, 0
    %v5490 = vsel %vm574, %v4903, 0
    %v5493 = vsel %vm574, %v4918, 0
    %v5496 = vsel %vm574, %v4933, 0
    %v5499 = vsel %vm574, %v4948, 0
    %v5502 = vsel %vm574, %v4963, 0
    %v5505 = vsel %vm574, %v4978, 0
    %v5508 = vsel %vm574, %v4993, 0
    %v5511 = vsel %vm574, %v5008, 0
    %v5514 = vsel %vm574, %v5023, 0
    %v5517 = vsel %vm574, %v5038, 0
    %v5520 = vsel %vm574, %v5053, 0
    %v5523 = vsel %vm574, %v5068, 0
    %v5526 = vsel %vm574, %v5083, 0
    %v5529 = vsel %vm574, %v5098, 0
    %v5532 = vsel %vm574, %v5113, 0
    %v5535 = vsel %vm574, %v5128, 0
    %v5538 = vsel %vm574, %v5143, 0
    %v5541 = vsel %vm574, %v5158, 0
    %v5544 = vsel %vm574, %v5173, 0
    %v5547 = vsel %vm574, %v5188, 0
    %v5550 = vsel %vm574, %v5203, 0
    %v5553 = vsel %vm574, %v5218, 0
    %v5556 = vsel %vm574, %v5233, 0
    %v5559 = vsel %vm574, %v5248, 0
    %v5562 = vsel %vm574, %v5263, 0
    %v5565 = vsel %vm574, %v5278, 0
    %v5568 = vsel %vm574, %v5293, 0
    %v5571 = vsel %vm574, %v5308, 0
    %v5574 = vsel %vm574, %v5323, 0
    %v5577 = vsel %vm574, %v5338, 0
    %v5580 = vsel %vm574, %v5353, 0
    %v5583 = vsel %vm574, %v5368, 0
    %v5586 = vsel %vm574, %v5383, 0
    %v5589 = vsel %vm574, %v5398, 0
    %5591 = vmatpush.msra.mxu0 0.0
    %5592 = vmatpush.msra.mxu0 0.0
    %5593 = vmatpush.msra.mxu0 0.0
    %5594 = vmatpush.msra.mxu0 0.0
    %5595 = vmatpush.msra.mxu0 0.0
    %5596 = vmatpush.msra.mxu0 0.0
    %5597 = vmatpush.msra.mxu0 0.0
    %5598 = vmatpush.msra.mxu0 0.0
    %5599 = vmatpush.msra.mxu0 0.0
    %5600 = vmatpush.msra.mxu0 0.0
    %5601 = vmatpush.msra.mxu0 0.0
    %5602 = vmatpush.msra.mxu0 0.0
    %5603 = vmatpush.msra.mxu0 %v3192
    %5604 = vmatpush.msra.mxu0 %v3189
    %5605 = vmatpush.msra.mxu0 %v3186
    %5606 = vmatpush.msra.mxu0 %v3183
    %5607 = vmatmul.f32.gmra.mxu0 %v5400
    %v5608 = vpop.f32.mrf.mxu0
    %v5609 = vadd.f32 0.0, %v5608
    %5610 = vmatmul.f32.gmra.mxu0 %v5403
    %v5611 = vpop.f32.mrf.mxu0
    %v5612 = vadd.f32 0.0, %v5611
    %5613 = vmatmul.f32.gmra.mxu0 %v5406
    %v5614 = vpop.f32.mrf.mxu0
    %v5615 = vadd.f32 0.0, %v5614
    %5616 = vmatmul.f32.gmra.mxu0 %v5409
    %v5617 = vpop.f32.mrf.mxu0
    %v5618 = vadd.f32 0.0, %v5617
    %5619 = vmatmul.f32.gmra.mxu0 %v5412
    %v5620 = vpop.f32.mrf.mxu0
    %v5621 = vadd.f32 0.0, %v5620
    %5622 = vmatmul.f32.gmra.mxu0 %v5415
    %v5623 = vpop.f32.mrf.mxu0
    %v5624 = vadd.f32 0.0, %v5623
    %5625 = vmatmul.f32.gmra.mxu0 %v5418
    %v5626 = vpop.f32.mrf.mxu0
    %v5627 = vadd.f32 0.0, %v5626
    %5628 = vmatmul.f32.gmra.mxu0 %v5421
    %v5629 = vpop.f32.mrf.mxu0
    %v5630 = vadd.f32 0.0, %v5629
    %5631 = vmatmul.f32.gmra.mxu0 %v5424
    %v5632 = vpop.f32.mrf.mxu0
    %v5633 = vadd.f32 0.0, %v5632
    %5634 = vmatmul.f32.gmra.mxu0 %v5427
    %v5635 = vpop.f32.mrf.mxu0
    %v5636 = vadd.f32 0.0, %v5635
    %5637 = vmatmul.f32.gmra.mxu0 %v5430
    %v5638 = vpop.f32.mrf.mxu0
    %v5639 = vadd.f32 0.0, %v5638
    %5640 = vmatmul.f32.gmra.mxu0 %v5433
    %v5641 = vpop.f32.mrf.mxu0
    %v5642 = vadd.f32 0.0, %v5641
    %5643 = vmatmul.f32.gmra.mxu0 %v5436
    %v5644 = vpop.f32.mrf.mxu0
    %v5645 = vadd.f32 0.0, %v5644
    %5646 = vmatmul.f32.gmra.mxu0 %v5439
    %v5647 = vpop.f32.mrf.mxu0
    %v5648 = vadd.f32 0.0, %v5647
    %5649 = vmatmul.f32.gmra.mxu0 %v5442
    %v5650 = vpop.f32.mrf.mxu0
    %v5651 = vadd.f32 0.0, %v5650
    %5652 = vmatmul.f32.gmra.mxu0 %v5445
    %v5653 = vpop.f32.mrf.mxu0
    %v5654 = vadd.f32 0.0, %v5653
    %5655 = vmatmul.f32.gmra.mxu0 %v5448
    %v5656 = vpop.f32.mrf.mxu0
    %v5657 = vadd.f32 0.0, %v5656
    %5658 = vmatmul.f32.gmra.mxu0 %v5451
    %v5659 = vpop.f32.mrf.mxu0
    %v5660 = vadd.f32 0.0, %v5659
    %5661 = vmatmul.f32.gmra.mxu0 %v5454
    %v5662 = vpop.f32.mrf.mxu0
    %v5663 = vadd.f32 0.0, %v5662
    %5664 = vmatmul.f32.gmra.mxu0 %v5457
    %v5665 = vpop.f32.mrf.mxu0
    %v5666 = vadd.f32 0.0, %v5665
    %5667 = vmatmul.f32.gmra.mxu0 %v5460
    %v5668 = vpop.f32.mrf.mxu0
    %v5669 = vadd.f32 0.0, %v5668
    %5670 = vmatmul.f32.gmra.mxu0 %v5463
    %v5671 = vpop.f32.mrf.mxu0
    %v5672 = vadd.f32 0.0, %v5671
    %5673 = vmatmul.f32.gmra.mxu0 %v5466
    %v5674 = vpop.f32.mrf.mxu0
    %v5675 = vadd.f32 0.0, %v5674
    %5676 = vmatmul.f32.gmra.mxu0 %v5469
    %v5677 = vpop.f32.mrf.mxu0
    %v5678 = vadd.f32 0.0, %v5677
    %5679 = vmatmul.f32.gmra.mxu0 %v5472
    %v5680 = vpop.f32.mrf.mxu0
    %v5681 = vadd.f32 0.0, %v5680
    %5682 = vmatmul.f32.gmra.mxu0 %v5475
    %v5683 = vpop.f32.mrf.mxu0
    %v5684 = vadd.f32 0.0, %v5683
    %5685 = vmatmul.f32.gmra.mxu0 %v5478
    %v5686 = vpop.f32.mrf.mxu0
    %v5687 = vadd.f32 0.0, %v5686
    %5688 = vmatmul.f32.gmra.mxu0 %v5481
    %v5689 = vpop.f32.mrf.mxu0
    %v5690 = vadd.f32 0.0, %v5689
    %5691 = vmatmul.f32.gmra.mxu0 %v5484
    %v5692 = vpop.f32.mrf.mxu0
    %v5693 = vadd.f32 0.0, %v5692
    %5694 = vmatmul.f32.gmra.mxu0 %v5487
    %v5695 = vpop.f32.mrf.mxu0
    %v5696 = vadd.f32 0.0, %v5695
    %5697 = vmatmul.f32.gmra.mxu0 %v5490
    %v5698 = vpop.f32.mrf.mxu0
    %v5699 = vadd.f32 0.0, %v5698
    %5700 = vmatmul.f32.gmra.mxu0 %v5493
    %v5701 = vpop.f32.mrf.mxu0
    %v5702 = vadd.f32 0.0, %v5701
    %5703 = vmatmul.f32.gmra.mxu0 %v5496
    %v5704 = vpop.f32.mrf.mxu0
    %v5705 = vadd.f32 0.0, %v5704
    %5706 = vmatmul.f32.gmra.mxu0 %v5499
    %v5707 = vpop.f32.mrf.mxu0
    %v5708 = vadd.f32 0.0, %v5707
    %5709 = vmatmul.f32.gmra.mxu0 %v5502
    %v5710 = vpop.f32.mrf.mxu0
    %v5711 = vadd.f32 0.0, %v5710
    %5712 = vmatmul.f32.gmra.mxu0 %v5505
    %v5713 = vpop.f32.mrf.mxu0
    %v5714 = vadd.f32 0.0, %v5713
    %5715 = vmatmul.f32.gmra.mxu0 %v5508
    %v5716 = vpop.f32.mrf.mxu0
    %v5717 = vadd.f32 0.0, %v5716
    %5718 = vmatmul.f32.gmra.mxu0 %v5511
    %v5719 = vpop.f32.mrf.mxu0
    %v5720 = vadd.f32 0.0, %v5719
    %5721 = vmatmul.f32.gmra.mxu0 %v5514
    %v5722 = vpop.f32.mrf.mxu0
    %v5723 = vadd.f32 0.0, %v5722
    %5724 = vmatmul.f32.gmra.mxu0 %v5517
    %v5725 = vpop.f32.mrf.mxu0
    %v5726 = vadd.f32 0.0, %v5725
    %5727 = vmatmul.f32.gmra.mxu0 %v5520
    %v5728 = vpop.f32.mrf.mxu0
    %v5729 = vadd.f32 0.0, %v5728
    %5730 = vmatmul.f32.gmra.mxu0 %v5523
    %v5731 = vpop.f32.mrf.mxu0
    %v5732 = vadd.f32 0.0, %v5731
    %5733 = vmatmul.f32.gmra.mxu0 %v5526
    %v5734 = vpop.f32.mrf.mxu0
    %v5735 = vadd.f32 0.0, %v5734
    %5736 = vmatmul.f32.gmra.mxu0 %v5529
    %v5737 = vpop.f32.mrf.mxu0
    %v5738 = vadd.f32 0.0, %v5737
    %5739 = vmatmul.f32.gmra.mxu0 %v5532
    %v5740 = vpop.f32.mrf.mxu0
    %v5741 = vadd.f32 0.0, %v5740
    %5742 = vmatmul.f32.gmra.mxu0 %v5535
    %v5743 = vpop.f32.mrf.mxu0
    %v5744 = vadd.f32 0.0, %v5743
    %5745 = vmatmul.f32.gmra.mxu0 %v5538
    %v5746 = vpop.f32.mrf.mxu0
    %v5747 = vadd.f32 0.0, %v5746
    %5748 = vmatmul.f32.gmra.mxu0 %v5541
    %v5749 = vpop.f32.mrf.mxu0
    %v5750 = vadd.f32 0.0, %v5749
    %5751 = vmatmul.f32.gmra.mxu0 %v5544
    %v5752 = vpop.f32.mrf.mxu0
    %v5753 = vadd.f32 0.0, %v5752
    %5754 = vmatmul.f32.gmra.mxu0 %v5547
    %v5755 = vpop.f32.mrf.mxu0
    %v5756 = vadd.f32 0.0, %v5755
    %5757 = vmatmul.f32.gmra.mxu0 %v5550
    %v5758 = vpop.f32.mrf.mxu0
    %v5759 = vadd.f32 0.0, %v5758
    %5760 = vmatmul.f32.gmra.mxu0 %v5553
    %v5761 = vpop.f32.mrf.mxu0
    %v5762 = vadd.f32 0.0, %v5761
    %5763 = vmatmul.f32.gmra.mxu0 %v5556
    %v5764 = vpop.f32.mrf.mxu0
    %v5765 = vadd.f32 0.0, %v5764
    %5766 = vmatmul.f32.gmra.mxu0 %v5559
    %v5767 = vpop.f32.mrf.mxu0
    %v5768 = vadd.f32 0.0, %v5767
    %5769 = vmatmul.f32.gmra.mxu0 %v5562
    %v5770 = vpop.f32.mrf.mxu0
    %v5771 = vadd.f32 0.0, %v5770
    %5772 = vmatmul.f32.gmra.mxu0 %v5565
    %v5773 = vpop.f32.mrf.mxu0
    %v5774 = vadd.f32 0.0, %v5773
    %5775 = vmatmul.f32.gmra.mxu0 %v5568
    %v5776 = vpop.f32.mrf.mxu0
    %v5777 = vadd.f32 0.0, %v5776
    %5778 = vmatmul.f32.gmra.mxu0 %v5571
    %v5779 = vpop.f32.mrf.mxu0
    %v5780 = vadd.f32 0.0, %v5779
    %5781 = vmatmul.f32.gmra.mxu0 %v5574
    %v5782 = vpop.f32.mrf.mxu0
    %v5783 = vadd.f32 0.0, %v5782
    %5784 = vmatmul.f32.gmra.mxu0 %v5577
    %v5785 = vpop.f32.mrf.mxu0
    %v5786 = vadd.f32 0.0, %v5785
    %5787 = vmatmul.f32.gmra.mxu0 %v5580
    %v5788 = vpop.f32.mrf.mxu0
    %v5789 = vadd.f32 0.0, %v5788
    %5790 = vmatmul.f32.gmra.mxu0 %v5583
    %v5791 = vpop.f32.mrf.mxu0
    %v5792 = vadd.f32 0.0, %v5791
    %5793 = vmatmul.f32.gmra.mxu0 %v5586
    %v5794 = vpop.f32.mrf.mxu0
    %v5795 = vadd.f32 0.0, %v5794
    %5796 = vmatmul.f32.gmra.mxu0 %v5589
    %v5797 = vpop.f32.mrf.mxu0
    %v5798 = vadd.f32 0.0, %v5797
    %5799 = vdwg.mxu0
    %v5800 = vmul.f32 %v5609, %v114
    %v5801 = vmul.f32 %v5612, %v115
    %v5802 = vmul.f32 %v5615, %v116
    %v5803 = vmul.f32 %v5618, %v117
    %v5804 = vmul.f32 %v5621, %v118
    %v5805 = vmul.f32 %v5624, %v119
    %v5806 = vmul.f32 %v5627, %v120
    %v5807 = vmul.f32 %v5630, %v121
    %v5808 = vmul.f32 %v5633, %v122
    %v5809 = vmul.f32 %v5636, %v123
    %v5810 = vmul.f32 %v5639, %v124
    %v5811 = vmul.f32 %v5642, %v125
    %v5812 = vmul.f32 %v5645, %v126
    %v5813 = vmul.f32 %v5648, %v127
    %v5814 = vmul.f32 %v5651, %v128
    %v5815 = vmul.f32 %v5654, %v129
    %v5816 = vmul.f32 %v5657, %v130
    %v5817 = vmul.f32 %v5660, %v131
    %v5818 = vmul.f32 %v5663, %v132
    %v5819 = vmul.f32 %v5666, %v133
    %v5820 = vmul.f32 %v5669, %v134
    %v5821 = vmul.f32 %v5672, %v135
    %v5822 = vmul.f32 %v5675, %v136
    %v5823 = vmul.f32 %v5678, %v137
    %v5824 = vmul.f32 %v5681, %v138
    %v5825 = vmul.f32 %v5684, %v139
    %v5826 = vmul.f32 %v5687, %v140
    %v5827 = vmul.f32 %v5690, %v141
    %v5828 = vmul.f32 %v5693, %v142
    %v5829 = vmul.f32 %v5696, %v143
    %v5830 = vmul.f32 %v5699, %v144
    %v5831 = vmul.f32 %v5702, %v145
    %v5832 = vmul.f32 %v5705, %v146
    %v5833 = vmul.f32 %v5708, %v147
    %v5834 = vmul.f32 %v5711, %v148
    %v5835 = vmul.f32 %v5714, %v149
    %v5836 = vmul.f32 %v5717, %v150
    %v5837 = vmul.f32 %v5720, %v151
    %v5838 = vmul.f32 %v5723, %v152
    %v5839 = vmul.f32 %v5726, %v153
    %v5840 = vmul.f32 %v5729, %v154
    %v5841 = vmul.f32 %v5732, %v155
    %v5842 = vmul.f32 %v5735, %v156
    %v5843 = vmul.f32 %v5738, %v157
    %v5844 = vmul.f32 %v5741, %v158
    %v5845 = vmul.f32 %v5744, %v159
    %v5846 = vmul.f32 %v5747, %v160
    %v5847 = vmul.f32 %v5750, %v161
    %v5848 = vmul.f32 %v5753, %v162
    %v5849 = vmul.f32 %v5756, %v163
    %v5850 = vmul.f32 %v5759, %v164
    %v5851 = vmul.f32 %v5762, %v165
    %v5852 = vmul.f32 %v5765, %v166
    %v5853 = vmul.f32 %v5768, %v167
    %v5854 = vmul.f32 %v5771, %v168
    %v5855 = vmul.f32 %v5774, %v169
    %v5856 = vmul.f32 %v5777, %v170
    %v5857 = vmul.f32 %v5780, %v171
    %v5858 = vmul.f32 %v5783, %v172
    %v5859 = vmul.f32 %v5786, %v173
    %v5860 = vmul.f32 %v5789, %v174
    %v5861 = vmul.f32 %v5792, %v175
    %v5862 = vmul.f32 %v5795, %v176
    %v5863 = vmul.f32 %v5798, %v177
    %v5864 = vadd.f32 %v5800, %v5816
    %v5865 = vadd.f32 %v5801, %v5817
    %v5866 = vadd.f32 %v5802, %v5818
    %v5867 = vadd.f32 %v5803, %v5819
    %v5868 = vadd.f32 %v5804, %v5820
    %v5869 = vadd.f32 %v5805, %v5821
    %v5870 = vadd.f32 %v5806, %v5822
    %v5871 = vadd.f32 %v5807, %v5823
    %v5872 = vadd.f32 %v5808, %v5824
    %v5873 = vadd.f32 %v5809, %v5825
    %v5874 = vadd.f32 %v5810, %v5826
    %v5875 = vadd.f32 %v5811, %v5827
    %v5876 = vadd.f32 %v5812, %v5828
    %v5877 = vadd.f32 %v5813, %v5829
    %v5878 = vadd.f32 %v5814, %v5830
    %v5879 = vadd.f32 %v5815, %v5831
    %v5880 = vadd.f32 %v5864, %v5832
    %v5881 = vadd.f32 %v5865, %v5833
    %v5882 = vadd.f32 %v5866, %v5834
    %v5883 = vadd.f32 %v5867, %v5835
    %v5884 = vadd.f32 %v5868, %v5836
    %v5885 = vadd.f32 %v5869, %v5837
    %v5886 = vadd.f32 %v5870, %v5838
    %v5887 = vadd.f32 %v5871, %v5839
    %v5888 = vadd.f32 %v5872, %v5840
    %v5889 = vadd.f32 %v5873, %v5841
    %v5890 = vadd.f32 %v5874, %v5842
    %v5891 = vadd.f32 %v5875, %v5843
    %v5892 = vadd.f32 %v5876, %v5844
    %v5893 = vadd.f32 %v5877, %v5845
    %v5894 = vadd.f32 %v5878, %v5846
    %v5895 = vadd.f32 %v5879, %v5847
    %v5896 = vadd.f32 %v5880, %v5848
    %v5897 = vadd.f32 %v5881, %v5849
    %v5898 = vadd.f32 %v5882, %v5850
    %v5899 = vadd.f32 %v5883, %v5851
    %v5900 = vadd.f32 %v5884, %v5852
    %v5901 = vadd.f32 %v5885, %v5853
    %v5902 = vadd.f32 %v5886, %v5854
    %v5903 = vadd.f32 %v5887, %v5855
    %v5904 = vadd.f32 %v5888, %v5856
    %v5905 = vadd.f32 %v5889, %v5857
    %v5906 = vadd.f32 %v5890, %v5858
    %v5907 = vadd.f32 %v5891, %v5859
    %v5908 = vadd.f32 %v5892, %v5860
    %v5909 = vadd.f32 %v5893, %v5861
    %v5910 = vadd.f32 %v5894, %v5862
    %v5911 = vadd.f32 %v5895, %v5863
    %v5912 = vld [vmem:[%s13] sm:$0xff]
    %v5913 = vld [vmem:[%s13 + $0x8] sm:$0xff]
    %v5914 = vld [vmem:[%s13 + $0x10] sm:$0xff]
    %v5915 = vld [vmem:[%s13 + $0x18] sm:$0xff]
    %v5916 = vld [vmem:[%s14] sm:$0x1]
    %v5918 = vperm.slane %v5916, 0
    %v5921 = vsel %vm574, %v5896, 0
    %v5924 = vsel %vm574, %v5897, 0
    %v5927 = vsel %vm574, %v5898, 0
    %v5930 = vsel %vm574, %v5899, 0
    %v5933 = vsel %vm574, %v5900, 0
    %v5936 = vsel %vm574, %v5901, 0
    %v5939 = vsel %vm574, %v5902, 0
    %v5942 = vsel %vm574, %v5903, 0
    %v5945 = vsel %vm574, %v5904, 0
    %v5948 = vsel %vm574, %v5905, 0
    %v5951 = vsel %vm574, %v5906, 0
    %v5954 = vsel %vm574, %v5907, 0
    %v5957 = vsel %vm574, %v5908, 0
    %v5960 = vsel %vm574, %v5909, 0
    %v5963 = vsel %vm574, %v5910, 0
    %v5966 = vsel %vm574, %v5911, 0
    %5968 = vmatpush.msra.mxu0 0.0
    %5969 = vmatpush.msra.mxu0 0.0
    %5970 = vmatpush.msra.mxu0 0.0
    %5971 = vmatpush.msra.mxu0 0.0
    %5972 = vmatpush.msra.mxu0 0.0
    %5973 = vmatpush.msra.mxu0 0.0
    %5974 = vmatpush.msra.mxu0 0.0
    %5975 = vmatpush.msra.mxu0 0.0
    %5976 = vmatpush.msra.mxu0 0.0
    %5977 = vmatpush.msra.mxu0 0.0
    %5978 = vmatpush.msra.mxu0 0.0
    %5979 = vmatpush.msra.mxu0 0.0
    %5980 = vmatpush.msra.mxu0 %v5915
    %5981 = vmatpush.msra.mxu0 %v5914
    %5982 = vmatpush.msra.mxu0 %v5913
    %5983 = vmatpush.msra.mxu0 %v5912
    %5984 = vmatmul.f32.gmra.mxu0 %v5921
    %v5985 = vpop.f32.mrf.mxu0
    %v5986 = vadd.f32 %v5918, %v5985
    %5987 = vmatmul.f32.gmra.mxu0 %v5924
    %v5988 = vpop.f32.mrf.mxu0
    %v5989 = vadd.f32 %v5918, %v5988
    %5990 = vmatmul.f32.gmra.mxu0 %v5927
    %v5991 = vpop.f32.mrf.mxu0
    %v5992 = vadd.f32 %v5918, %v5991
    %5993 = vmatmul.f32.gmra.mxu0 %v5930
    %v5994 = vpop.f32.mrf.mxu0
    %v5995 = vadd.f32 %v5918, %v5994
    %5996 = vmatmul.f32.gmra.mxu0 %v5933
    %v5997 = vpop.f32.mrf.mxu0
    %v5998 = vadd.f32 %v5918, %v5997
    %5999 = vmatmul.f32.gmra.mxu0 %v5936
    %v6000 = vpop.f32.mrf.mxu0
    %v6001 = vadd.f32 %v5918, %v6000
    %6002 = vmatmul.f32.gmra.mxu0 %v5939
    %v6003 = vpop.f32.mrf.mxu0
    %v6004 = vadd.f32 %v5918, %v6003
    %6005 = vmatmul.f32.gmra.mxu0 %v5942
    %v6006 = vpop.f32.mrf.mxu0
    %v6007 = vadd.f32 %v5918, %v6006
    %6008 = vmatmul.f32.gmra.mxu0 %v5945
    %v6009 = vpop.f32.mrf.mxu0
    %v6010 = vadd.f32 %v5918, %v6009
    %6011 = vmatmul.f32.gmra.mxu0 %v5948
    %v6012 = vpop.f32.mrf.mxu0
    %v6013 = vadd.f32 %v5918, %v6012
    %6014 = vmatmul.f32.gmra.mxu0 %v5951
    %v6015 = vpop.f32.mrf.mxu0
    %v6016 = vadd.f32 %v5918, %v6015
    %6017 = vmatmul.f32.gmra.mxu0 %v5954
    %v6018 = vpop.f32.mrf.mxu0
    %v6019 = vadd.f32 %v5918, %v6018
    %6020 = vmatmul.f32.gmra.mxu0 %v5957
    %v6021 = vpop.f32.mrf.mxu0
    %v6022 = vadd.f32 %v5918, %v6021
    %6023 = vmatmul.f32.gmra.mxu0 %v5960
    %v6024 = vpop.f32.mrf.mxu0
    %v6025 = vadd.f32 %v5918, %v6024
    %6026 = vmatmul.f32.gmra.mxu0 %v5963
    %v6027 = vpop.f32.mrf.mxu0
    %v6028 = vadd.f32 %v5918, %v6027
    %6029 = vmatmul.f32.gmra.mxu0 %v5966
    %v6030 = vpop.f32.mrf.mxu0
    %v6031 = vadd.f32 %v5918, %v6030
    %6032 = vdwg.mxu0
    %6049 = vrot.lane.b32.xlu0 %v5986, 32
    %v6050 = vpop.permute.xlu0 %6049
    %6051 = vrot.lane.b32.xlu0 %v5989, 32
    %v6052 = vpop.permute.xlu0 %6051
    %6053 = vrot.lane.b32.xlu0 %v5992, 32
    %v6054 = vpop.permute.xlu0 %6053
    %6055 = vrot.lane.b32.xlu0 %v5995, 32
    %v6056 = vpop.permute.xlu0 %6055
    %6057 = vrot.lane.b32.xlu0 %v5998, 32
    %v6058 = vpop.permute.xlu0 %6057
    %6059 = vrot.lane.b32.xlu0 %v6001, 32
    %v6060 = vpop.permute.xlu0 %6059
    %6061 = vrot.lane.b32.xlu0 %v6004, 32
    %v6062 = vpop.permute.xlu0 %6061
    %6063 = vrot.lane.b32.xlu0 %v6007, 32
    %v6064 = vpop.permute.xlu0 %6063
    %6065 = vrot.lane.b32.xlu0 %v6010, 32
    %v6066 = vpop.permute.xlu0 %6065
    %6067 = vrot.lane.b32.xlu0 %v6013, 32
    %v6068 = vpop.permute.xlu0 %6067
    %6069 = vrot.lane.b32.xlu0 %v6016, 32
    %v6070 = vpop.permute.xlu0 %6069
    %6071 = vrot.lane.b32.xlu0 %v6019, 32
    %v6072 = vpop.permute.xlu0 %6071
    %6073 = vrot.lane.b32.xlu0 %v6022, 32
    %v6074 = vpop.permute.xlu0 %6073
    %6075 = vrot.lane.b32.xlu0 %v6025, 32
    %v6076 = vpop.permute.xlu0 %6075
    %6077 = vrot.lane.b32.xlu0 %v6028, 32
    %v6078 = vpop.permute.xlu0 %6077
    %6079 = vrot.lane.b32.xlu0 %v6031, 32
    %v6080 = vpop.permute.xlu0 %6079
    %v6097 = vsel %vm574, %v2955, %v6050
    %v6098 = vsel %vm574, %v2958, %v6052
    %v6099 = vsel %vm574, %v2961, %v6054
    %v6100 = vsel %vm574, %v2964, %v6056
    %v6101 = vsel %vm574, %v2967, %v6058
    %v6102 = vsel %vm574, %v2970, %v6060
    %v6103 = vsel %vm574, %v2973, %v6062
    %v6104 = vsel %vm574, %v2976, %v6064
    %v6105 = vsel %vm574, %v2979, %v6066
    %v6106 = vsel %vm574, %v2982, %v6068
    %v6107 = vsel %vm574, %v2985, %v6070
    %v6108 = vsel %vm574, %v2988, %v6072
    %v6109 = vsel %vm574, %v2991, %v6074
    %v6110 = vsel %vm574, %v2994, %v6076
    %v6111 = vsel %vm574, %v2997, %v6078
    %v6112 = vsel %vm574, %v3000, %v6080
    %6113 = vst.msk [vmem:[#allocation8] sm:$0xff] %vm186, %v6097
    %6114 = vst.msk [vmem:[#allocation8 + $0x8] sm:$0xff] %vm186, %v6098
    %6115 = vst.msk [vmem:[#allocation8 + $0x10] sm:$0xff] %vm186, %v6099
    %6116 = vst.msk [vmem:[#allocation8 + $0x18] sm:$0xff] %vm186, %v6100
    %6117 = vst.msk [vmem:[#allocation8 + $0x20] sm:$0xff] %vm186, %v6101
    %6118 = vst.msk [vmem:[#allocation8 + $0x28] sm:$0xff] %vm186, %v6102
    %6119 = vst.msk [vmem:[#allocation8 + $0x30] sm:$0xff] %vm186, %v6103
    %6120 = vst.msk [vmem:[#allocation8 + $0x38] sm:$0xff] %vm186, %v6104
    %6121 = vst.msk [vmem:[#allocation8 + $0x40] sm:$0xff] %vm186, %v6105
    %6122 = vst.msk [vmem:[#allocation8 + $0x48] sm:$0xff] %vm186, %v6106
    %6123 = vst.msk [vmem:[#allocation8 + $0x50] sm:$0xff] %vm186, %v6107
    %6124 = vst.msk [vmem:[#allocation8 + $0x58] sm:$0xff] %vm186, %v6108
    %6125 = vst.msk [vmem:[#allocation8 + $0x60] sm:$0xff] %vm186, %v6109
    %6126 = vst.msk [vmem:[#allocation8 + $0x68] sm:$0xff] %vm186, %v6110
    %6127 = vst.msk [vmem:[#allocation8 + $0x70] sm:$0xff] %vm186, %v6111
    %6128 = vst.msk [vmem:[#allocation8 + $0x78] sm:$0xff] %vm186, %v6112
    // Predicated region
    $region74: #{hilo_forward.1} parent=1 // pred_check
      _
    $region75: #{hilo_forward.1} parent=1 // pred_check_branch
      %6130 = sbr.rel (0) target = $region77
    $region76: #{hilo_forward.1} parent=1 // pred_region
      %6132 = vsyncadd [#allocation4], 0
      %s6133 = sshll.u32 [#allocation8], 4
      %s6134 = int_to_ptr.vmem [resolvable:$true] %s6133
      %s6135 = sshll.u32 %s15, 4
      %s6136 = int_to_ptr.hbm [resolvable:$true] %s6135
      %6141 = dma.vmem_to_hbm [thread:$0]  %s6134, 2048, %s6136, [#allocation4], 128, 128, 8
    $region77: #{hilo_forward.1} parent=1 // pred_fallthru
      _
    // Predicated region
    $region78: #{hilo_forward.1} parent=1 // pred_check
      _
    $region79: #{hilo_forward.1} parent=1 // pred_check_branch
      %6143 = sbr.rel (0) target = $region81
    $region80: #{hilo_forward.1} parent=1 // pred_region
      %6145 = dma.done [#allocation4], 2048
    $region81: #{hilo_forward.1} parent=1 // pred_fallthru
      _
    %6146 = vsyncpa [#allocation3], 1
    %6147 = vsyncpa [#allocation6], 1
    %6148 = vsyncpa [#allocation4], 1

</llo_original>
